<compile_context>
chip_gen: v6e
topology: v6e:2x2x1
jax: 0.10.0
libtpu: 0.0.40
codegen_flags: <defaults>
</compile_context>

<pallas_src>
import functools

import jax
import jax.numpy as jnp
from jax.experimental import pallas as pl
from jax.experimental.pallas import tpu as pltpu

WOFF = 8  # sublane-aligned left padding of the depthwise scratch


# ----------------------------------------------------------------------------
# Pallas kernel: one grid step == NB batch images, everything fused.
# ----------------------------------------------------------------------------
def _shufflenet_kernel(x_ref, w1_ref, s1_ref, b1_ref,
                       w2_ref, s2_ref, b2_ref,
                       w3_ref, s3_ref, b3_ref,
                       wsc_ref, ssc_ref, bsc_ref,
                       o_ref, pad_ref,
                       *, NB, H, W, CIN, CP, mm_dtype):
    M = NB * H * W
    WPAD = W + WOFF

    def mm(a, b):  # MXU matmul, f32 accumulation
        return jnp.dot(a.astype(mm_dtype), b.astype(mm_dtype),
                       preferred_element_type=jnp.float32)

    # Depthwise-scratch border: zero only the read-but-never-written region
    # (rows 0 / H+1 and the 8 left columns); the interior is fully
    # overwritten below.  Done every step so it is correct regardless of how
    # a multi-core chip shards the "parallel" grid axis (per-core scratch).
    pad_ref[:, 0:1, :, :] = jnp.zeros((NB, 1, WPAD, CP), jnp.float32)
    pad_ref[:, H + 1:H + 2, :, :] = jnp.zeros((NB, 1, WPAD, CP), jnp.float32)
    pad_ref[:, 1:H + 1, 0:WOFF, :] = jnp.zeros((NB, H, WOFF, CP), jnp.float32)

    # conv1 (grouped 1x1 folded into a dense (CIN, CP) weight) + bn1 + relu.
    xm = x_ref[...].astype(jnp.float32).reshape(M, CIN)
    h1 = jnp.maximum(mm(xm, w1_ref[...]) * s1_ref[...] + b1_ref[...], 0.0)

    # conv2: 3x3 depthwise, stride 1, pad 1, + bn2 (no relu).
    # Interior stored at a sublane-aligned offset; each kh row is read once
    # as a full-width aligned slab and the +/-1 column shifts are done with
    # pltpu.roll on the XLU.  The roll wrap-around lands on the zero left
    # pad, which supplies the right-border zero for kw=2.
    pad_ref[:, 1:H + 1, WOFF:WOFF + W, :] = h1.reshape(NB, H, W, CP)
    acc = None
    for kh in range(3):
        row = pad_ref[:, kh:kh + H, :, :]            # (NB, H, WPAD, CP), aligned
        for kw in range(3):
            shift = (1 - kw) % WPAD                  # +1 / 0 / WPAD-1 (== -1)
            shifted = row if shift == 0 else pltpu.roll(row, shift, axis=2)
            term = shifted[:, :, WOFF:WOFF + W, :] * w2_ref[kh * 3 + kw]
            acc = term if acc is None else acc + term
    h2 = acc * s2_ref[...] + b2_ref[...]

    # conv3 (channel shuffle folded into the weight columns) + bn3 + relu.
    h3 = mm(h2.reshape(M, CP), w3_ref[...])
    h3 = jnp.maximum(h3 * s3_ref[...] + b3_ref[...], 0.0)

    # Shortcut: projection 1x1 + bn, or identity (identity matrix folded
    # into wsc).  The LHS is (re-)read from the still-resident input block
    # right where it is used, so nothing large stays live across the
    # depthwise/conv3 section.
    xm2 = x_ref[...].astype(jnp.float32).reshape(M, CIN)
    sc = mm(xm2, wsc_ref[...]) * ssc_ref[...] + bsc_ref[...]

    o_ref[...] = (h3 + sc).reshape(NB, H, W, CP).astype(o_ref.dtype)


# ----------------------------------------------------------------------------
# Wrapper: grid sizing + pallas_call (+ optional NCHW glue)
# ----------------------------------------------------------------------------
def _num_tensorcores():
    """Best-effort TensorCores-per-device count (v5e/v6e: 1, v7x: 2)."""
    try:
        info = pltpu.get_tpu_info()
        for name in ("num_cores", "core_count", "num_tensorcores",
                     "tensorcores_per_chip", "cores_per_chip"):
            v = getattr(info, name, None)
            if v:
                return int(v)
    except Exception:
        pass
    try:
        v = getattr(jax.devices()[0], "num_cores", None)
        if v:
            return int(v)
    except Exception:
        pass
    return 1


def shufflenet_unit_nhwc(x, p, matmul_dtype=jnp.bfloat16):
    """Fused ShuffleNetUnit on an NHWC input; returns NHWC output (COUT ch)."""
    N, H, W, CIN = x.shape
    CP, COUT = int(p["cp"]), int(p["cout"])
    assert W % 8 == 0, "kernel assumes a sublane-aligned W axis"

    # One grid step per TensorCore: a single step on 1-TC chips (no per-step
    # overhead, larger matmul M); >=2 "parallel" steps only when multiple
    # TensorCores exist so the grid can be sharded across them.
    num_cores = _num_tensorcores()
    steps = 1
    if num_cores > 1 and N > 1:
        for s in range(min(N, num_cores), 1, -1):
            if N % s == 0:
                steps = s
                break
    NB = N // steps

    kernel = functools.partial(_shufflenet_kernel, NB=NB, H=H, W=W,
                               CIN=CIN, CP=CP, mm_dtype=matmul_dtype)

    operands = (x, p["w1"], p["s1"], p["b1"],
                p["w2k"], p["s2"], p["b2"],
                p["w3"], p["s3"], p["b3"],
                p["wsc"], p["ssc"], p["bsc"])

    def const_spec(a):
        nd = a.ndim
        return pl.BlockSpec(a.shape, lambda n, _nd=nd: (0,) * _nd)

    in_specs = [pl.BlockSpec((NB, H, W, CIN), lambda n: (n, 0, 0, 0))]
    in_specs += [const_spec(a) for a in operands[1:]]

    out_p = pl.pallas_call(
        kernel,
        out_shape=jax.ShapeDtypeStruct((N, H, W, CP), x.dtype),
        grid=(steps,),
        in_specs=in_specs,
        out_specs=pl.BlockSpec((NB, H, W, CP), lambda n: (n, 0, 0, 0)),
        scratch_shapes=[pltpu.VMEM((NB, H + 2, W + WOFF, CP), jnp.float32)],
        compiler_params=pltpu.CompilerParams(
            dimension_semantics=("parallel",)),
    )(*operands)
    return out_p[..., :COUT]                          # drop lane padding


def shufflenet_unit(x_nchw, p, matmul_dtype=jnp.bfloat16):
    """PyTorch-layout (NCHW) entry point.  NHWC callers should use
    shufflenet_unit_nhwc directly and skip both layout passes."""
    x = jnp.transpose(x_nchw, (0, 2, 3, 1))          # NCHW -> NHWC
    out = shufflenet_unit_nhwc(x, p, matmul_dtype=matmul_dtype)
    return jnp.transpose(out, (0, 3, 1, 2))          # NHWC -> NCHW


# ----------------------------------------------------------------------------
# Deterministic parameter init (PyTorch shapes) + folding into kernel params.
# ----------------------------------------------------------------------------
def init_params(key, in_channels, out_channels, groups=3, eps=1e-5):
    assert out_channels % 4 == 0
    mid = out_channels // 4
    assert in_channels % groups == 0 and mid % groups == 0
    keys = jax.random.split(key, 8)

    def bn_params(k, c):
        k1, k2, k3, k4 = jax.random.split(k, 4)
        gamma = 1.0 + 0.1 * jax.random.normal(k1, (c,), jnp.float32)
        beta = 0.1 * jax.random.normal(k2, (c,), jnp.float32)
        mean = 0.1 * jax.random.normal(k3, (c,), jnp.float32)
        var = 0.5 + jax.nn.softplus(jax.random.normal(k4, (c,), jnp.float32))
        return gamma, beta, mean, var

    w1 = 0.2 * jax.random.normal(keys[0], (mid, in_channels // groups, 1, 1), jnp.float32)
    w2 = 0.2 * jax.random.normal(keys[1], (mid, 1, 3, 3), jnp.float32)
    w3 = 0.2 * jax.random.normal(keys[2], (out_channels, mid // groups, 1, 1), jnp.float32)
    bn1 = bn_params(keys[3], mid)
    bn2 = bn_params(keys[4], mid)
    bn3 = bn_params(keys[5], out_channels)
    has_proj = in_channels != out_channels
    if has_proj:
        ws = 0.2 * jax.random.normal(keys[6], (out_channels, in_channels, 1, 1), jnp.float32)
        bns = bn_params(keys[7], out_channels)
    else:
        ws, bns = None, None
    raw = dict(w1=w1, w2=w2, w3=w3, bn1=bn1, bn2=bn2, bn3=bn3, ws=ws, bns=bns)

    # --- fold into lane-dense kernel params (inference-mode BN) -------------
    CP = ((max(mid, out_channels) + 127) // 128) * 128

    def fold_bn(bn):
        g, b, m, v = bn
        scale = g / jnp.sqrt(v + eps)
        return scale, b - m * scale

    def grouped_dense(w, cin, cout, g):
        w2d = w[:, :, 0, 0]
        dense = jnp.zeros((cout, cin), jnp.float32)
        og, ig = cout // g, cin // g
        for gi in range(g):
            dense = dense.at[gi * og:(gi + 1) * og, gi * ig:(gi + 1) * ig].set(
                w2d[gi * og:(gi + 1) * og])
        return dense

    def pad_lanes(v, c):  # zero-pad last dim to c
        return jnp.pad(v, [(0, 0)] * (v.ndim - 1) + [(0, c - v.shape[-1])])

    def pad_sb(s, b):     # scale pads with 1, bias with 0 -> (1, CP)
        sp = jnp.concatenate([s, jnp.ones((CP - s.shape[0],), jnp.float32)]).reshape(1, CP)
        bp = jnp.concatenate([b, jnp.zeros((CP - b.shape[0],), jnp.float32)]).reshape(1, CP)
        return sp, bp

    d1 = grouped_dense(w1, in_channels, mid, groups)        # (mid, cin)
    d3 = grouped_dense(w3, mid, out_channels, groups)       # (cout, mid)
    cpg = mid // groups
    c = jnp.arange(mid)
    sigma = (c % cpg) * groups + (c // cpg)                 # shuffled[sigma[c]] = h2[c]
    d3_eff = d3[:, sigma]                                   # fold shuffle into conv3

    s1, b1 = fold_bn(bn1)
    s2, b2 = fold_bn(bn2)
    s3, b3 = fold_bn(bn3)

    w1_t = pad_lanes(jnp.transpose(d1), CP)                 # (cin, CP)
    w3_t = jnp.zeros((CP, CP), jnp.float32).at[:mid, :out_channels].set(
        jnp.transpose(d3_eff))                              # (CP, CP)
    w2k = pad_lanes(
        jnp.transpose(w2[:, 0].reshape(mid, 9), (1, 0)).reshape(9, 1, mid), CP)

    s1p, b1p = pad_sb(s1, b1)
    s2p, b2p = pad_sb(s2, b2)
    s3p, b3p = pad_sb(s3, b3)

    if has_proj:
        ssc, bsc = fold_bn(bns)
        wsc = pad_lanes(jnp.transpose(ws[:, :, 0, 0]), CP)  # (cin, CP)
    else:  # identity shortcut expressed as an identity-matrix "projection"
        ssc = jnp.ones((out_channels,), jnp.float32)
        bsc = jnp.zeros((out_channels,), jnp.float32)
        wsc = pad_lanes(jnp.eye(in_channels, dtype=jnp.float32), CP)
    sscp, bscp = pad_sb(ssc, bsc)

    kparams = dict(w1=w1_t, s1=s1p, b1=b1p, w2k=w2k, s2=s2p, b2=b2p,
                   w3=w3_t, s3=s3p, b3=b3p, wsc=wsc, ssc=sscp, bsc=bscp,
                   cout=out_channels, cp=CP)
    return raw, kparams


# ----------------------------------------------------------------------------
# Pure-JAX reference (NCHW, same semantics as the PyTorch module in eval mode)
# ----------------------------------------------------------------------------
def reference_forward(x, raw, groups, eps=1e-5):
    prec = jax.lax.Precision.HIGHEST  # keep the reference f32-exact

    def conv(x, w, g=1, pad=0):
        return jax.lax.conv_general_dilated(
            x, w, (1, 1), [(pad, pad), (pad, pad)],
            dimension_numbers=("NCHW", "OIHW", "NCHW"),
            feature_group_count=g, precision=prec)

    def bn(x, params):
        g, b, m, v = params
        return ((x - m[None, :, None, None]) / jnp.sqrt(v + eps)[None, :, None, None]
                * g[None, :, None, None] + b[None, :, None, None])

    def shuffle(x, g):
        N, C, H, W = x.shape
        return x.reshape(N, g, C // g, H, W).transpose(0, 2, 1, 3, 4).reshape(N, C, H, W)

    out = jax.nn.relu(bn(conv(x, raw["w1"], groups), raw["bn1"]))
    out = bn(conv(out, raw["w2"], raw["w2"].shape[0], pad=1), raw["bn2"])
    out = shuffle(out, groups)
    out = jax.nn.relu(bn(conv(out, raw["w3"], groups), raw["bn3"]))
    sc = x if raw["ws"] is None else bn(conv(x, raw["ws"]), raw["bns"])
    return out + sc


if __name__ == "__main__":
    key = jax.random.PRNGKey(0)
    kx, kp, kx2, kp2 = jax.random.split(key, 4)

    # Projection-shortcut unit (24 -> 48 channels).
    N, CIN, H, W = 2, 24, 16, 16
    COUT, GROUPS = 48, 3
    x = jax.random.normal(kx, (N, CIN, H, W), jnp.float32)
    raw, kparams = init_params(kp, CIN, COUT, GROUPS)
    ref = reference_forward(x, raw, GROUPS)

    # f32 MXU debug mode: exact comparison.
    out = jax.block_until_ready(
        shufflenet_unit(x, kparams, matmul_dtype=jnp.float32))
    assert out.shape == (N, COUT, H, W), out.shape
    err = float(jnp.max(jnp.abs(out - ref)))
    assert err < 1e-4, f"f32 max abs err {err}"

    # bf16 MXU operands (production default on v5e/v6e/v7x): looser tolerance.
    out_bf = jax.block_until_ready(shufflenet_unit(x, kparams))
    err_bf = float(jnp.max(jnp.abs(out_bf - ref)))
    assert err_bf < 2.5e-1, f"bf16 max abs err {err_bf}"

    # Identity-shortcut unit (48 -> 48 channels), f32-exact check.
    x2 = jax.random.normal(kx2, (N, COUT, H, W), jnp.float32)
    raw2, kparams2 = init_params(kp2, COUT, COUT, GROUPS)
    ref2 = reference_forward(x2, raw2, GROUPS)
    out2 = jax.block_until_ready(
        shufflenet_unit(x2, kparams2, matmul_dtype=jnp.float32))
    err2 = float(jnp.max(jnp.abs(out2 - ref2)))
    assert err2 < 1e-4, f"identity-path max abs err {err2}"

    print("KERNEL_OK")
</pallas_src>

<mosaic_0001>
module attributes {stable_mosaic.version = 11 : i64} {
  func.func @_shufflenet_kernel(%arg0: i32, %arg1: memref<2x16x16x24xf32, #tpu.memory_space<vmem>>, %arg2: memref<24x128xf32, #tpu.memory_space<vmem>>, %arg3: memref<1x128xf32, #tpu.memory_space<vmem>>, %arg4: memref<1x128xf32, #tpu.memory_space<vmem>>, %arg5: memref<9x1x128xf32, #tpu.memory_space<vmem>>, %arg6: memref<1x128xf32, #tpu.memory_space<vmem>>, %arg7: memref<1x128xf32, #tpu.memory_space<vmem>>, %arg8: memref<128x128xf32, #tpu.memory_space<vmem>>, %arg9: memref<1x128xf32, #tpu.memory_space<vmem>>, %arg10: memref<1x128xf32, #tpu.memory_space<vmem>>, %arg11: memref<24x128xf32, #tpu.memory_space<vmem>>, %arg12: memref<1x128xf32, #tpu.memory_space<vmem>>, %arg13: memref<1x128xf32, #tpu.memory_space<vmem>>, %arg14: memref<2x16x16x128xf32, #tpu.memory_space<vmem>>, %arg15: memref<2x18x24x128xf32, #tpu.memory_space<vmem>>) attributes {dimension_semantics = [#tpu.dimension_semantics<parallel>], iteration_bounds = array<i64: 1>, scalar_prefetch = 0 : i64, scratch_operands = 1 : i64, tpu.core_type = #tpu.core_type<tc>, window_params = [{transform_indices = @transform_0, window_bounds = array<i64: 2, 16, 16, 24>}, {pipeline_mode = #tpu.pipeline_mode<synchronous>, transform_indices = @transform_1, window_bounds = array<i64: 24, 128>}, {pipeline_mode = #tpu.pipeline_mode<synchronous>, transform_indices = @transform_2, window_bounds = array<i64: 1, 128>}, {pipeline_mode = #tpu.pipeline_mode<synchronous>, transform_indices = @transform_3, window_bounds = array<i64: 1, 128>}, {pipeline_mode = #tpu.pipeline_mode<synchronous>, transform_indices = @transform_4, window_bounds = array<i64: 9, 1, 128>}, {pipeline_mode = #tpu.pipeline_mode<synchronous>, transform_indices = @transform_5, window_bounds = array<i64: 1, 128>}, {pipeline_mode = #tpu.pipeline_mode<synchronous>, transform_indices = @transform_6, window_bounds = array<i64: 1, 128>}, {pipeline_mode = #tpu.pipeline_mode<synchronous>, transform_indices = @transform_7, window_bounds = array<i64: 128, 128>}, {pipeline_mode = #tpu.pipeline_mode<synchronous>, transform_indices = @transform_8, window_bounds = array<i64: 1, 128>}, {pipeline_mode = #tpu.pipeline_mode<synchronous>, transform_indices = @transform_9, window_bounds = array<i64: 1, 128>}, {pipeline_mode = #tpu.pipeline_mode<synchronous>, transform_indices = @transform_10, window_bounds = array<i64: 24, 128>}, {pipeline_mode = #tpu.pipeline_mode<synchronous>, transform_indices = @transform_11, window_bounds = array<i64: 1, 128>}, {pipeline_mode = #tpu.pipeline_mode<synchronous>, transform_indices = @transform_12, window_bounds = array<i64: 1, 128>}, {transform_indices = @transform_13, window_bounds = array<i64: 2, 16, 16, 128>}]} {
    %cst = arith.constant 0.000000e+00 : f32
    %0 = vector.broadcast %cst : f32 to vector<2x1x24x128xf32>
    %c0 = arith.constant 0 : index
    %c0_0 = arith.constant 0 : index
    %c0_1 = arith.constant 0 : index
    %c0_2 = arith.constant 0 : index
    %1 = vector.load %arg15[%c0, %c0_0, %c0_1, %c0_2] : memref<2x18x24x128xf32, #tpu.memory_space<vmem>>, vector<2x1x24x128xf32>
    tpu.vector_store %arg15[%c0, %c0_0, %c0_1, %c0_2], %0 {strides = array<i32>} : memref<2x18x24x128xf32, #tpu.memory_space<vmem>>, vector<2x1x24x128xf32>,
    %cst_3 = arith.constant 0.000000e+00 : f32
    %2 = vector.broadcast %cst_3 : f32 to vector<2x1x24x128xf32>
    %c0_4 = arith.constant 0 : index
    %c17 = arith.constant 17 : index
    %c0_5 = arith.constant 0 : index
    %c0_6 = arith.constant 0 : index
    %3 = vector.load %arg15[%c0_4, %c17, %c0_5, %c0_6] : memref<2x18x24x128xf32, #tpu.memory_space<vmem>>, vector<2x1x24x128xf32>
    tpu.vector_store %arg15[%c0_4, %c17, %c0_5, %c0_6], %2 {strides = array<i32>} : memref<2x18x24x128xf32, #tpu.memory_space<vmem>>, vector<2x1x24x128xf32>,
    %cst_7 = arith.constant 0.000000e+00 : f32
    %4 = vector.broadcast %cst_7 : f32 to vector<2x16x8x128xf32>
    %c0_8 = arith.constant 0 : index
    %c1 = arith.constant 1 : index
    %c0_9 = arith.constant 0 : index
    %c0_10 = arith.constant 0 : index
    %5 = vector.load %arg15[%c0_8, %c1, %c0_9, %c0_10] : memref<2x18x24x128xf32, #tpu.memory_space<vmem>>, vector<2x16x8x128xf32>
    tpu.vector_store %arg15[%c0_8, %c1, %c0_9, %c0_10], %4 {strides = array<i32>} : memref<2x18x24x128xf32, #tpu.memory_space<vmem>>, vector<2x16x8x128xf32>,
    %c0_11 = arith.constant 0 : index
    %c0_12 = arith.constant 0 : index
    %c0_13 = arith.constant 0 : index
    %c0_14 = arith.constant 0 : index
    %6 = vector.load %arg1[%c0_11, %c0_12, %c0_13, %c0_14] : memref<2x16x16x24xf32, #tpu.memory_space<vmem>>, vector<2x16x16x24xf32>
    %7 = vector.shape_cast %6 : vector<2x16x16x24xf32> to vector<512x24xf32>
    %c0_15 = arith.constant 0 : index
    %c0_16 = arith.constant 0 : index
    %8 = vector.load %arg2[%c0_15, %c0_16] : memref<24x128xf32, #tpu.memory_space<vmem>>, vector<24x128xf32>
    %cst_17 = arith.constant dense<0.000000e+00> : vector<512x128xf32>
    %9 = tpu.matmul %7, %8, %cst_17 {dimension_numbers = #tpu.dot_dimension_numbers<[1], [0], [0], [1], [0, 0, 1, 1], [], []>} : vector<512x24xf32>, vector<24x128xf32>, vector<512x128xf32> -> vector<512x128xf32>
    %c0_18 = arith.constant 0 : index
    %c0_19 = arith.constant 0 : index
    %10 = vector.load %arg3[%c0_18, %c0_19] : memref<1x128xf32, #tpu.memory_space<vmem>>, vector<1x128xf32>
    %11 = vector.broadcast %10 : vector<1x128xf32> to vector<512x128xf32>
    %12 = arith.mulf %9, %11 : vector<512x128xf32>
    %c0_20 = arith.constant 0 : index
    %c0_21 = arith.constant 0 : index
    %13 = vector.load %arg4[%c0_20, %c0_21] : memref<1x128xf32, #tpu.memory_space<vmem>>, vector<1x128xf32>
    %14 = vector.broadcast %13 : vector<1x128xf32> to vector<512x128xf32>
    %15 = arith.addf %12, %14 : vector<512x128xf32>
    %cst_22 = arith.constant 0.000000e+00 : f32
    %16 = vector.broadcast %cst_22 : f32 to vector<512x128xf32>
    %17 = arith.maximumf %15, %16 : vector<512x128xf32>
    %18 = vector.shape_cast %17 : vector<512x128xf32> to vector<2x16x16x128xf32>
    %c0_23 = arith.constant 0 : index
    %c1_24 = arith.constant 1 : index
    %c8 = arith.constant 8 : index
    %c0_25 = arith.constant 0 : index
    %19 = vector.load %arg15[%c0_23, %c1_24, %c8, %c0_25] : memref<2x18x24x128xf32, #tpu.memory_space<vmem>>, vector<2x16x16x128xf32>
    tpu.vector_store %arg15[%c0_23, %c1_24, %c8, %c0_25], %18 {strides = array<i32>} : memref<2x18x24x128xf32, #tpu.memory_space<vmem>>, vector<2x16x16x128xf32>,
    %c0_26 = arith.constant 0 : index
    %c0_27 = arith.constant 0 : index
    %c0_28 = arith.constant 0 : index
    %c0_29 = arith.constant 0 : index
    %20 = vector.load %arg15[%c0_26, %c0_27, %c0_28, %c0_29] : memref<2x18x24x128xf32, #tpu.memory_space<vmem>>, vector<2x16x24x128xf32>
    %c1_i32 = arith.constant 1 : i32
    %21 = tpu.dynamic_rotate %20 by %c1_i32 dim 2 : vector<2x16x24x128xf32>, i32 -> vector<2x16x24x128xf32>
    %22 = vector.extract_strided_slice %21 {offsets = [0, 0, 8, 0], sizes = [2, 16, 16, 128], strides = [1, 1, 1, 1]} : vector<2x16x24x128xf32> to vector<2x16x16x128xf32>
    %c0_30 = arith.constant 0 : index
    %c0_31 = arith.constant 0 : index
    %c0_32 = arith.constant 0 : index
    %23 = vector.load %arg5[%c0_30, %c0_31, %c0_32] : memref<9x1x128xf32, #tpu.memory_space<vmem>>, vector<1x1x128xf32>
    %24 = vector.shape_cast %23 : vector<1x1x128xf32> to vector<1x128xf32>
    %25 = vector.shape_cast %24 : vector<1x128xf32> to vector<1x1x1x128xf32>
    %26 = vector.broadcast %25 : vector<1x1x1x128xf32> to vector<2x16x16x128xf32>
    %27 = arith.mulf %22, %26 : vector<2x16x16x128xf32>
    %28 = vector.extract_strided_slice %20 {offsets = [0, 0, 8, 0], sizes = [2, 16, 16, 128], strides = [1, 1, 1, 1]} : vector<2x16x24x128xf32> to vector<2x16x16x128xf32>
    %c1_33 = arith.constant 1 : index
    %c0_34 = arith.constant 0 : index
    %c0_35 = arith.constant 0 : index
    %29 = vector.load %arg5[%c1_33, %c0_34, %c0_35] : memref<9x1x128xf32, #tpu.memory_space<vmem>>, vector<1x1x128xf32>
    %30 = vector.shape_cast %29 : vector<1x1x128xf32> to vector<1x128xf32>
    %31 = vector.shape_cast %30 : vector<1x128xf32> to vector<1x1x1x128xf32>
    %32 = vector.broadcast %31 : vector<1x1x1x128xf32> to vector<2x16x16x128xf32>
    %33 = arith.mulf %28, %32 : vector<2x16x16x128xf32>
    %34 = arith.addf %27, %33 : vector<2x16x16x128xf32>
    %c23_i32 = arith.constant 23 : i32
    %35 = tpu.dynamic_rotate %20 by %c23_i32 dim 2 : vector<2x16x24x128xf32>, i32 -> vector<2x16x24x128xf32>
    %36 = vector.extract_strided_slice %35 {offsets = [0, 0, 8, 0], sizes = [2, 16, 16, 128], strides = [1, 1, 1, 1]} : vector<2x16x24x128xf32> to vector<2x16x16x128xf32>
    %c2 = arith.constant 2 : index
    %c0_36 = arith.constant 0 : index
    %c0_37 = arith.constant 0 : index
    %37 = vector.load %arg5[%c2, %c0_36, %c0_37] : memref<9x1x128xf32, #tpu.memory_space<vmem>>, vector<1x1x128xf32>
    %38 = vector.shape_cast %37 : vector<1x1x128xf32> to vector<1x128xf32>
    %39 = vector.shape_cast %38 : vector<1x128xf32> to vector<1x1x1x128xf32>
    %40 = vector.broadcast %39 : vector<1x1x1x128xf32> to vector<2x16x16x128xf32>
    %41 = arith.mulf %36, %40 : vector<2x16x16x128xf32>
    %42 = arith.addf %34, %41 : vector<2x16x16x128xf32>
    %c0_38 = arith.constant 0 : index
    %c1_39 = arith.constant 1 : index
    %c0_40 = arith.constant 0 : index
    %c0_41 = arith.constant 0 : index
    %43 = vector.load %arg15[%c0_38, %c1_39, %c0_40, %c0_41] : memref<2x18x24x128xf32, #tpu.memory_space<vmem>>, vector<2x16x24x128xf32>
    %c1_i32_42 = arith.constant 1 : i32
    %44 = tpu.dynamic_rotate %43 by %c1_i32_42 dim 2 : vector<2x16x24x128xf32>, i32 -> vector<2x16x24x128xf32>
    %45 = vector.extract_strided_slice %44 {offsets = [0, 0, 8, 0], sizes = [2, 16, 16, 128], strides = [1, 1, 1, 1]} : vector<2x16x24x128xf32> to vector<2x16x16x128xf32>
    %c3 = arith.constant 3 : index
    %c0_43 = arith.constant 0 : index
    %c0_44 = arith.constant 0 : index
    %46 = vector.load %arg5[%c3, %c0_43, %c0_44] : memref<9x1x128xf32, #tpu.memory_space<vmem>>, vector<1x1x128xf32>
    %47 = vector.shape_cast %46 : vector<1x1x128xf32> to vector<1x128xf32>
    %48 = vector.shape_cast %47 : vector<1x128xf32> to vector<1x1x1x128xf32>
    %49 = vector.broadcast %48 : vector<1x1x1x128xf32> to vector<2x16x16x128xf32>
    %50 = arith.mulf %45, %49 : vector<2x16x16x128xf32>
    %51 = arith.addf %42, %50 : vector<2x16x16x128xf32>
    %52 = vector.extract_strided_slice %43 {offsets = [0, 0, 8, 0], sizes = [2, 16, 16, 128], strides = [1, 1, 1, 1]} : vector<2x16x24x128xf32> to vector<2x16x16x128xf32>
    %c4 = arith.constant 4 : index
    %c0_45 = arith.constant 0 : index
    %c0_46 = arith.constant 0 : index
    %53 = vector.load %arg5[%c4, %c0_45, %c0_46] : memref<9x1x128xf32, #tpu.memory_space<vmem>>, vector<1x1x128xf32>
    %54 = vector.shape_cast %53 : vector<1x1x128xf32> to vector<1x128xf32>
    %55 = vector.shape_cast %54 : vector<1x128xf32> to vector<1x1x1x128xf32>
    %56 = vector.broadcast %55 : vector<1x1x1x128xf32> to vector<2x16x16x128xf32>
    %57 = arith.mulf %52, %56 : vector<2x16x16x128xf32>
    %58 = arith.addf %51, %57 : vector<2x16x16x128xf32>
    %c23_i32_47 = arith.constant 23 : i32
    %59 = tpu.dynamic_rotate %43 by %c23_i32_47 dim 2 : vector<2x16x24x128xf32>, i32 -> vector<2x16x24x128xf32>
    %60 = vector.extract_strided_slice %59 {offsets = [0, 0, 8, 0], sizes = [2, 16, 16, 128], strides = [1, 1, 1, 1]} : vector<2x16x24x128xf32> to vector<2x16x16x128xf32>
    %c5 = arith.constant 5 : index
    %c0_48 = arith.constant 0 : index
    %c0_49 = arith.constant 0 : index
    %61 = vector.load %arg5[%c5, %c0_48, %c0_49] : memref<9x1x128xf32, #tpu.memory_space<vmem>>, vector<1x1x128xf32>
    %62 = vector.shape_cast %61 : vector<1x1x128xf32> to vector<1x128xf32>
    %63 = vector.shape_cast %62 : vector<1x128xf32> to vector<1x1x1x128xf32>
    %64 = vector.broadcast %63 : vector<1x1x1x128xf32> to vector<2x16x16x128xf32>
    %65 = arith.mulf %60, %64 : vector<2x16x16x128xf32>
    %66 = arith.addf %58, %65 : vector<2x16x16x128xf32>
    %c0_50 = arith.constant 0 : index
    %c2_51 = arith.constant 2 : index
    %c0_52 = arith.constant 0 : index
    %c0_53 = arith.constant 0 : index
    %67 = vector.load %arg15[%c0_50, %c2_51, %c0_52, %c0_53] : memref<2x18x24x128xf32, #tpu.memory_space<vmem>>, vector<2x16x24x128xf32>
    %c1_i32_54 = arith.constant 1 : i32
    %68 = tpu.dynamic_rotate %67 by %c1_i32_54 dim 2 : vector<2x16x24x128xf32>, i32 -> vector<2x16x24x128xf32>
    %69 = vector.extract_strided_slice %68 {offsets = [0, 0, 8, 0], sizes = [2, 16, 16, 128], strides = [1, 1, 1, 1]} : vector<2x16x24x128xf32> to vector<2x16x16x128xf32>
    %c6 = arith.constant 6 : index
    %c0_55 = arith.constant 0 : index
    %c0_56 = arith.constant 0 : index
    %70 = vector.load %arg5[%c6, %c0_55, %c0_56] : memref<9x1x128xf32, #tpu.memory_space<vmem>>, vector<1x1x128xf32>
    %71 = vector.shape_cast %70 : vector<1x1x128xf32> to vector<1x128xf32>
    %72 = vector.shape_cast %71 : vector<1x128xf32> to vector<1x1x1x128xf32>
    %73 = vector.broadcast %72 : vector<1x1x1x128xf32> to vector<2x16x16x128xf32>
    %74 = arith.mulf %69, %73 : vector<2x16x16x128xf32>
    %75 = arith.addf %66, %74 : vector<2x16x16x128xf32>
    %76 = vector.extract_strided_slice %67 {offsets = [0, 0, 8, 0], sizes = [2, 16, 16, 128], strides = [1, 1, 1, 1]} : vector<2x16x24x128xf32> to vector<2x16x16x128xf32>
    %c7 = arith.constant 7 : index
    %c0_57 = arith.constant 0 : index
    %c0_58 = arith.constant 0 : index
    %77 = vector.load %arg5[%c7, %c0_57, %c0_58] : memref<9x1x128xf32, #tpu.memory_space<vmem>>, vector<1x1x128xf32>
    %78 = vector.shape_cast %77 : vector<1x1x128xf32> to vector<1x128xf32>
    %79 = vector.shape_cast %78 : vector<1x128xf32> to vector<1x1x1x128xf32>
    %80 = vector.broadcast %79 : vector<1x1x1x128xf32> to vector<2x16x16x128xf32>
    %81 = arith.mulf %76, %80 : vector<2x16x16x128xf32>
    %82 = arith.addf %75, %81 : vector<2x16x16x128xf32>
    %c23_i32_59 = arith.constant 23 : i32
    %83 = tpu.dynamic_rotate %67 by %c23_i32_59 dim 2 : vector<2x16x24x128xf32>, i32 -> vector<2x16x24x128xf32>
    %84 = vector.extract_strided_slice %83 {offsets = [0, 0, 8, 0], sizes = [2, 16, 16, 128], strides = [1, 1, 1, 1]} : vector<2x16x24x128xf32> to vector<2x16x16x128xf32>
    %c8_60 = arith.constant 8 : index
    %c0_61 = arith.constant 0 : index
    %c0_62 = arith.constant 0 : index
    %85 = vector.load %arg5[%c8_60, %c0_61, %c0_62] : memref<9x1x128xf32, #tpu.memory_space<vmem>>, vector<1x1x128xf32>
    %86 = vector.shape_cast %85 : vector<1x1x128xf32> to vector<1x128xf32>
    %87 = vector.shape_cast %86 : vector<1x128xf32> to vector<1x1x1x128xf32>
    %88 = vector.broadcast %87 : vector<1x1x1x128xf32> to vector<2x16x16x128xf32>
    %89 = arith.mulf %84, %88 : vector<2x16x16x128xf32>
    %90 = arith.addf %82, %89 : vector<2x16x16x128xf32>
    %c0_63 = arith.constant 0 : index
    %c0_64 = arith.constant 0 : index
    %91 = vector.load %arg6[%c0_63, %c0_64] : memref<1x128xf32, #tpu.memory_space<vmem>>, vector<1x128xf32>
    %92 = vector.shape_cast %91 : vector<1x128xf32> to vector<1x1x1x128xf32>
    %93 = vector.broadcast %92 : vector<1x1x1x128xf32> to vector<2x16x16x128xf32>
    %94 = arith.mulf %90, %93 : vector<2x16x16x128xf32>
    %c0_65 = arith.constant 0 : index
    %c0_66 = arith.constant 0 : index
    %95 = vector.load %arg7[%c0_65, %c0_66] : memref<1x128xf32, #tpu.memory_space<vmem>>, vector<1x128xf32>
    %96 = vector.shape_cast %95 : vector<1x128xf32> to vector<1x1x1x128xf32>
    %97 = vector.broadcast %96 : vector<1x1x1x128xf32> to vector<2x16x16x128xf32>
    %98 = arith.addf %94, %97 : vector<2x16x16x128xf32>
    %99 = vector.shape_cast %98 : vector<2x16x16x128xf32> to vector<512x128xf32>
    %c0_67 = arith.constant 0 : index
    %c0_68 = arith.constant 0 : index
    %100 = vector.load %arg8[%c0_67, %c0_68] : memref<128x128xf32, #tpu.memory_space<vmem>>, vector<128x128xf32>
    %cst_69 = arith.constant dense<0.000000e+00> : vector<512x128xf32>
    %101 = tpu.matmul %99, %100, %cst_69 {dimension_numbers = #tpu.dot_dimension_numbers<[1], [0], [0], [1], [0, 0, 1, 1], [], []>} : vector<512x128xf32>, vector<128x128xf32>, vector<512x128xf32> -> vector<512x128xf32>
    %c0_70 = arith.constant 0 : index
    %c0_71 = arith.constant 0 : index
    %102 = vector.load %arg9[%c0_70, %c0_71] : memref<1x128xf32, #tpu.memory_space<vmem>>, vector<1x128xf32>
    %103 = vector.broadcast %102 : vector<1x128xf32> to vector<512x128xf32>
    %104 = arith.mulf %101, %103 : vector<512x128xf32>
    %c0_72 = arith.constant 0 : index
    %c0_73 = arith.constant 0 : index
    %105 = vector.load %arg10[%c0_72, %c0_73] : memref<1x128xf32, #tpu.memory_space<vmem>>, vector<1x128xf32>
    %106 = vector.broadcast %105 : vector<1x128xf32> to vector<512x128xf32>
    %107 = arith.addf %104, %106 : vector<512x128xf32>
    %cst_74 = arith.constant 0.000000e+00 : f32
    %108 = vector.broadcast %cst_74 : f32 to vector<512x128xf32>
    %109 = arith.maximumf %107, %108 : vector<512x128xf32>
    %c0_75 = arith.constant 0 : index
    %c0_76 = arith.constant 0 : index
    %c0_77 = arith.constant 0 : index
    %c0_78 = arith.constant 0 : index
    %110 = vector.load %arg1[%c0_75, %c0_76, %c0_77, %c0_78] : memref<2x16x16x24xf32, #tpu.memory_space<vmem>>, vector<2x16x16x24xf32>
    %111 = vector.shape_cast %110 : vector<2x16x16x24xf32> to vector<512x24xf32>
    %c0_79 = arith.constant 0 : index
    %c0_80 = arith.constant 0 : index
    %112 = vector.load %arg11[%c0_79, %c0_80] : memref<24x128xf32, #tpu.memory_space<vmem>>, vector<24x128xf32>
    %cst_81 = arith.constant dense<0.000000e+00> : vector<512x128xf32>
    %113 = tpu.matmul %111, %112, %cst_81 {dimension_numbers = #tpu.dot_dimension_numbers<[1], [0], [0], [1], [0, 0, 1, 1], [], []>} : vector<512x24xf32>, vector<24x128xf32>, vector<512x128xf32> -> vector<512x128xf32>
    %c0_82 = arith.constant 0 : index
    %c0_83 = arith.constant 0 : index
    %114 = vector.load %arg12[%c0_82, %c0_83] : memref<1x128xf32, #tpu.memory_space<vmem>>, vector<1x128xf32>
    %115 = vector.broadcast %114 : vector<1x128xf32> to vector<512x128xf32>
    %116 = arith.mulf %113, %115 : vector<512x128xf32>
    %c0_84 = arith.constant 0 : index
    %c0_85 = arith.constant 0 : index
    %117 = vector.load %arg13[%c0_84, %c0_85] : memref<1x128xf32, #tpu.memory_space<vmem>>, vector<1x128xf32>
    %118 = vector.broadcast %117 : vector<1x128xf32> to vector<512x128xf32>
    %119 = arith.addf %116, %118 : vector<512x128xf32>
    %120 = arith.addf %109, %119 : vector<512x128xf32>
    %121 = vector.shape_cast %120 : vector<512x128xf32> to vector<2x16x16x128xf32>
    %c0_86 = arith.constant 0 : index
    %c0_87 = arith.constant 0 : index
    %c0_88 = arith.constant 0 : index
    %c0_89 = arith.constant 0 : index
    %122 = vector.load %arg14[%c0_86, %c0_87, %c0_88, %c0_89] : memref<2x16x16x128xf32, #tpu.memory_space<vmem>>, vector<2x16x16x128xf32>
    tpu.vector_store %arg14[%c0_86, %c0_87, %c0_88, %c0_89], %121 {strides = array<i32>} : memref<2x16x16x128xf32, #tpu.memory_space<vmem>>, vector<2x16x16x128xf32>,
    return
  }
  func.func @transform_0(%arg0: i32) -> (i32, i32, i32, i32) {
    %c0_i32 = arith.constant 0 : i32
    %c0_i32_0 = arith.constant 0 : i32
    %c0_i32_1 = arith.constant 0 : i32
    %c0_i32_2 = arith.constant 0 : i32
    return %arg0, %c0_i32, %c0_i32_0, %c0_i32_1 : i32, i32, i32, i32
  }
  func.func @transform_1(%arg0: i32) -> (i32, i32) {
    %c0_i32 = arith.constant 0 : i32
    %c0_i32_0 = arith.constant 0 : i32
    %c0_i32_1 = arith.constant 0 : i32
    return %c0_i32, %c0_i32_0 : i32, i32
  }
  func.func @transform_2(%arg0: i32) -> (i32, i32) {
    %c0_i32 = arith.constant 0 : i32
    %c0_i32_0 = arith.constant 0 : i32
    %c0_i32_1 = arith.constant 0 : i32
    return %c0_i32, %c0_i32_0 : i32, i32
  }
  func.func @transform_3(%arg0: i32) -> (i32, i32) {
    %c0_i32 = arith.constant 0 : i32
    %c0_i32_0 = arith.constant 0 : i32
    %c0_i32_1 = arith.constant 0 : i32
    return %c0_i32, %c0_i32_0 : i32, i32
  }
  func.func @transform_4(%arg0: i32) -> (i32, i32, i32) {
    %c0_i32 = arith.constant 0 : i32
    %c0_i32_0 = arith.constant 0 : i32
    %c0_i32_1 = arith.constant 0 : i32
    %c0_i32_2 = arith.constant 0 : i32
    return %c0_i32, %c0_i32_0, %c0_i32_1 : i32, i32, i32
  }
  func.func @transform_5(%arg0: i32) -> (i32, i32) {
    %c0_i32 = arith.constant 0 : i32
    %c0_i32_0 = arith.constant 0 : i32
    %c0_i32_1 = arith.constant 0 : i32
    return %c0_i32, %c0_i32_0 : i32, i32
  }
  func.func @transform_6(%arg0: i32) -> (i32, i32) {
    %c0_i32 = arith.constant 0 : i32
    %c0_i32_0 = arith.constant 0 : i32
    %c0_i32_1 = arith.constant 0 : i32
    return %c0_i32, %c0_i32_0 : i32, i32
  }
  func.func @transform_7(%arg0: i32) -> (i32, i32) {
    %c0_i32 = arith.constant 0 : i32
    %c0_i32_0 = arith.constant 0 : i32
    %c0_i32_1 = arith.constant 0 : i32
    return %c0_i32, %c0_i32_0 : i32, i32
  }
  func.func @transform_8(%arg0: i32) -> (i32, i32) {
    %c0_i32 = arith.constant 0 : i32
    %c0_i32_0 = arith.constant 0 : i32
    %c0_i32_1 = arith.constant 0 : i32
    return %c0_i32, %c0_i32_0 : i32, i32
  }
  func.func @transform_9(%arg0: i32) -> (i32, i32) {
    %c0_i32 = arith.constant 0 : i32
    %c0_i32_0 = arith.constant 0 : i32
    %c0_i32_1 = arith.constant 0 : i32
    return %c0_i32, %c0_i32_0 : i32, i32
  }
  func.func @transform_10(%arg0: i32) -> (i32, i32) {
    %c0_i32 = arith.constant 0 : i32
    %c0_i32_0 = arith.constant 0 : i32
    %c0_i32_1 = arith.constant 0 : i32
    return %c0_i32, %c0_i32_0 : i32, i32
  }
  func.func @transform_11(%arg0: i32) -> (i32, i32) {
    %c0_i32 = arith.constant 0 : i32
    %c0_i32_0 = arith.constant 0 : i32
    %c0_i32_1 = arith.constant 0 : i32
    return %c0_i32, %c0_i32_0 : i32, i32
  }
  func.func @transform_12(%arg0: i32) -> (i32, i32) {
    %c0_i32 = arith.constant 0 : i32
    %c0_i32_0 = arith.constant 0 : i32
    %c0_i32_1 = arith.constant 0 : i32
    return %c0_i32, %c0_i32_0 : i32, i32
  }
  func.func @transform_13(%arg0: i32) -> (i32, i32, i32, i32) {
    %c0_i32 = arith.constant 0 : i32
    %c0_i32_0 = arith.constant 0 : i32
    %c0_i32_1 = arith.constant 0 : i32
    %c0_i32_2 = arith.constant 0 : i32
    return %arg0, %c0_i32, %c0_i32_0, %c0_i32_1 : i32, i32, i32, i32
  }
}

</mosaic_0001>

<llo_original>
// kernel: tpu_custom_call.1
$region0: #{tpu_custom_call.1}
  #allocation0 [shape = 'u32[]', space=smem, size = 0x4, offset = 0x4, fixed_abs, tag = 'smem constant byte address 0x4 - core index']
  #allocation1 [shape = 'u32[144,128]{1,0:T(1,128)}', space=vmem, size = 0x12000, scoped, tag = 'internal scratch']
  #allocation2 [shape = 'f32[2,18,24,128]{3,2,1,0:T(8,128)}', space=vmem, size = 0x6c000, scoped, tag = 'scratch operand']
  %s0 = inlined_call_operand.hbm [shape: f32[2,16,16,24], index: 0, kind: input, shape index: {}]
  %s1 = inlined_call_operand.hbm [shape: f32[24,128], index: 1, kind: input, shape index: {}]
  %s2 = inlined_call_operand.vmem [shape: f32[1,128], index: 2, kind: input, shape index: {}]
  %s3 = inlined_call_operand.vmem [shape: f32[1,128], index: 3, kind: input, shape index: {}]
  %s4 = inlined_call_operand.hbm [shape: f32[9,1,128], index: 4, kind: input, shape index: {}]
  %s5 = inlined_call_operand.vmem [shape: f32[1,128], index: 5, kind: input, shape index: {}]
  %s6 = inlined_call_operand.vmem [shape: f32[1,128], index: 6, kind: input, shape index: {}]
  %s7 = inlined_call_operand.hbm [shape: f32[128,128], index: 7, kind: input, shape index: {}]
  %s8 = inlined_call_operand.vmem [shape: f32[1,128], index: 8, kind: input, shape index: {}]
  %s9 = inlined_call_operand.vmem [shape: f32[1,128], index: 9, kind: input, shape index: {}]
  %s10 = inlined_call_operand.hbm [shape: f32[24,128], index: 10, kind: input, shape index: {}]
  %s11 = inlined_call_operand.vmem [shape: f32[1,128], index: 11, kind: input, shape index: {}]
  %s12 = inlined_call_operand.vmem [shape: f32[1,128], index: 12, kind: input, shape index: {}]
  %s13 = inlined_call_operand.hbm [shape: f32[2,16,16,128], index: 13, kind: output, shape index: {}]
  %s14 = sld [smem:[#allocation0]]
  $region82: #{tpu_custom_call.1} parent=0
    _
  %s16 = ssub.s32 1, %s14
  %s17 = scalar_select 0, %s16, %s14
  $region1: #{tpu_custom_call.1} parent=0
    #allocation3 [shape = 'u8[262144]{0}', space=vmem, size = 0x40000, scoped, tag = 'input window, operand 0, single buffered']
    #allocation4 [shape = 's32[1]{0}', space=sflag, size = 0x4, scoped, tag = 'scoped memory for tpu_custom_call.1']
    #allocation5 [shape = 's32[1]{0}', space=sflag, size = 0x4, scoped, tag = 'scoped memory for tpu_custom_call.1']
    #allocation6 [shape = 'u8[12288]{0}', space=vmem, size = 0x3000, scoped, tag = 'input window, operand 1, single buffered']
    #allocation7 [shape = 's32[1]{0}', space=sflag, size = 0x4, scoped, tag = 'scoped memory for tpu_custom_call.1']
    #allocation8 [shape = 'u8[4608]{0}', space=vmem, size = 0x1400, scoped, tag = 'input window, operand 4, single buffered']
    #allocation9 [shape = 'u8[65536]{0}', space=vmem, size = 0x10000, scoped, tag = 'input window, operand 7, single buffered']
    #allocation10 [shape = 's32[1]{0}', space=sflag, size = 0x4, scoped, tag = 'scoped memory for tpu_custom_call.1']
    #allocation11 [shape = 'u8[12288]{0}', space=vmem, size = 0x3000, scoped, tag = 'input window, operand 10, single buffered']
    #allocation12 [shape = 'u8[262144]{0}', space=vmem, size = 0x40000, scoped, tag = 'output window, operand 0, single buffered']
    %18 = vsyncpa [#allocation4], 0
    %19 = vsyncpa [#allocation7], 0
    %20 = vsyncpa [#allocation10], 0
    %21 = vsyncpa [#allocation5], 0
    // Predicated region
    $region2: #{tpu_custom_call.1} parent=1 // pred_check
      _
    $region3: #{tpu_custom_call.1} parent=1 // pred_check_branch
      %23 = sbr.rel (0) target = $region5
    $region4: #{tpu_custom_call.1} parent=1 // pred_region
      %s25 = ssub.s32 8192, 8192
      %26 = vsyncadd [#allocation4], %s25
      %s27 = sshll.u32 [#allocation3], 4
      %s28 = int_to_ptr.vmem [resolvable:$true] %s27
      %33 = dma.hbm_to_vmem [thread:$0]  %s0, 8192, %s28, [#allocation4], 128, 128, 8
    $region5: #{tpu_custom_call.1} parent=1 // pred_fallthru
      _
    // Predicated region
    $region6: #{tpu_custom_call.1} parent=1 // pred_check
      _
    $region7: #{tpu_custom_call.1} parent=1 // pred_check_branch
      %35 = sbr.rel (0) target = $region9
    $region8: #{tpu_custom_call.1} parent=1 // pred_region
      %s37 = ssub.s32 384, 384
      %38 = vsyncadd [#allocation7], %s37
      %s39 = sshll.u32 [#allocation6], 4
      %s40 = int_to_ptr.vmem [resolvable:$true] %s39
      %45 = dma.hbm_to_vmem [thread:$0]  %s1, 384, %s40, [#allocation7], 128, 128, 8
    $region9: #{tpu_custom_call.1} parent=1 // pred_fallthru
      _
    // Predicated region
    $region10: #{tpu_custom_call.1} parent=1 // pred_check
      _
    $region11: #{tpu_custom_call.1} parent=1 // pred_check_branch
      %47 = sbr.rel (0) target = $region13
    $region12: #{tpu_custom_call.1} parent=1 // pred_region
      _
    $region13: #{tpu_custom_call.1} parent=1 // pred_fallthru
      _
    // Predicated region
    $region14: #{tpu_custom_call.1} parent=1 // pred_check
      _
    $region15: #{tpu_custom_call.1} parent=1 // pred_check_branch
      %49 = sbr.rel (0) target = $region17
    $region16: #{tpu_custom_call.1} parent=1 // pred_region
      _
    $region17: #{tpu_custom_call.1} parent=1 // pred_fallthru
      _
    // Predicated region
    $region18: #{tpu_custom_call.1} parent=1 // pred_check
      _
    $region19: #{tpu_custom_call.1} parent=1 // pred_check_branch
      %51 = sbr.rel (0) target = $region21
    $region20: #{tpu_custom_call.1} parent=1 // pred_region
      %s53 = ssub.s32 144, 144
      %54 = vsyncadd [#allocation7], %s53
      %s55 = sshll.u32 [#allocation8], 4
      %s56 = int_to_ptr.vmem [resolvable:$true] %s55
      %61 = dma.hbm_to_vmem [thread:$0]  %s4, 144, %s56, [#allocation7], 16, 16, 1
    $region21: #{tpu_custom_call.1} parent=1 // pred_fallthru
      _
    // Predicated region
    $region22: #{tpu_custom_call.1} parent=1 // pred_check
      _
    $region23: #{tpu_custom_call.1} parent=1 // pred_check_branch
      %63 = sbr.rel (0) target = $region25
    $region24: #{tpu_custom_call.1} parent=1 // pred_region
      _
    $region25: #{tpu_custom_call.1} parent=1 // pred_fallthru
      _
    // Predicated region
    $region26: #{tpu_custom_call.1} parent=1 // pred_check
      _
    $region27: #{tpu_custom_call.1} parent=1 // pred_check_branch
      %65 = sbr.rel (0) target = $region29
    $region28: #{tpu_custom_call.1} parent=1 // pred_region
      _
    $region29: #{tpu_custom_call.1} parent=1 // pred_fallthru
      _
    // Predicated region
    $region30: #{tpu_custom_call.1} parent=1 // pred_check
      _
    $region31: #{tpu_custom_call.1} parent=1 // pred_check_branch
      %67 = sbr.rel (0) target = $region33
    $region32: #{tpu_custom_call.1} parent=1 // pred_region
      %s69 = ssub.s32 2048, 2048
      %70 = vsyncadd [#allocation10], %s69
      %s71 = sshll.u32 [#allocation9], 4
      %s72 = int_to_ptr.vmem [resolvable:$true] %s71
      %77 = dma.hbm_to_vmem [thread:$0]  %s7, 2048, %s72, [#allocation10], 128, 128, 8
    $region33: #{tpu_custom_call.1} parent=1 // pred_fallthru
      _
    // Predicated region
    $region34: #{tpu_custom_call.1} parent=1 // pred_check
      _
    $region35: #{tpu_custom_call.1} parent=1 // pred_check_branch
      %79 = sbr.rel (0) target = $region37
    $region36: #{tpu_custom_call.1} parent=1 // pred_region
      _
    $region37: #{tpu_custom_call.1} parent=1 // pred_fallthru
      _
    // Predicated region
    $region38: #{tpu_custom_call.1} parent=1 // pred_check
      _
    $region39: #{tpu_custom_call.1} parent=1 // pred_check_branch
      %81 = sbr.rel (0) target = $region41
    $region40: #{tpu_custom_call.1} parent=1 // pred_region
      _
    $region41: #{tpu_custom_call.1} parent=1 // pred_fallthru
      _
    // Predicated region
    $region42: #{tpu_custom_call.1} parent=1 // pred_check
      _
    $region43: #{tpu_custom_call.1} parent=1 // pred_check_branch
      %83 = sbr.rel (0) target = $region45
    $region44: #{tpu_custom_call.1} parent=1 // pred_region
      %s85 = ssub.s32 384, 384
      %86 = vsyncadd [#allocation10], %s85
      %s87 = sshll.u32 [#allocation11], 4
      %s88 = int_to_ptr.vmem [resolvable:$true] %s87
      %93 = dma.hbm_to_vmem [thread:$0]  %s10, 384, %s88, [#allocation10], 128, 128, 8
    $region45: #{tpu_custom_call.1} parent=1 // pred_fallthru
      _
    // Predicated region
    $region46: #{tpu_custom_call.1} parent=1 // pred_check
      _
    $region47: #{tpu_custom_call.1} parent=1 // pred_check_branch
      %95 = sbr.rel (0) target = $region49
    $region48: #{tpu_custom_call.1} parent=1 // pred_region
      _
    $region49: #{tpu_custom_call.1} parent=1 // pred_fallthru
      _
    // Predicated region
    $region50: #{tpu_custom_call.1} parent=1 // pred_check
      _
    $region51: #{tpu_custom_call.1} parent=1 // pred_check_branch
      %97 = sbr.rel (0) target = $region53
    $region52: #{tpu_custom_call.1} parent=1 // pred_region
      _
    $region53: #{tpu_custom_call.1} parent=1 // pred_fallthru
      _
    // Predicated region
    $region54: #{tpu_custom_call.1} parent=1 // pred_check
      _
    $region55: #{tpu_custom_call.1} parent=1 // pred_check_branch
      %99 = sbr.rel (0) target = $region57
    $region56: #{tpu_custom_call.1} parent=1 // pred_region
      %100 = dma.done [#allocation4], 8192
    $region57: #{tpu_custom_call.1} parent=1 // pred_fallthru
      _
    // Predicated region
    $region58: #{tpu_custom_call.1} parent=1 // pred_check
      _
    $region59: #{tpu_custom_call.1} parent=1 // pred_check_branch
      %102 = sbr.rel (0) target = $region61
    $region60: #{tpu_custom_call.1} parent=1 // pred_region
      %103 = dma.done [#allocation7], 384
    $region61: #{tpu_custom_call.1} parent=1 // pred_fallthru
      _
    // Predicated region
    $region62: #{tpu_custom_call.1} parent=1 // pred_check
      _
    $region63: #{tpu_custom_call.1} parent=1 // pred_check_branch
      %105 = sbr.rel (0) target = $region65
    $region64: #{tpu_custom_call.1} parent=1 // pred_region
      %106 = dma.done [#allocation7], 144
    $region65: #{tpu_custom_call.1} parent=1 // pred_fallthru
      _
    // Predicated region
    $region66: #{tpu_custom_call.1} parent=1 // pred_check
      _
    $region67: #{tpu_custom_call.1} parent=1 // pred_check_branch
      %108 = sbr.rel (0) target = $region69
    $region68: #{tpu_custom_call.1} parent=1 // pred_region
      %109 = dma.done [#allocation10], 2048
    $region69: #{tpu_custom_call.1} parent=1 // pred_fallthru
      _
    // Predicated region
    $region70: #{tpu_custom_call.1} parent=1 // pred_check
      _
    $region71: #{tpu_custom_call.1} parent=1 // pred_check_branch
      %111 = sbr.rel (0) target = $region73
    $region72: #{tpu_custom_call.1} parent=1 // pred_region
      %112 = dma.done [#allocation10], 384
    $region73: #{tpu_custom_call.1} parent=1 // pred_fallthru
      _
    %113 = vst [vmem:[#allocation2] sm:$0xff] 0.0
    %114 = vst [vmem:[#allocation2 + $0x8] sm:$0xff] 0.0
    %115 = vst [vmem:[#allocation2 + $0x10] sm:$0xff] 0.0
    %116 = vst [vmem:[#allocation2 + $0x1b0] sm:$0xff] 0.0
    %117 = vst [vmem:[#allocation2 + $0x1b8] sm:$0xff] 0.0
    %118 = vst [vmem:[#allocation2 + $0x1c0] sm:$0xff] 0.0
    %s119 = scalar_lea.vmem [#allocation2], 408
    %120 = vst [vmem:[%s119] sm:$0xff] 0.0
    %121 = vst [vmem:[%s119 + $0x8] sm:$0xff] 0.0
    %122 = vst [vmem:[%s119 + $0x10] sm:$0xff] 0.0
    %123 = vst [vmem:[%s119 + $0x1b0] sm:$0xff] 0.0
    %124 = vst [vmem:[%s119 + $0x1b8] sm:$0xff] 0.0
    %125 = vst [vmem:[%s119 + $0x1c0] sm:$0xff] 0.0
    %s126 = scalar_lea.vmem [#allocation2], 24
    %127 = vst [vmem:[%s126] sm:$0xff] 0.0
    %128 = vst [vmem:[%s126 + $0x18] sm:$0xff] 0.0
    %129 = vst [vmem:[%s126 + $0x30] sm:$0xff] 0.0
    %130 = vst [vmem:[%s126 + $0x48] sm:$0xff] 0.0
    %131 = vst [vmem:[%s126 + $0x60] sm:$0xff] 0.0
    %132 = vst [vmem:[%s126 + $0x78] sm:$0xff] 0.0
    %133 = vst [vmem:[%s126 + $0x90] sm:$0xff] 0.0
    %134 = vst [vmem:[%s126 + $0xa8] sm:$0xff] 0.0
    %135 = vst [vmem:[%s126 + $0xc0] sm:$0xff] 0.0
    %136 = vst [vmem:[%s126 + $0xd8] sm:$0xff] 0.0
    %137 = vst [vmem:[%s126 + $0xf0] sm:$0xff] 0.0
    %138 = vst [vmem:[%s126 + $0x108] sm:$0xff] 0.0
    %139 = vst [vmem:[%s126 + $0x120] sm:$0xff] 0.0
    %140 = vst [vmem:[%s126 + $0x138] sm:$0xff] 0.0
    %141 = vst [vmem:[%s126 + $0x150] sm:$0xff] 0.0
    %142 = vst [vmem:[%s126 + $0x168] sm:$0xff] 0.0
    %143 = vst [vmem:[%s126 + $0x1b0] sm:$0xff] 0.0
    %144 = vst [vmem:[%s126 + $0x1c8] sm:$0xff] 0.0
    %145 = vst [vmem:[%s126 + $0x1e0] sm:$0xff] 0.0
    %146 = vst [vmem:[%s126 + $0x1f8] sm:$0xff] 0.0
    %147 = vst [vmem:[%s126 + $0x210] sm:$0xff] 0.0
    %148 = vst [vmem:[%s126 + $0x228] sm:$0xff] 0.0
    %149 = vst [vmem:[%s126 + $0x240] sm:$0xff] 0.0
    %150 = vst [vmem:[%s126 + $0x258] sm:$0xff] 0.0
    %151 = vst [vmem:[%s126 + $0x270] sm:$0xff] 0.0
    %152 = vst [vmem:[%s126 + $0x288] sm:$0xff] 0.0
    %153 = vst [vmem:[%s126 + $0x2a0] sm:$0xff] 0.0
    %154 = vst [vmem:[%s126 + $0x2b8] sm:$0xff] 0.0
    %155 = vst [vmem:[%s126 + $0x2d0] sm:$0xff] 0.0
    %156 = vst [vmem:[%s126 + $0x2e8] sm:$0xff] 0.0
    %157 = vst [vmem:[%s126 + $0x300] sm:$0xff] 0.0
    %158 = vst [vmem:[%s126 + $0x318] sm:$0xff] 0.0
    %v159 = vld [vmem:[#allocation3] sm:$0xff]
    %v160 = vld [vmem:[#allocation3 + $0x8] sm:$0xff]
    %v161 = vld [vmem:[#allocation3 + $0x10] sm:$0xff]
    %v162 = vld [vmem:[#allocation3 + $0x18] sm:$0xff]
    %v163 = vld [vmem:[#allocation3 + $0x20] sm:$0xff]
    %v164 = vld [vmem:[#allocation3 + $0x28] sm:$0xff]
    %v165 = vld [vmem:[#allocation3 + $0x30] sm:$0xff]
    %v166 = vld [vmem:[#allocation3 + $0x38] sm:$0xff]
    %v167 = vld [vmem:[#allocation3 + $0x40] sm:$0xff]
    %v168 = vld [vmem:[#allocation3 + $0x48] sm:$0xff]
    %v169 = vld [vmem:[#allocation3 + $0x50] sm:$0xff]
    %v170 = vld [vmem:[#allocation3 + $0x58] sm:$0xff]
    %v171 = vld [vmem:[#allocation3 + $0x60] sm:$0xff]
    %v172 = vld [vmem:[#allocation3 + $0x68] sm:$0xff]
    %v173 = vld [vmem:[#allocation3 + $0x70] sm:$0xff]
    %v174 = vld [vmem:[#allocation3 + $0x78] sm:$0xff]
    %v175 = vld [vmem:[#allocation3 + $0x80] sm:$0xff]
    %v176 = vld [vmem:[#allocation3 + $0x88] sm:$0xff]
    %v177 = vld [vmem:[#allocation3 + $0x90] sm:$0xff]
    %v178 = vld [vmem:[#allocation3 + $0x98] sm:$0xff]
    %v179 = vld [vmem:[#allocation3 + $0xa0] sm:$0xff]
    %v180 = vld [vmem:[#allocation3 + $0xa8] sm:$0xff]
    %v181 = vld [vmem:[#allocation3 + $0xb0] sm:$0xff]
    %v182 = vld [vmem:[#allocation3 + $0xb8] sm:$0xff]
    %v183 = vld [vmem:[#allocation3 + $0xc0] sm:$0xff]
    %v184 = vld [vmem:[#allocation3 + $0xc8] sm:$0xff]
    %v185 = vld [vmem:[#allocation3 + $0xd0] sm:$0xff]
    %v186 = vld [vmem:[#allocation3 + $0xd8] sm:$0xff]
    %v187 = vld [vmem:[#allocation3 + $0xe0] sm:$0xff]
    %v188 = vld [vmem:[#allocation3 + $0xe8] sm:$0xff]
    %v189 = vld [vmem:[#allocation3 + $0xf0] sm:$0xff]
    %v190 = vld [vmem:[#allocation3 + $0xf8] sm:$0xff]
    %v191 = vld [vmem:[#allocation3 + $0x100] sm:$0xff]
    %v192 = vld [vmem:[#allocation3 + $0x108] sm:$0xff]
    %v193 = vld [vmem:[#allocation3 + $0x110] sm:$0xff]
    %v194 = vld [vmem:[#allocation3 + $0x118] sm:$0xff]
    %v195 = vld [vmem:[#allocation3 + $0x120] sm:$0xff]
    %v196 = vld [vmem:[#allocation3 + $0x128] sm:$0xff]
    %v197 = vld [vmem:[#allocation3 + $0x130] sm:$0xff]
    %v198 = vld [vmem:[#allocation3 + $0x138] sm:$0xff]
    %v199 = vld [vmem:[#allocation3 + $0x140] sm:$0xff]
    %v200 = vld [vmem:[#allocation3 + $0x148] sm:$0xff]
    %v201 = vld [vmem:[#allocation3 + $0x150] sm:$0xff]
    %v202 = vld [vmem:[#allocation3 + $0x158] sm:$0xff]
    %v203 = vld [vmem:[#allocation3 + $0x160] sm:$0xff]
    %v204 = vld [vmem:[#allocation3 + $0x168] sm:$0xff]
    %v205 = vld [vmem:[#allocation3 + $0x170] sm:$0xff]
    %v206 = vld [vmem:[#allocation3 + $0x178] sm:$0xff]
    %v207 = vld [vmem:[#allocation3 + $0x180] sm:$0xff]
    %v208 = vld [vmem:[#allocation3 + $0x188] sm:$0xff]
    %v209 = vld [vmem:[#allocation3 + $0x190] sm:$0xff]
    %v210 = vld [vmem:[#allocation3 + $0x198] sm:$0xff]
    %v211 = vld [vmem:[#allocation3 + $0x1a0] sm:$0xff]
    %v212 = vld [vmem:[#allocation3 + $0x1a8] sm:$0xff]
    %v213 = vld [vmem:[#allocation3 + $0x1b0] sm:$0xff]
    %v214 = vld [vmem:[#allocation3 + $0x1b8] sm:$0xff]
    %v215 = vld [vmem:[#allocation3 + $0x1c0] sm:$0xff]
    %v216 = vld [vmem:[#allocation3 + $0x1c8] sm:$0xff]
    %v217 = vld [vmem:[#allocation3 + $0x1d0] sm:$0xff]
    %v218 = vld [vmem:[#allocation3 + $0x1d8] sm:$0xff]
    %v219 = vld [vmem:[#allocation3 + $0x1e0] sm:$0xff]
    %v220 = vld [vmem:[#allocation3 + $0x1e8] sm:$0xff]
    %v221 = vld [vmem:[#allocation3 + $0x1f0] sm:$0xff]
    %v222 = vld [vmem:[#allocation3 + $0x1f8] sm:$0xff]
    %v223 = vld [vmem:[#allocation6] sm:$0xff]
    %v224 = vld [vmem:[#allocation6 + $0x8] sm:$0xff]
    %v225 = vld [vmem:[#allocation6 + $0x10] sm:$0xff]
    %vm226 = vcmask 195584
    %v228 = vsel %vm226, %v159, 0
    %v231 = vsel %vm226, %v160, 0
    %v234 = vsel %vm226, %v161, 0
    %v237 = vsel %vm226, %v162, 0
    %v240 = vsel %vm226, %v163, 0
    %v243 = vsel %vm226, %v164, 0
    %v246 = vsel %vm226, %v165, 0
    %v249 = vsel %vm226, %v166, 0
    %v252 = vsel %vm226, %v167, 0
    %v255 = vsel %vm226, %v168, 0
    %v258 = vsel %vm226, %v169, 0
    %v261 = vsel %vm226, %v170, 0
    %v264 = vsel %vm226, %v171, 0
    %v267 = vsel %vm226, %v172, 0
    %v270 = vsel %vm226, %v173, 0
    %v273 = vsel %vm226, %v174, 0
    %v276 = vsel %vm226, %v175, 0
    %v279 = vsel %vm226, %v176, 0
    %v282 = vsel %vm226, %v177, 0
    %v285 = vsel %vm226, %v178, 0
    %v288 = vsel %vm226, %v179, 0
    %v291 = vsel %vm226, %v180, 0
    %v294 = vsel %vm226, %v181, 0
    %v297 = vsel %vm226, %v182, 0
    %v300 = vsel %vm226, %v183, 0
    %v303 = vsel %vm226, %v184, 0
    %v306 = vsel %vm226, %v185, 0
    %v309 = vsel %vm226, %v186, 0
    %v312 = vsel %vm226, %v187, 0
    %v315 = vsel %vm226, %v188, 0
    %v318 = vsel %vm226, %v189, 0
    %v321 = vsel %vm226, %v190, 0
    %v324 = vsel %vm226, %v191, 0
    %v327 = vsel %vm226, %v192, 0
    %v330 = vsel %vm226, %v193, 0
    %v333 = vsel %vm226, %v194, 0
    %v336 = vsel %vm226, %v195, 0
    %v339 = vsel %vm226, %v196, 0
    %v342 = vsel %vm226, %v197, 0
    %v345 = vsel %vm226, %v198, 0
    %v348 = vsel %vm226, %v199, 0
    %v351 = vsel %vm226, %v200, 0
    %v354 = vsel %vm226, %v201, 0
    %v357 = vsel %vm226, %v202, 0
    %v360 = vsel %vm226, %v203, 0
    %v363 = vsel %vm226, %v204, 0
    %v366 = vsel %vm226, %v205, 0
    %v369 = vsel %vm226, %v206, 0
    %v372 = vsel %vm226, %v207, 0
    %v375 = vsel %vm226, %v208, 0
    %v378 = vsel %vm226, %v209, 0
    %v381 = vsel %vm226, %v210, 0
    %v384 = vsel %vm226, %v211, 0
    %v387 = vsel %vm226, %v212, 0
    %v390 = vsel %vm226, %v213, 0
    %v393 = vsel %vm226, %v214, 0
    %v396 = vsel %vm226, %v215, 0
    %v399 = vsel %vm226, %v216, 0
    %v402 = vsel %vm226, %v217, 0
    %v405 = vsel %vm226, %v218, 0
    %v408 = vsel %vm226, %v219, 0
    %v411 = vsel %vm226, %v220, 0
    %v414 = vsel %vm226, %v221, 0
    %v417 = vsel %vm226, %v222, 0
    %419 = vmatprep.subr.mxu0 0.0
    %420 = vmatpush1.msra.mxu0 0.0
    %421 = vmatprep.subr.mxu0 0.0
    %422 = vmatpush1.msra.mxu0 0.0
    %423 = vmatprep.subr.mxu0 0.0
    %424 = vmatpush1.msra.mxu0 0.0
    %425 = vmatprep.subr.mxu0 0.0
    %426 = vmatpush1.msra.mxu0 0.0
    %427 = vmatprep.subr.mxu0 0.0
    %428 = vmatpush1.msra.mxu0 0.0
    %429 = vmatprep.subr.mxu0 0.0
    %430 = vmatpush1.msra.mxu0 0.0
    %431 = vmatprep.subr.mxu0 0.0
    %432 = vmatpush1.msra.mxu0 0.0
    %433 = vmatprep.subr.mxu0 0.0
    %434 = vmatpush1.msra.mxu0 0.0
    %435 = vmatprep.subr.mxu0 0.0
    %436 = vmatpush1.msra.mxu0 0.0
    %437 = vmatprep.subr.mxu0 0.0
    %438 = vmatpush1.msra.mxu0 0.0
    %439 = vmatprep.subr.mxu0 0.0
    %440 = vmatpush1.msra.mxu0 0.0
    %441 = vmatprep.subr.mxu0 0.0
    %442 = vmatpush1.msra.mxu0 0.0
    %443 = vmatprep.subr.mxu0 0.0
    %444 = vmatpush1.msra.mxu0 0.0
    %445 = vmatprep.subr.mxu0 0.0
    %446 = vmatpush1.msra.mxu0 %v225
    %447 = vmatprep.subr.mxu0 0.0
    %448 = vmatpush1.msra.mxu0 %v224
    %449 = vmatprep.subr.mxu0 0.0
    %450 = vmatpush1.msra.mxu0 %v223
    %451 = vmatprep.subr.mxu0 0.0
    %452 = vmatpush2.msra.mxu0 0.0
    %453 = vmatprep.subr.mxu0 0.0
    %454 = vmatpush2.msra.mxu0 0.0
    %455 = vmatprep.subr.mxu0 0.0
    %456 = vmatpush2.msra.mxu0 0.0
    %457 = vmatprep.subr.mxu0 0.0
    %458 = vmatpush2.msra.mxu0 0.0
    %459 = vmatprep.subr.mxu0 0.0
    %460 = vmatpush2.msra.mxu0 0.0
    %461 = vmatprep.subr.mxu0 0.0
    %462 = vmatpush2.msra.mxu0 0.0
    %463 = vmatprep.subr.mxu0 0.0
    %464 = vmatpush2.msra.mxu0 0.0
    %465 = vmatprep.subr.mxu0 0.0
    %466 = vmatpush2.msra.mxu0 0.0
    %467 = vmatprep.subr.mxu0 0.0
    %468 = vmatpush2.msra.mxu0 0.0
    %469 = vmatprep.subr.mxu0 0.0
    %470 = vmatpush2.msra.mxu0 0.0
    %471 = vmatprep.subr.mxu0 0.0
    %472 = vmatpush2.msra.mxu0 0.0
    %473 = vmatprep.subr.mxu0 0.0
    %474 = vmatpush2.msra.mxu0 0.0
    %475 = vmatprep.subr.mxu0 0.0
    %476 = vmatpush2.msra.mxu0 0.0
    %477 = vmatprep.subr.mxu0 0.0
    %478 = vmatpush2.msra.mxu0 0.0
    %479 = vmatprep.subr.mxu0 0.0
    %480 = vmatpush2.msra.mxu0 0.0
    %481 = vmatprep.subr.mxu0 0.0
    %482 = vmatpush2.msra.mxu0 0.0
    %483 = vmatprep.mubr.f32.mxu0 0.0
    %484 = vmatmul.mubr.f32.gmra.mxu0 %v228
    %v485 = vpop.f32.mrf.mxu0
    %v486 = vadd.f32 0.0, %v485
    %v487 = vpop.f32.mrf.mxu0
    %488 = vmatprep.mubr.f32.mxu0 0.0
    %489 = vmatmul.mubr.f32.gmra.mxu0 %v231
    %v490 = vpop.f32.mrf.mxu0
    %v491 = vadd.f32 0.0, %v490
    %v492 = vpop.f32.mrf.mxu0
    %493 = vmatprep.mubr.f32.mxu0 0.0
    %494 = vmatmul.mubr.f32.gmra.mxu0 %v234
    %v495 = vpop.f32.mrf.mxu0
    %v496 = vadd.f32 0.0, %v495
    %v497 = vpop.f32.mrf.mxu0
    %498 = vmatprep.mubr.f32.mxu0 0.0
    %499 = vmatmul.mubr.f32.gmra.mxu0 %v237
    %v500 = vpop.f32.mrf.mxu0
    %v501 = vadd.f32 0.0, %v500
    %v502 = vpop.f32.mrf.mxu0
    %503 = vmatprep.mubr.f32.mxu0 0.0
    %504 = vmatmul.mubr.f32.gmra.mxu0 %v240
    %v505 = vpop.f32.mrf.mxu0
    %v506 = vadd.f32 0.0, %v505
    %v507 = vpop.f32.mrf.mxu0
    %508 = vmatprep.mubr.f32.mxu0 0.0
    %509 = vmatmul.mubr.f32.gmra.mxu0 %v243
    %v510 = vpop.f32.mrf.mxu0
    %v511 = vadd.f32 0.0, %v510
    %v512 = vpop.f32.mrf.mxu0
    %513 = vmatprep.mubr.f32.mxu0 0.0
    %514 = vmatmul.mubr.f32.gmra.mxu0 %v246
    %v515 = vpop.f32.mrf.mxu0
    %v516 = vadd.f32 0.0, %v515
    %v517 = vpop.f32.mrf.mxu0
    %518 = vmatprep.mubr.f32.mxu0 0.0
    %519 = vmatmul.mubr.f32.gmra.mxu0 %v249
    %v520 = vpop.f32.mrf.mxu0
    %v521 = vadd.f32 0.0, %v520
    %v522 = vpop.f32.mrf.mxu0
    %523 = vmatprep.mubr.f32.mxu0 0.0
    %524 = vmatmul.mubr.f32.gmra.mxu0 %v252
    %v525 = vpop.f32.mrf.mxu0
    %v526 = vadd.f32 0.0, %v525
    %v527 = vpop.f32.mrf.mxu0
    %528 = vmatprep.mubr.f32.mxu0 0.0
    %529 = vmatmul.mubr.f32.gmra.mxu0 %v255
    %v530 = vpop.f32.mrf.mxu0
    %v531 = vadd.f32 0.0, %v530
    %v532 = vpop.f32.mrf.mxu0
    %533 = vmatprep.mubr.f32.mxu0 0.0
    %534 = vmatmul.mubr.f32.gmra.mxu0 %v258
    %v535 = vpop.f32.mrf.mxu0
    %v536 = vadd.f32 0.0, %v535
    %v537 = vpop.f32.mrf.mxu0
    %538 = vmatprep.mubr.f32.mxu0 0.0
    %539 = vmatmul.mubr.f32.gmra.mxu0 %v261
    %v540 = vpop.f32.mrf.mxu0
    %v541 = vadd.f32 0.0, %v540
    %v542 = vpop.f32.mrf.mxu0
    %543 = vmatprep.mubr.f32.mxu0 0.0
    %544 = vmatmul.mubr.f32.gmra.mxu0 %v264
    %v545 = vpop.f32.mrf.mxu0
    %v546 = vadd.f32 0.0, %v545
    %v547 = vpop.f32.mrf.mxu0
    %548 = vmatprep.mubr.f32.mxu0 0.0
    %549 = vmatmul.mubr.f32.gmra.mxu0 %v267
    %v550 = vpop.f32.mrf.mxu0
    %v551 = vadd.f32 0.0, %v550
    %v552 = vpop.f32.mrf.mxu0
    %553 = vmatprep.mubr.f32.mxu0 0.0
    %554 = vmatmul.mubr.f32.gmra.mxu0 %v270
    %v555 = vpop.f32.mrf.mxu0
    %v556 = vadd.f32 0.0, %v555
    %v557 = vpop.f32.mrf.mxu0
    %558 = vmatprep.mubr.f32.mxu0 0.0
    %559 = vmatmul.mubr.f32.gmra.mxu0 %v273
    %v560 = vpop.f32.mrf.mxu0
    %v561 = vadd.f32 0.0, %v560
    %v562 = vpop.f32.mrf.mxu0
    %563 = vmatprep.mubr.f32.mxu0 0.0
    %564 = vmatmul.mubr.f32.gmra.mxu0 %v276
    %v565 = vpop.f32.mrf.mxu0
    %v566 = vadd.f32 0.0, %v565
    %v567 = vpop.f32.mrf.mxu0
    %568 = vmatprep.mubr.f32.mxu0 0.0
    %569 = vmatmul.mubr.f32.gmra.mxu0 %v279
    %v570 = vpop.f32.mrf.mxu0
    %v571 = vadd.f32 0.0, %v570
    %v572 = vpop.f32.mrf.mxu0
    %573 = vmatprep.mubr.f32.mxu0 0.0
    %574 = vmatmul.mubr.f32.gmra.mxu0 %v282
    %v575 = vpop.f32.mrf.mxu0
    %v576 = vadd.f32 0.0, %v575
    %v577 = vpop.f32.mrf.mxu0
    %578 = vmatprep.mubr.f32.mxu0 0.0
    %579 = vmatmul.mubr.f32.gmra.mxu0 %v285
    %v580 = vpop.f32.mrf.mxu0
    %v581 = vadd.f32 0.0, %v580
    %v582 = vpop.f32.mrf.mxu0
    %583 = vmatprep.mubr.f32.mxu0 0.0
    %584 = vmatmul.mubr.f32.gmra.mxu0 %v288
    %v585 = vpop.f32.mrf.mxu0
    %v586 = vadd.f32 0.0, %v585
    %v587 = vpop.f32.mrf.mxu0
    %588 = vmatprep.mubr.f32.mxu0 0.0
    %589 = vmatmul.mubr.f32.gmra.mxu0 %v291
    %v590 = vpop.f32.mrf.mxu0
    %v591 = vadd.f32 0.0, %v590
    %v592 = vpop.f32.mrf.mxu0
    %593 = vmatprep.mubr.f32.mxu0 0.0
    %594 = vmatmul.mubr.f32.gmra.mxu0 %v294
    %v595 = vpop.f32.mrf.mxu0
    %v596 = vadd.f32 0.0, %v595
    %v597 = vpop.f32.mrf.mxu0
    %598 = vmatprep.mubr.f32.mxu0 0.0
    %599 = vmatmul.mubr.f32.gmra.mxu0 %v297
    %v600 = vpop.f32.mrf.mxu0
    %v601 = vadd.f32 0.0, %v600
    %v602 = vpop.f32.mrf.mxu0
    %603 = vmatprep.mubr.f32.mxu0 0.0
    %604 = vmatmul.mubr.f32.gmra.mxu0 %v300
    %v605 = vpop.f32.mrf.mxu0
    %v606 = vadd.f32 0.0, %v605
    %v607 = vpop.f32.mrf.mxu0
    %608 = vmatprep.mubr.f32.mxu0 0.0
    %609 = vmatmul.mubr.f32.gmra.mxu0 %v303
    %v610 = vpop.f32.mrf.mxu0
    %v611 = vadd.f32 0.0, %v610
    %v612 = vpop.f32.mrf.mxu0
    %613 = vmatprep.mubr.f32.mxu0 0.0
    %614 = vmatmul.mubr.f32.gmra.mxu0 %v306
    %v615 = vpop.f32.mrf.mxu0
    %v616 = vadd.f32 0.0, %v615
    %v617 = vpop.f32.mrf.mxu0
    %618 = vmatprep.mubr.f32.mxu0 0.0
    %619 = vmatmul.mubr.f32.gmra.mxu0 %v309
    %v620 = vpop.f32.mrf.mxu0
    %v621 = vadd.f32 0.0, %v620
    %v622 = vpop.f32.mrf.mxu0
    %623 = vmatprep.mubr.f32.mxu0 0.0
    %624 = vmatmul.mubr.f32.gmra.mxu0 %v312
    %v625 = vpop.f32.mrf.mxu0
    %v626 = vadd.f32 0.0, %v625
    %v627 = vpop.f32.mrf.mxu0
    %628 = vmatprep.mubr.f32.mxu0 0.0
    %629 = vmatmul.mubr.f32.gmra.mxu0 %v315
    %v630 = vpop.f32.mrf.mxu0
    %v631 = vadd.f32 0.0, %v630
    %v632 = vpop.f32.mrf.mxu0
    %633 = vmatprep.mubr.f32.mxu0 0.0
    %634 = vmatmul.mubr.f32.gmra.mxu0 %v318
    %v635 = vpop.f32.mrf.mxu0
    %v636 = vadd.f32 0.0, %v635
    %v637 = vpop.f32.mrf.mxu0
    %638 = vmatprep.mubr.f32.mxu0 0.0
    %639 = vmatmul.mubr.f32.gmra.mxu0 %v321
    %v640 = vpop.f32.mrf.mxu0
    %v641 = vadd.f32 0.0, %v640
    %v642 = vpop.f32.mrf.mxu0
    %643 = vmatprep.mubr.f32.mxu0 0.0
    %644 = vmatmul.mubr.f32.gmra.mxu0 %v324
    %v645 = vpop.f32.mrf.mxu0
    %v646 = vadd.f32 0.0, %v645
    %v647 = vpop.f32.mrf.mxu0
    %648 = vmatprep.mubr.f32.mxu0 0.0
    %649 = vmatmul.mubr.f32.gmra.mxu0 %v327
    %v650 = vpop.f32.mrf.mxu0
    %v651 = vadd.f32 0.0, %v650
    %v652 = vpop.f32.mrf.mxu0
    %653 = vmatprep.mubr.f32.mxu0 0.0
    %654 = vmatmul.mubr.f32.gmra.mxu0 %v330
    %v655 = vpop.f32.mrf.mxu0
    %v656 = vadd.f32 0.0, %v655
    %v657 = vpop.f32.mrf.mxu0
    %658 = vmatprep.mubr.f32.mxu0 0.0
    %659 = vmatmul.mubr.f32.gmra.mxu0 %v333
    %v660 = vpop.f32.mrf.mxu0
    %v661 = vadd.f32 0.0, %v660
    %v662 = vpop.f32.mrf.mxu0
    %663 = vmatprep.mubr.f32.mxu0 0.0
    %664 = vmatmul.mubr.f32.gmra.mxu0 %v336
    %v665 = vpop.f32.mrf.mxu0
    %v666 = vadd.f32 0.0, %v665
    %v667 = vpop.f32.mrf.mxu0
    %668 = vmatprep.mubr.f32.mxu0 0.0
    %669 = vmatmul.mubr.f32.gmra.mxu0 %v339
    %v670 = vpop.f32.mrf.mxu0
    %v671 = vadd.f32 0.0, %v670
    %v672 = vpop.f32.mrf.mxu0
    %673 = vmatprep.mubr.f32.mxu0 0.0
    %674 = vmatmul.mubr.f32.gmra.mxu0 %v342
    %v675 = vpop.f32.mrf.mxu0
    %v676 = vadd.f32 0.0, %v675
    %v677 = vpop.f32.mrf.mxu0
    %678 = vmatprep.mubr.f32.mxu0 0.0
    %679 = vmatmul.mubr.f32.gmra.mxu0 %v345
    %v680 = vpop.f32.mrf.mxu0
    %v681 = vadd.f32 0.0, %v680
    %v682 = vpop.f32.mrf.mxu0
    %683 = vmatprep.mubr.f32.mxu0 0.0
    %684 = vmatmul.mubr.f32.gmra.mxu0 %v348
    %v685 = vpop.f32.mrf.mxu0
    %v686 = vadd.f32 0.0, %v685
    %v687 = vpop.f32.mrf.mxu0
    %688 = vmatprep.mubr.f32.mxu0 0.0
    %689 = vmatmul.mubr.f32.gmra.mxu0 %v351
    %v690 = vpop.f32.mrf.mxu0
    %v691 = vadd.f32 0.0, %v690
    %v692 = vpop.f32.mrf.mxu0
    %693 = vmatprep.mubr.f32.mxu0 0.0
    %694 = vmatmul.mubr.f32.gmra.mxu0 %v354
    %v695 = vpop.f32.mrf.mxu0
    %v696 = vadd.f32 0.0, %v695
    %v697 = vpop.f32.mrf.mxu0
    %698 = vmatprep.mubr.f32.mxu0 0.0
    %699 = vmatmul.mubr.f32.gmra.mxu0 %v357
    %v700 = vpop.f32.mrf.mxu0
    %v701 = vadd.f32 0.0, %v700
    %v702 = vpop.f32.mrf.mxu0
    %703 = vmatprep.mubr.f32.mxu0 0.0
    %704 = vmatmul.mubr.f32.gmra.mxu0 %v360
    %v705 = vpop.f32.mrf.mxu0
    %v706 = vadd.f32 0.0, %v705
    %v707 = vpop.f32.mrf.mxu0
    %708 = vmatprep.mubr.f32.mxu0 0.0
    %709 = vmatmul.mubr.f32.gmra.mxu0 %v363
    %v710 = vpop.f32.mrf.mxu0
    %v711 = vadd.f32 0.0, %v710
    %v712 = vpop.f32.mrf.mxu0
    %713 = vmatprep.mubr.f32.mxu0 0.0
    %714 = vmatmul.mubr.f32.gmra.mxu0 %v366
    %v715 = vpop.f32.mrf.mxu0
    %v716 = vadd.f32 0.0, %v715
    %v717 = vpop.f32.mrf.mxu0
    %718 = vmatprep.mubr.f32.mxu0 0.0
    %719 = vmatmul.mubr.f32.gmra.mxu0 %v369
    %v720 = vpop.f32.mrf.mxu0
    %v721 = vadd.f32 0.0, %v720
    %v722 = vpop.f32.mrf.mxu0
    %723 = vmatprep.mubr.f32.mxu0 0.0
    %724 = vmatmul.mubr.f32.gmra.mxu0 %v372
    %v725 = vpop.f32.mrf.mxu0
    %v726 = vadd.f32 0.0, %v725
    %v727 = vpop.f32.mrf.mxu0
    %728 = vmatprep.mubr.f32.mxu0 0.0
    %729 = vmatmul.mubr.f32.gmra.mxu0 %v375
    %v730 = vpop.f32.mrf.mxu0
    %v731 = vadd.f32 0.0, %v730
    %v732 = vpop.f32.mrf.mxu0
    %733 = vmatprep.mubr.f32.mxu0 0.0
    %734 = vmatmul.mubr.f32.gmra.mxu0 %v378
    %v735 = vpop.f32.mrf.mxu0
    %v736 = vadd.f32 0.0, %v735
    %v737 = vpop.f32.mrf.mxu0
    %738 = vmatprep.mubr.f32.mxu0 0.0
    %739 = vmatmul.mubr.f32.gmra.mxu0 %v381
    %v740 = vpop.f32.mrf.mxu0
    %v741 = vadd.f32 0.0, %v740
    %v742 = vpop.f32.mrf.mxu0
    %743 = vmatprep.mubr.f32.mxu0 0.0
    %744 = vmatmul.mubr.f32.gmra.mxu0 %v384
    %v745 = vpop.f32.mrf.mxu0
    %v746 = vadd.f32 0.0, %v745
    %v747 = vpop.f32.mrf.mxu0
    %748 = vmatprep.mubr.f32.mxu0 0.0
    %749 = vmatmul.mubr.f32.gmra.mxu0 %v387
    %v750 = vpop.f32.mrf.mxu0
    %v751 = vadd.f32 0.0, %v750
    %v752 = vpop.f32.mrf.mxu0
    %753 = vmatprep.mubr.f32.mxu0 0.0
    %754 = vmatmul.mubr.f32.gmra.mxu0 %v390
    %v755 = vpop.f32.mrf.mxu0
    %v756 = vadd.f32 0.0, %v755
    %v757 = vpop.f32.mrf.mxu0
    %758 = vmatprep.mubr.f32.mxu0 0.0
    %759 = vmatmul.mubr.f32.gmra.mxu0 %v393
    %v760 = vpop.f32.mrf.mxu0
    %v761 = vadd.f32 0.0, %v760
    %v762 = vpop.f32.mrf.mxu0
    %763 = vmatprep.mubr.f32.mxu0 0.0
    %764 = vmatmul.mubr.f32.gmra.mxu0 %v396
    %v765 = vpop.f32.mrf.mxu0
    %v766 = vadd.f32 0.0, %v765
    %v767 = vpop.f32.mrf.mxu0
    %768 = vmatprep.mubr.f32.mxu0 0.0
    %769 = vmatmul.mubr.f32.gmra.mxu0 %v399
    %v770 = vpop.f32.mrf.mxu0
    %v771 = vadd.f32 0.0, %v770
    %v772 = vpop.f32.mrf.mxu0
    %773 = vmatprep.mubr.f32.mxu0 0.0
    %774 = vmatmul.mubr.f32.gmra.mxu0 %v402
    %v775 = vpop.f32.mrf.mxu0
    %v776 = vadd.f32 0.0, %v775
    %v777 = vpop.f32.mrf.mxu0
    %778 = vmatprep.mubr.f32.mxu0 0.0
    %779 = vmatmul.mubr.f32.gmra.mxu0 %v405
    %v780 = vpop.f32.mrf.mxu0
    %v781 = vadd.f32 0.0, %v780
    %v782 = vpop.f32.mrf.mxu0
    %783 = vmatprep.mubr.f32.mxu0 0.0
    %784 = vmatmul.mubr.f32.gmra.mxu0 %v408
    %v785 = vpop.f32.mrf.mxu0
    %v786 = vadd.f32 0.0, %v785
    %v787 = vpop.f32.mrf.mxu0
    %788 = vmatprep.mubr.f32.mxu0 0.0
    %789 = vmatmul.mubr.f32.gmra.mxu0 %v411
    %v790 = vpop.f32.mrf.mxu0
    %v791 = vadd.f32 0.0, %v790
    %v792 = vpop.f32.mrf.mxu0
    %793 = vmatprep.mubr.f32.mxu0 0.0
    %794 = vmatmul.mubr.f32.gmra.mxu0 %v414
    %v795 = vpop.f32.mrf.mxu0
    %v796 = vadd.f32 0.0, %v795
    %v797 = vpop.f32.mrf.mxu0
    %798 = vmatprep.mubr.f32.mxu0 0.0
    %799 = vmatmul.mubr.f32.gmra.mxu0 %v417
    %v800 = vpop.f32.mrf.mxu0
    %v801 = vadd.f32 0.0, %v800
    %v802 = vpop.f32.mrf.mxu0
    %803 = vdwg.mxu0
    %v804 = vld [vmem:[%s2] sm:$0x1]
    %v806 = vlaneseq
    %v807 = vshrl.u32 %v806, 7
    %v808 = vsub.s32 0, %v807
    %v809 = vrot.slane %v804, %v808
    %v811 = vmul.f32 %v486, %v809
    %v812 = vmul.f32 %v491, %v809
    %v813 = vmul.f32 %v496, %v809
    %v814 = vmul.f32 %v501, %v809
    %v815 = vmul.f32 %v506, %v809
    %v816 = vmul.f32 %v511, %v809
    %v817 = vmul.f32 %v516, %v809
    %v818 = vmul.f32 %v521, %v809
    %v819 = vmul.f32 %v526, %v809
    %v820 = vmul.f32 %v531, %v809
    %v821 = vmul.f32 %v536, %v809
    %v822 = vmul.f32 %v541, %v809
    %v823 = vmul.f32 %v546, %v809
    %v824 = vmul.f32 %v551, %v809
    %v825 = vmul.f32 %v556, %v809
    %v826 = vmul.f32 %v561, %v809
    %v827 = vmul.f32 %v566, %v809
    %v828 = vmul.f32 %v571, %v809
    %v829 = vmul.f32 %v576, %v809
    %v830 = vmul.f32 %v581, %v809
    %v831 = vmul.f32 %v586, %v809
    %v832 = vmul.f32 %v591, %v809
    %v833 = vmul.f32 %v596, %v809
    %v834 = vmul.f32 %v601, %v809
    %v835 = vmul.f32 %v606, %v809
    %v836 = vmul.f32 %v611, %v809
    %v837 = vmul.f32 %v616, %v809
    %v838 = vmul.f32 %v621, %v809
    %v839 = vmul.f32 %v626, %v809
    %v840 = vmul.f32 %v631, %v809
    %v841 = vmul.f32 %v636, %v809
    %v842 = vmul.f32 %v641, %v809
    %v843 = vmul.f32 %v646, %v809
    %v844 = vmul.f32 %v651, %v809
    %v845 = vmul.f32 %v656, %v809
    %v846 = vmul.f32 %v661, %v809
    %v847 = vmul.f32 %v666, %v809
    %v848 = vmul.f32 %v671, %v809
    %v849 = vmul.f32 %v676, %v809
    %v850 = vmul.f32 %v681, %v809
    %v851 = vmul.f32 %v686, %v809
    %v852 = vmul.f32 %v691, %v809
    %v853 = vmul.f32 %v696, %v809
    %v854 = vmul.f32 %v701, %v809
    %v855 = vmul.f32 %v706, %v809
    %v856 = vmul.f32 %v711, %v809
    %v857 = vmul.f32 %v716, %v809
    %v858 = vmul.f32 %v721, %v809
    %v859 = vmul.f32 %v726, %v809
    %v860 = vmul.f32 %v731, %v809
    %v861 = vmul.f32 %v736, %v809
    %v862 = vmul.f32 %v741, %v809
    %v863 = vmul.f32 %v746, %v809
    %v864 = vmul.f32 %v751, %v809
    %v865 = vmul.f32 %v756, %v809
    %v866 = vmul.f32 %v761, %v809
    %v867 = vmul.f32 %v766, %v809
    %v868 = vmul.f32 %v771, %v809
    %v869 = vmul.f32 %v776, %v809
    %v870 = vmul.f32 %v781, %v809
    %v871 = vmul.f32 %v786, %v809
    %v872 = vmul.f32 %v791, %v809
    %v873 = vmul.f32 %v796, %v809
    %v874 = vmul.f32 %v801, %v809
    %v875 = vld [vmem:[%s3] sm:$0x1]
    %v877 = vlaneseq
    %v878 = vshrl.u32 %v877, 7
    %v879 = vsub.s32 0, %v878
    %v880 = vrot.slane %v875, %v879
    %v882 = vadd.f32 %v811, %v880
    %v883 = vadd.f32 %v812, %v880
    %v884 = vadd.f32 %v813, %v880
    %v885 = vadd.f32 %v814, %v880
    %v886 = vadd.f32 %v815, %v880
    %v887 = vadd.f32 %v816, %v880
    %v888 = vadd.f32 %v817, %v880
    %v889 = vadd.f32 %v818, %v880
    %v890 = vadd.f32 %v819, %v880
    %v891 = vadd.f32 %v820, %v880
    %v892 = vadd.f32 %v821, %v880
    %v893 = vadd.f32 %v822, %v880
    %v894 = vadd.f32 %v823, %v880
    %v895 = vadd.f32 %v824, %v880
    %v896 = vadd.f32 %v825, %v880
    %v897 = vadd.f32 %v826, %v880
    %v898 = vadd.f32 %v827, %v880
    %v899 = vadd.f32 %v828, %v880
    %v900 = vadd.f32 %v829, %v880
    %v901 = vadd.f32 %v830, %v880
    %v902 = vadd.f32 %v831, %v880
    %v903 = vadd.f32 %v832, %v880
    %v904 = vadd.f32 %v833, %v880
    %v905 = vadd.f32 %v834, %v880
    %v906 = vadd.f32 %v835, %v880
    %v907 = vadd.f32 %v836, %v880
    %v908 = vadd.f32 %v837, %v880
    %v909 = vadd.f32 %v838, %v880
    %v910 = vadd.f32 %v839, %v880
    %v911 = vadd.f32 %v840, %v880
    %v912 = vadd.f32 %v841, %v880
    %v913 = vadd.f32 %v842, %v880
    %v914 = vadd.f32 %v843, %v880
    %v915 = vadd.f32 %v844, %v880
    %v916 = vadd.f32 %v845, %v880
    %v917 = vadd.f32 %v846, %v880
    %v918 = vadd.f32 %v847, %v880
    %v919 = vadd.f32 %v848, %v880
    %v920 = vadd.f32 %v849, %v880
    %v921 = vadd.f32 %v850, %v880
    %v922 = vadd.f32 %v851, %v880
    %v923 = vadd.f32 %v852, %v880
    %v924 = vadd.f32 %v853, %v880
    %v925 = vadd.f32 %v854, %v880
    %v926 = vadd.f32 %v855, %v880
    %v927 = vadd.f32 %v856, %v880
    %v928 = vadd.f32 %v857, %v880
    %v929 = vadd.f32 %v858, %v880
    %v930 = vadd.f32 %v859, %v880
    %v931 = vadd.f32 %v860, %v880
    %v932 = vadd.f32 %v861, %v880
    %v933 = vadd.f32 %v862, %v880
    %v934 = vadd.f32 %v863, %v880
    %v935 = vadd.f32 %v864, %v880
    %v936 = vadd.f32 %v865, %v880
    %v937 = vadd.f32 %v866, %v880
    %v938 = vadd.f32 %v867, %v880
    %v939 = vadd.f32 %v868, %v880
    %v940 = vadd.f32 %v869, %v880
    %v941 = vadd.f32 %v870, %v880
    %v942 = vadd.f32 %v871, %v880
    %v943 = vadd.f32 %v872, %v880
    %v944 = vadd.f32 %v873, %v880
    %v945 = vadd.f32 %v874, %v880
    %v946 = vmax.f32 %v882, 0.0
    %v947 = vmax.f32 %v883, 0.0
    %v948 = vmax.f32 %v884, 0.0
    %v949 = vmax.f32 %v885, 0.0
    %v950 = vmax.f32 %v886, 0.0
    %v951 = vmax.f32 %v887, 0.0
    %v952 = vmax.f32 %v888, 0.0
    %v953 = vmax.f32 %v889, 0.0
    %v954 = vmax.f32 %v890, 0.0
    %v955 = vmax.f32 %v891, 0.0
    %v956 = vmax.f32 %v892, 0.0
    %v957 = vmax.f32 %v893, 0.0
    %v958 = vmax.f32 %v894, 0.0
    %v959 = vmax.f32 %v895, 0.0
    %v960 = vmax.f32 %v896, 0.0
    %v961 = vmax.f32 %v897, 0.0
    %v962 = vmax.f32 %v898, 0.0
    %v963 = vmax.f32 %v899, 0.0
    %v964 = vmax.f32 %v900, 0.0
    %v965 = vmax.f32 %v901, 0.0
    %v966 = vmax.f32 %v902, 0.0
    %v967 = vmax.f32 %v903, 0.0
    %v968 = vmax.f32 %v904, 0.0
    %v969 = vmax.f32 %v905, 0.0
    %v970 = vmax.f32 %v906, 0.0
    %v971 = vmax.f32 %v907, 0.0
    %v972 = vmax.f32 %v908, 0.0
    %v973 = vmax.f32 %v909, 0.0
    %v974 = vmax.f32 %v910, 0.0
    %v975 = vmax.f32 %v911, 0.0
    %v976 = vmax.f32 %v912, 0.0
    %v977 = vmax.f32 %v913, 0.0
    %v978 = vmax.f32 %v914, 0.0
    %v979 = vmax.f32 %v915, 0.0
    %v980 = vmax.f32 %v916, 0.0
    %v981 = vmax.f32 %v917, 0.0
    %v982 = vmax.f32 %v918, 0.0
    %v983 = vmax.f32 %v919, 0.0
    %v984 = vmax.f32 %v920, 0.0
    %v985 = vmax.f32 %v921, 0.0
    %v986 = vmax.f32 %v922, 0.0
    %v987 = vmax.f32 %v923, 0.0
    %v988 = vmax.f32 %v924, 0.0
    %v989 = vmax.f32 %v925, 0.0
    %v990 = vmax.f32 %v926, 0.0
    %v991 = vmax.f32 %v927, 0.0
    %v992 = vmax.f32 %v928, 0.0
    %v993 = vmax.f32 %v929, 0.0
    %v994 = vmax.f32 %v930, 0.0
    %v995 = vmax.f32 %v931, 0.0
    %v996 = vmax.f32 %v932, 0.0
    %v997 = vmax.f32 %v933, 0.0
    %v998 = vmax.f32 %v934, 0.0
    %v999 = vmax.f32 %v935, 0.0
    %v1000 = vmax.f32 %v936, 0.0
    %v1001 = vmax.f32 %v937, 0.0
    %v1002 = vmax.f32 %v938, 0.0
    %v1003 = vmax.f32 %v939, 0.0
    %v1004 = vmax.f32 %v940, 0.0
    %v1005 = vmax.f32 %v941, 0.0
    %v1006 = vmax.f32 %v942, 0.0
    %v1007 = vmax.f32 %v943, 0.0
    %v1008 = vmax.f32 %v944, 0.0
    %v1009 = vmax.f32 %v945, 0.0
    %1010 = vst [vmem:[%s126 + $0x8] sm:$0xff] %v946
    %1011 = vst [vmem:[%s126 + $0x10] sm:$0xff] %v947
    %1012 = vst [vmem:[%s126 + $0x20] sm:$0xff] %v948
    %1013 = vst [vmem:[%s126 + $0x28] sm:$0xff] %v949
    %1014 = vst [vmem:[%s126 + $0x38] sm:$0xff] %v950
    %1015 = vst [vmem:[%s126 + $0x40] sm:$0xff] %v951
    %1016 = vst [vmem:[%s126 + $0x50] sm:$0xff] %v952
    %1017 = vst [vmem:[%s126 + $0x58] sm:$0xff] %v953
    %1018 = vst [vmem:[%s126 + $0x68] sm:$0xff] %v954
    %1019 = vst [vmem:[%s126 + $0x70] sm:$0xff] %v955
    %1020 = vst [vmem:[%s126 + $0x80] sm:$0xff] %v956
    %1021 = vst [vmem:[%s126 + $0x88] sm:$0xff] %v957
    %1022 = vst [vmem:[%s126 + $0x98] sm:$0xff] %v958
    %1023 = vst [vmem:[%s126 + $0xa0] sm:$0xff] %v959
    %1024 = vst [vmem:[%s126 + $0xb0] sm:$0xff] %v960
    %1025 = vst [vmem:[%s126 + $0xb8] sm:$0xff] %v961
    %1026 = vst [vmem:[%s126 + $0xc8] sm:$0xff] %v962
    %1027 = vst [vmem:[%s126 + $0xd0] sm:$0xff] %v963
    %1028 = vst [vmem:[%s126 + $0xe0] sm:$0xff] %v964
    %1029 = vst [vmem:[%s126 + $0xe8] sm:$0xff] %v965
    %1030 = vst [vmem:[%s126 + $0xf8] sm:$0xff] %v966
    %1031 = vst [vmem:[%s126 + $0x100] sm:$0xff] %v967
    %1032 = vst [vmem:[%s126 + $0x110] sm:$0xff] %v968
    %1033 = vst [vmem:[%s126 + $0x118] sm:$0xff] %v969
    %1034 = vst [vmem:[%s126 + $0x128] sm:$0xff] %v970
    %1035 = vst [vmem:[%s126 + $0x130] sm:$0xff] %v971
    %1036 = vst [vmem:[%s126 + $0x140] sm:$0xff] %v972
    %1037 = vst [vmem:[%s126 + $0x148] sm:$0xff] %v973
    %1038 = vst [vmem:[%s126 + $0x158] sm:$0xff] %v974
    %1039 = vst [vmem:[%s126 + $0x160] sm:$0xff] %v975
    %1040 = vst [vmem:[%s126 + $0x170] sm:$0xff] %v976
    %1041 = vst [vmem:[%s126 + $0x178] sm:$0xff] %v977
    %1042 = vst [vmem:[%s126 + $0x1b8] sm:$0xff] %v978
    %1043 = vst [vmem:[%s126 + $0x1c0] sm:$0xff] %v979
    %1044 = vst [vmem:[%s126 + $0x1d0] sm:$0xff] %v980
    %1045 = vst [vmem:[%s126 + $0x1d8] sm:$0xff] %v981
    %1046 = vst [vmem:[%s126 + $0x1e8] sm:$0xff] %v982
    %1047 = vst [vmem:[%s126 + $0x1f0] sm:$0xff] %v983
    %1048 = vst [vmem:[%s126 + $0x200] sm:$0xff] %v984
    %1049 = vst [vmem:[%s126 + $0x208] sm:$0xff] %v985
    %1050 = vst [vmem:[%s126 + $0x218] sm:$0xff] %v986
    %1051 = vst [vmem:[%s126 + $0x220] sm:$0xff] %v987
    %1052 = vst [vmem:[%s126 + $0x230] sm:$0xff] %v988
    %1053 = vst [vmem:[%s126 + $0x238] sm:$0xff] %v989
    %1054 = vst [vmem:[%s126 + $0x248] sm:$0xff] %v990
    %1055 = vst [vmem:[%s126 + $0x250] sm:$0xff] %v991
    %1056 = vst [vmem:[%s126 + $0x260] sm:$0xff] %v992
    %1057 = vst [vmem:[%s126 + $0x268] sm:$0xff] %v993
    %1058 = vst [vmem:[%s126 + $0x278] sm:$0xff] %v994
    %1059 = vst [vmem:[%s126 + $0x280] sm:$0xff] %v995
    %1060 = vst [vmem:[%s126 + $0x290] sm:$0xff] %v996
    %1061 = vst [vmem:[%s126 + $0x298] sm:$0xff] %v997
    %1062 = vst [vmem:[%s126 + $0x2a8] sm:$0xff] %v998
    %1063 = vst [vmem:[%s126 + $0x2b0] sm:$0xff] %v999
    %1064 = vst [vmem:[%s126 + $0x2c0] sm:$0xff] %v1000
    %1065 = vst [vmem:[%s126 + $0x2c8] sm:$0xff] %v1001
    %1066 = vst [vmem:[%s126 + $0x2d8] sm:$0xff] %v1002
    %1067 = vst [vmem:[%s126 + $0x2e0] sm:$0xff] %v1003
    %1068 = vst [vmem:[%s126 + $0x2f0] sm:$0xff] %v1004
    %1069 = vst [vmem:[%s126 + $0x2f8] sm:$0xff] %v1005
    %1070 = vst [vmem:[%s126 + $0x308] sm:$0xff] %v1006
    %1071 = vst [vmem:[%s126 + $0x310] sm:$0xff] %v1007
    %1072 = vst [vmem:[%s126 + $0x320] sm:$0xff] %v1008
    %1073 = vst [vmem:[%s126 + $0x328] sm:$0xff] %v1009
    %v1074 = vld [vmem:[#allocation2] sm:$0xff]
    %v1075 = vld [vmem:[#allocation2 + $0x8] sm:$0xff]
    %v1076 = vld [vmem:[#allocation2 + $0x10] sm:$0xff]
    %v1077 = vld [vmem:[#allocation2 + $0x18] sm:$0xff]
    %v1078 = vld [vmem:[#allocation2 + $0x20] sm:$0xff]
    %v1079 = vld [vmem:[#allocation2 + $0x28] sm:$0xff]
    %v1080 = vld [vmem:[#allocation2 + $0x30] sm:$0xff]
    %v1081 = vld [vmem:[#allocation2 + $0x38] sm:$0xff]
    %v1082 = vld [vmem:[#allocation2 + $0x40] sm:$0xff]
    %v1083 = vld [vmem:[#allocation2 + $0x48] sm:$0xff]
    %v1084 = vld [vmem:[#allocation2 + $0x50] sm:$0xff]
    %v1085 = vld [vmem:[#allocation2 + $0x58] sm:$0xff]
    %v1086 = vld [vmem:[#allocation2 + $0x60] sm:$0xff]
    %v1087 = vld [vmem:[#allocation2 + $0x68] sm:$0xff]
    %v1088 = vld [vmem:[#allocation2 + $0x70] sm:$0xff]
    %v1089 = vld [vmem:[#allocation2 + $0x78] sm:$0xff]
    %v1090 = vld [vmem:[#allocation2 + $0x80] sm:$0xff]
    %v1091 = vld [vmem:[#allocation2 + $0x88] sm:$0xff]
    %v1092 = vld [vmem:[#allocation2 + $0x90] sm:$0xff]
    %v1093 = vld [vmem:[#allocation2 + $0x98] sm:$0xff]
    %v1094 = vld [vmem:[#allocation2 + $0xa0] sm:$0xff]
    %v1095 = vld [vmem:[#allocation2 + $0xa8] sm:$0xff]
    %v1096 = vld [vmem:[#allocation2 + $0xb0] sm:$0xff]
    %v1097 = vld [vmem:[#allocation2 + $0xb8] sm:$0xff]
    %v1098 = vld [vmem:[#allocation2 + $0xc0] sm:$0xff]
    %v1099 = vld [vmem:[#allocation2 + $0xc8] sm:$0xff]
    %v1100 = vld [vmem:[#allocation2 + $0xd0] sm:$0xff]
    %v1101 = vld [vmem:[#allocation2 + $0xd8] sm:$0xff]
    %v1102 = vld [vmem:[#allocation2 + $0xe0] sm:$0xff]
    %v1103 = vld [vmem:[#allocation2 + $0xe8] sm:$0xff]
    %v1104 = vld [vmem:[#allocation2 + $0xf0] sm:$0xff]
    %v1105 = vld [vmem:[#allocation2 + $0xf8] sm:$0xff]
    %v1106 = vld [vmem:[#allocation2 + $0x100] sm:$0xff]
    %v1107 = vld [vmem:[#allocation2 + $0x108] sm:$0xff]
    %v1108 = vld [vmem:[#allocation2 + $0x110] sm:$0xff]
    %v1109 = vld [vmem:[#allocation2 + $0x118] sm:$0xff]
    %v1110 = vld [vmem:[#allocation2 + $0x120] sm:$0xff]
    %v1111 = vld [vmem:[#allocation2 + $0x128] sm:$0xff]
    %v1112 = vld [vmem:[#allocation2 + $0x130] sm:$0xff]
    %v1113 = vld [vmem:[#allocation2 + $0x138] sm:$0xff]
    %v1114 = vld [vmem:[#allocation2 + $0x140] sm:$0xff]
    %v1115 = vld [vmem:[#allocation2 + $0x148] sm:$0xff]
    %v1116 = vld [vmem:[#allocation2 + $0x150] sm:$0xff]
    %v1117 = vld [vmem:[#allocation2 + $0x158] sm:$0xff]
    %v1118 = vld [vmem:[#allocation2 + $0x160] sm:$0xff]
    %v1119 = vld [vmem:[#allocation2 + $0x168] sm:$0xff]
    %v1120 = vld [vmem:[#allocation2 + $0x170] sm:$0xff]
    %v1121 = vld [vmem:[#allocation2 + $0x178] sm:$0xff]
    %v1122 = vld [vmem:[#allocation2 + $0x1b0] sm:$0xff]
    %v1123 = vld [vmem:[#allocation2 + $0x1b8] sm:$0xff]
    %v1124 = vld [vmem:[#allocation2 + $0x1c0] sm:$0xff]
    %v1125 = vld [vmem:[#allocation2 + $0x1c8] sm:$0xff]
    %v1126 = vld [vmem:[#allocation2 + $0x1d0] sm:$0xff]
    %v1127 = vld [vmem:[#allocation2 + $0x1d8] sm:$0xff]
    %v1128 = vld [vmem:[#allocation2 + $0x1e0] sm:$0xff]
    %v1129 = vld [vmem:[#allocation2 + $0x1e8] sm:$0xff]
    %v1130 = vld [vmem:[#allocation2 + $0x1f0] sm:$0xff]
    %v1131 = vld [vmem:[#allocation2 + $0x1f8] sm:$0xff]
    %v1132 = vld [vmem:[#allocation2 + $0x200] sm:$0xff]
    %v1133 = vld [vmem:[#allocation2 + $0x208] sm:$0xff]
    %v1134 = vld [vmem:[#allocation2 + $0x210] sm:$0xff]
    %v1135 = vld [vmem:[#allocation2 + $0x218] sm:$0xff]
    %v1136 = vld [vmem:[#allocation2 + $0x220] sm:$0xff]
    %v1137 = vld [vmem:[#allocation2 + $0x228] sm:$0xff]
    %v1138 = vld [vmem:[#allocation2 + $0x230] sm:$0xff]
    %v1139 = vld [vmem:[#allocation2 + $0x238] sm:$0xff]
    %v1140 = vld [vmem:[#allocation2 + $0x240] sm:$0xff]
    %v1141 = vld [vmem:[#allocation2 + $0x248] sm:$0xff]
    %v1142 = vld [vmem:[#allocation2 + $0x250] sm:$0xff]
    %v1143 = vld [vmem:[#allocation2 + $0x258] sm:$0xff]
    %v1144 = vld [vmem:[#allocation2 + $0x260] sm:$0xff]
    %v1145 = vld [vmem:[#allocation2 + $0x268] sm:$0xff]
    %v1146 = vld [vmem:[#allocation2 + $0x270] sm:$0xff]
    %v1147 = vld [vmem:[#allocation2 + $0x278] sm:$0xff]
    %v1148 = vld [vmem:[#allocation2 + $0x280] sm:$0xff]
    %v1149 = vld [vmem:[#allocation2 + $0x288] sm:$0xff]
    %v1150 = vld [vmem:[#allocation2 + $0x290] sm:$0xff]
    %v1151 = vld [vmem:[#allocation2 + $0x298] sm:$0xff]
    %v1152 = vld [vmem:[#allocation2 + $0x2a0] sm:$0xff]
    %v1153 = vld [vmem:[#allocation2 + $0x2a8] sm:$0xff]
    %v1154 = vld [vmem:[#allocation2 + $0x2b0] sm:$0xff]
    %v1155 = vld [vmem:[#allocation2 + $0x2b8] sm:$0xff]
    %v1156 = vld [vmem:[#allocation2 + $0x2c0] sm:$0xff]
    %v1157 = vld [vmem:[#allocation2 + $0x2c8] sm:$0xff]
    %v1158 = vld [vmem:[#allocation2 + $0x2d0] sm:$0xff]
    %v1159 = vld [vmem:[#allocation2 + $0x2d8] sm:$0xff]
    %v1160 = vld [vmem:[#allocation2 + $0x2e0] sm:$0xff]
    %v1161 = vld [vmem:[#allocation2 + $0x2e8] sm:$0xff]
    %v1162 = vld [vmem:[#allocation2 + $0x2f0] sm:$0xff]
    %v1163 = vld [vmem:[#allocation2 + $0x2f8] sm:$0xff]
    %v1164 = vld [vmem:[#allocation2 + $0x300] sm:$0xff]
    %v1165 = vld [vmem:[#allocation2 + $0x308] sm:$0xff]
    %v1166 = vld [vmem:[#allocation2 + $0x310] sm:$0xff]
    %v1167 = vld [vmem:[#allocation2 + $0x318] sm:$0xff]
    %v1168 = vld [vmem:[#allocation2 + $0x320] sm:$0xff]
    %v1169 = vld [vmem:[#allocation2 + $0x328] sm:$0xff]
    %v1170 = vrot.slane %v1074, 7
    %v1171 = vrot.slane %v1077, 7
    %v1172 = vrot.slane %v1080, 7
    %v1173 = vrot.slane %v1083, 7
    %v1174 = vrot.slane %v1086, 7
    %v1175 = vrot.slane %v1089, 7
    %v1176 = vrot.slane %v1092, 7
    %v1177 = vrot.slane %v1095, 7
    %v1178 = vrot.slane %v1098, 7
    %v1179 = vrot.slane %v1101, 7
    %v1180 = vrot.slane %v1104, 7
    %v1181 = vrot.slane %v1107, 7
    %v1182 = vrot.slane %v1110, 7
    %v1183 = vrot.slane %v1113, 7
    %v1184 = vrot.slane %v1116, 7
    %v1185 = vrot.slane %v1119, 7
    %v1186 = vrot.slane %v1122, 7
    %v1187 = vrot.slane %v1125, 7
    %v1188 = vrot.slane %v1128, 7
    %v1189 = vrot.slane %v1131, 7
    %v1190 = vrot.slane %v1134, 7
    %v1191 = vrot.slane %v1137, 7
    %v1192 = vrot.slane %v1140, 7
    %v1193 = vrot.slane %v1143, 7
    %v1194 = vrot.slane %v1146, 7
    %v1195 = vrot.slane %v1149, 7
    %v1196 = vrot.slane %v1152, 7
    %v1197 = vrot.slane %v1155, 7
    %v1198 = vrot.slane %v1158, 7
    %v1199 = vrot.slane %v1161, 7
    %v1200 = vrot.slane %v1164, 7
    %v1201 = vrot.slane %v1167, 7
    %v1202 = vrot.slane %v1075, 7
    %v1203 = vrot.slane %v1078, 7
    %v1204 = vrot.slane %v1081, 7
    %v1205 = vrot.slane %v1084, 7
    %v1206 = vrot.slane %v1087, 7
    %v1207 = vrot.slane %v1090, 7
    %v1208 = vrot.slane %v1093, 7
    %v1209 = vrot.slane %v1096, 7
    %v1210 = vrot.slane %v1099, 7
    %v1211 = vrot.slane %v1102, 7
    %v1212 = vrot.slane %v1105, 7
    %v1213 = vrot.slane %v1108, 7
    %v1214 = vrot.slane %v1111, 7
    %v1215 = vrot.slane %v1114, 7
    %v1216 = vrot.slane %v1117, 7
    %v1217 = vrot.slane %v1120, 7
    %v1218 = vrot.slane %v1123, 7
    %v1219 = vrot.slane %v1126, 7
    %v1220 = vrot.slane %v1129, 7
    %v1221 = vrot.slane %v1132, 7
    %v1222 = vrot.slane %v1135, 7
    %v1223 = vrot.slane %v1138, 7
    %v1224 = vrot.slane %v1141, 7
    %v1225 = vrot.slane %v1144, 7
    %v1226 = vrot.slane %v1147, 7
    %v1227 = vrot.slane %v1150, 7
    %v1228 = vrot.slane %v1153, 7
    %v1229 = vrot.slane %v1156, 7
    %v1230 = vrot.slane %v1159, 7
    %v1231 = vrot.slane %v1162, 7
    %v1232 = vrot.slane %v1165, 7
    %v1233 = vrot.slane %v1168, 7
    %v1234 = vrot.slane %v1076, 7
    %v1235 = vrot.slane %v1079, 7
    %v1236 = vrot.slane %v1082, 7
    %v1237 = vrot.slane %v1085, 7
    %v1238 = vrot.slane %v1088, 7
    %v1239 = vrot.slane %v1091, 7
    %v1240 = vrot.slane %v1094, 7
    %v1241 = vrot.slane %v1097, 7
    %v1242 = vrot.slane %v1100, 7
    %v1243 = vrot.slane %v1103, 7
    %v1244 = vrot.slane %v1106, 7
    %v1245 = vrot.slane %v1109, 7
    %v1246 = vrot.slane %v1112, 7
    %v1247 = vrot.slane %v1115, 7
    %v1248 = vrot.slane %v1118, 7
    %v1249 = vrot.slane %v1121, 7
    %v1250 = vrot.slane %v1124, 7
    %v1251 = vrot.slane %v1127, 7
    %v1252 = vrot.slane %v1130, 7
    %v1253 = vrot.slane %v1133, 7
    %v1254 = vrot.slane %v1136, 7
    %v1255 = vrot.slane %v1139, 7
    %v1256 = vrot.slane %v1142, 7
    %v1257 = vrot.slane %v1145, 7
    %v1258 = vrot.slane %v1148, 7
    %v1259 = vrot.slane %v1151, 7
    %v1260 = vrot.slane %v1154, 7
    %v1261 = vrot.slane %v1157, 7
    %v1262 = vrot.slane %v1160, 7
    %v1263 = vrot.slane %v1163, 7
    %v1264 = vrot.slane %v1166, 7
    %v1265 = vrot.slane %v1169, 7
    %v1266 = vlaneseq
    %v1267 = vshrl.u32 %v1266, 7
    %vm1268 = vcmp.lt.s32.totalorder %v1267, 1
    %v1269 = vsel %vm1268, %v1202, %v1234
    %v1270 = vsel %vm1268, %v1203, %v1235
    %v1271 = vsel %vm1268, %v1204, %v1236
    %v1272 = vsel %vm1268, %v1205, %v1237
    %v1273 = vsel %vm1268, %v1206, %v1238
    %v1274 = vsel %vm1268, %v1207, %v1239
    %v1275 = vsel %vm1268, %v1208, %v1240
    %v1276 = vsel %vm1268, %v1209, %v1241
    %v1277 = vsel %vm1268, %v1210, %v1242
    %v1278 = vsel %vm1268, %v1211, %v1243
    %v1279 = vsel %vm1268, %v1212, %v1244
    %v1280 = vsel %vm1268, %v1213, %v1245
    %v1281 = vsel %vm1268, %v1214, %v1246
    %v1282 = vsel %vm1268, %v1215, %v1247
    %v1283 = vsel %vm1268, %v1216, %v1248
    %v1284 = vsel %vm1268, %v1217, %v1249
    %v1285 = vsel %vm1268, %v1218, %v1250
    %v1286 = vsel %vm1268, %v1219, %v1251
    %v1287 = vsel %vm1268, %v1220, %v1252
    %v1288 = vsel %vm1268, %v1221, %v1253
    %v1289 = vsel %vm1268, %v1222, %v1254
    %v1290 = vsel %vm1268, %v1223, %v1255
    %v1291 = vsel %vm1268, %v1224, %v1256
    %v1292 = vsel %vm1268, %v1225, %v1257
    %v1293 = vsel %vm1268, %v1226, %v1258
    %v1294 = vsel %vm1268, %v1227, %v1259
    %v1295 = vsel %vm1268, %v1228, %v1260
    %v1296 = vsel %vm1268, %v1229, %v1261
    %v1297 = vsel %vm1268, %v1230, %v1262
    %v1298 = vsel %vm1268, %v1231, %v1263
    %v1299 = vsel %vm1268, %v1232, %v1264
    %v1300 = vsel %vm1268, %v1233, %v1265
    %v1301 = vsel %vm1268, %v1170, %v1202
    %v1302 = vsel %vm1268, %v1171, %v1203
    %v1303 = vsel %vm1268, %v1172, %v1204
    %v1304 = vsel %vm1268, %v1173, %v1205
    %v1305 = vsel %vm1268, %v1174, %v1206
    %v1306 = vsel %vm1268, %v1175, %v1207
    %v1307 = vsel %vm1268, %v1176, %v1208
    %v1308 = vsel %vm1268, %v1177, %v1209
    %v1309 = vsel %vm1268, %v1178, %v1210
    %v1310 = vsel %vm1268, %v1179, %v1211
    %v1311 = vsel %vm1268, %v1180, %v1212
    %v1312 = vsel %vm1268, %v1181, %v1213
    %v1313 = vsel %vm1268, %v1182, %v1214
    %v1314 = vsel %vm1268, %v1183, %v1215
    %v1315 = vsel %vm1268, %v1184, %v1216
    %v1316 = vsel %vm1268, %v1185, %v1217
    %v1317 = vsel %vm1268, %v1186, %v1218
    %v1318 = vsel %vm1268, %v1187, %v1219
    %v1319 = vsel %vm1268, %v1188, %v1220
    %v1320 = vsel %vm1268, %v1189, %v1221
    %v1321 = vsel %vm1268, %v1190, %v1222
    %v1322 = vsel %vm1268, %v1191, %v1223
    %v1323 = vsel %vm1268, %v1192, %v1224
    %v1324 = vsel %vm1268, %v1193, %v1225
    %v1325 = vsel %vm1268, %v1194, %v1226
    %v1326 = vsel %vm1268, %v1195, %v1227
    %v1327 = vsel %vm1268, %v1196, %v1228
    %v1328 = vsel %vm1268, %v1197, %v1229
    %v1329 = vsel %vm1268, %v1198, %v1230
    %v1330 = vsel %vm1268, %v1199, %v1231
    %v1331 = vsel %vm1268, %v1200, %v1232
    %v1332 = vsel %vm1268, %v1201, %v1233
    %v1333 = vld [vmem:[#allocation8] sm:$0x1]
    %v1335 = vlaneseq
    %v1336 = vshrl.u32 %v1335, 7
    %v1337 = vsub.s32 0, %v1336
    %v1338 = vrot.slane %v1333, %v1337
    %v1340 = vmul.f32 %v1301, %v1338
    %v1341 = vmul.f32 %v1269, %v1338
    %v1342 = vmul.f32 %v1302, %v1338
    %v1343 = vmul.f32 %v1270, %v1338
    %v1344 = vmul.f32 %v1303, %v1338
    %v1345 = vmul.f32 %v1271, %v1338
    %v1346 = vmul.f32 %v1304, %v1338
    %v1347 = vmul.f32 %v1272, %v1338
    %v1348 = vmul.f32 %v1305, %v1338
    %v1349 = vmul.f32 %v1273, %v1338
    %v1350 = vmul.f32 %v1306, %v1338
    %v1351 = vmul.f32 %v1274, %v1338
    %v1352 = vmul.f32 %v1307, %v1338
    %v1353 = vmul.f32 %v1275, %v1338
    %v1354 = vmul.f32 %v1308, %v1338
    %v1355 = vmul.f32 %v1276, %v1338
    %v1356 = vmul.f32 %v1309, %v1338
    %v1357 = vmul.f32 %v1277, %v1338
    %v1358 = vmul.f32 %v1310, %v1338
    %v1359 = vmul.f32 %v1278, %v1338
    %v1360 = vmul.f32 %v1311, %v1338
    %v1361 = vmul.f32 %v1279, %v1338
    %v1362 = vmul.f32 %v1312, %v1338
    %v1363 = vmul.f32 %v1280, %v1338
    %v1364 = vmul.f32 %v1313, %v1338
    %v1365 = vmul.f32 %v1281, %v1338
    %v1366 = vmul.f32 %v1314, %v1338
    %v1367 = vmul.f32 %v1282, %v1338
    %v1368 = vmul.f32 %v1315, %v1338
    %v1369 = vmul.f32 %v1283, %v1338
    %v1370 = vmul.f32 %v1316, %v1338
    %v1371 = vmul.f32 %v1284, %v1338
    %v1372 = vmul.f32 %v1317, %v1338
    %v1373 = vmul.f32 %v1285, %v1338
    %v1374 = vmul.f32 %v1318, %v1338
    %v1375 = vmul.f32 %v1286, %v1338
    %v1376 = vmul.f32 %v1319, %v1338
    %v1377 = vmul.f32 %v1287, %v1338
    %v1378 = vmul.f32 %v1320, %v1338
    %v1379 = vmul.f32 %v1288, %v1338
    %v1380 = vmul.f32 %v1321, %v1338
    %v1381 = vmul.f32 %v1289, %v1338
    %v1382 = vmul.f32 %v1322, %v1338
    %v1383 = vmul.f32 %v1290, %v1338
    %v1384 = vmul.f32 %v1323, %v1338
    %v1385 = vmul.f32 %v1291, %v1338
    %v1386 = vmul.f32 %v1324, %v1338
    %v1387 = vmul.f32 %v1292, %v1338
    %v1388 = vmul.f32 %v1325, %v1338
    %v1389 = vmul.f32 %v1293, %v1338
    %v1390 = vmul.f32 %v1326, %v1338
    %v1391 = vmul.f32 %v1294, %v1338
    %v1392 = vmul.f32 %v1327, %v1338
    %v1393 = vmul.f32 %v1295, %v1338
    %v1394 = vmul.f32 %v1328, %v1338
    %v1395 = vmul.f32 %v1296, %v1338
    %v1396 = vmul.f32 %v1329, %v1338
    %v1397 = vmul.f32 %v1297, %v1338
    %v1398 = vmul.f32 %v1330, %v1338
    %v1399 = vmul.f32 %v1298, %v1338
    %v1400 = vmul.f32 %v1331, %v1338
    %v1401 = vmul.f32 %v1299, %v1338
    %v1402 = vmul.f32 %v1332, %v1338
    %v1403 = vmul.f32 %v1300, %v1338
    %s1404 = scalar_lea.vmem [#allocation8], 1
    %v1405 = vld [vmem:[%s1404] sm:$0x1]
    %v1407 = vlaneseq
    %v1408 = vshrl.u32 %v1407, 7
    %v1409 = vsub.s32 0, %v1408
    %v1410 = vrot.slane %v1405, %v1409
    %v1412 = vmul.f32 %v1075, %v1410
    %v1413 = vmul.f32 %v1076, %v1410
    %v1414 = vmul.f32 %v1078, %v1410
    %v1415 = vmul.f32 %v1079, %v1410
    %v1416 = vmul.f32 %v1081, %v1410
    %v1417 = vmul.f32 %v1082, %v1410
    %v1418 = vmul.f32 %v1084, %v1410
    %v1419 = vmul.f32 %v1085, %v1410
    %v1420 = vmul.f32 %v1087, %v1410
    %v1421 = vmul.f32 %v1088, %v1410
    %v1422 = vmul.f32 %v1090, %v1410
    %v1423 = vmul.f32 %v1091, %v1410
    %v1424 = vmul.f32 %v1093, %v1410
    %v1425 = vmul.f32 %v1094, %v1410
    %v1426 = vmul.f32 %v1096, %v1410
    %v1427 = vmul.f32 %v1097, %v1410
    %v1428 = vmul.f32 %v1099, %v1410
    %v1429 = vmul.f32 %v1100, %v1410
    %v1430 = vmul.f32 %v1102, %v1410
    %v1431 = vmul.f32 %v1103, %v1410
    %v1432 = vmul.f32 %v1105, %v1410
    %v1433 = vmul.f32 %v1106, %v1410
    %v1434 = vmul.f32 %v1108, %v1410
    %v1435 = vmul.f32 %v1109, %v1410
    %v1436 = vmul.f32 %v1111, %v1410
    %v1437 = vmul.f32 %v1112, %v1410
    %v1438 = vmul.f32 %v1114, %v1410
    %v1439 = vmul.f32 %v1115, %v1410
    %v1440 = vmul.f32 %v1117, %v1410
    %v1441 = vmul.f32 %v1118, %v1410
    %v1442 = vmul.f32 %v1120, %v1410
    %v1443 = vmul.f32 %v1121, %v1410
    %v1444 = vmul.f32 %v1123, %v1410
    %v1445 = vmul.f32 %v1124, %v1410
    %v1446 = vmul.f32 %v1126, %v1410
    %v1447 = vmul.f32 %v1127, %v1410
    %v1448 = vmul.f32 %v1129, %v1410
    %v1449 = vmul.f32 %v1130, %v1410
    %v1450 = vmul.f32 %v1132, %v1410
    %v1451 = vmul.f32 %v1133, %v1410
    %v1452 = vmul.f32 %v1135, %v1410
    %v1453 = vmul.f32 %v1136, %v1410
    %v1454 = vmul.f32 %v1138, %v1410
    %v1455 = vmul.f32 %v1139, %v1410
    %v1456 = vmul.f32 %v1141, %v1410
    %v1457 = vmul.f32 %v1142, %v1410
    %v1458 = vmul.f32 %v1144, %v1410
    %v1459 = vmul.f32 %v1145, %v1410
    %v1460 = vmul.f32 %v1147, %v1410
    %v1461 = vmul.f32 %v1148, %v1410
    %v1462 = vmul.f32 %v1150, %v1410
    %v1463 = vmul.f32 %v1151, %v1410
    %v1464 = vmul.f32 %v1153, %v1410
    %v1465 = vmul.f32 %v1154, %v1410
    %v1466 = vmul.f32 %v1156, %v1410
    %v1467 = vmul.f32 %v1157, %v1410
    %v1468 = vmul.f32 %v1159, %v1410
    %v1469 = vmul.f32 %v1160, %v1410
    %v1470 = vmul.f32 %v1162, %v1410
    %v1471 = vmul.f32 %v1163, %v1410
    %v1472 = vmul.f32 %v1165, %v1410
    %v1473 = vmul.f32 %v1166, %v1410
    %v1474 = vmul.f32 %v1168, %v1410
    %v1475 = vmul.f32 %v1169, %v1410
    %v1476 = vadd.f32 %v1340, %v1412
    %v1477 = vadd.f32 %v1341, %v1413
    %v1478 = vadd.f32 %v1342, %v1414
    %v1479 = vadd.f32 %v1343, %v1415
    %v1480 = vadd.f32 %v1344, %v1416
    %v1481 = vadd.f32 %v1345, %v1417
    %v1482 = vadd.f32 %v1346, %v1418
    %v1483 = vadd.f32 %v1347, %v1419
    %v1484 = vadd.f32 %v1348, %v1420
    %v1485 = vadd.f32 %v1349, %v1421
    %v1486 = vadd.f32 %v1350, %v1422
    %v1487 = vadd.f32 %v1351, %v1423
    %v1488 = vadd.f32 %v1352, %v1424
    %v1489 = vadd.f32 %v1353, %v1425
    %v1490 = vadd.f32 %v1354, %v1426
    %v1491 = vadd.f32 %v1355, %v1427
    %v1492 = vadd.f32 %v1356, %v1428
    %v1493 = vadd.f32 %v1357, %v1429
    %v1494 = vadd.f32 %v1358, %v1430
    %v1495 = vadd.f32 %v1359, %v1431
    %v1496 = vadd.f32 %v1360, %v1432
    %v1497 = vadd.f32 %v1361, %v1433
    %v1498 = vadd.f32 %v1362, %v1434
    %v1499 = vadd.f32 %v1363, %v1435
    %v1500 = vadd.f32 %v1364, %v1436
    %v1501 = vadd.f32 %v1365, %v1437
    %v1502 = vadd.f32 %v1366, %v1438
    %v1503 = vadd.f32 %v1367, %v1439
    %v1504 = vadd.f32 %v1368, %v1440
    %v1505 = vadd.f32 %v1369, %v1441
    %v1506 = vadd.f32 %v1370, %v1442
    %v1507 = vadd.f32 %v1371, %v1443
    %v1508 = vadd.f32 %v1372, %v1444
    %v1509 = vadd.f32 %v1373, %v1445
    %v1510 = vadd.f32 %v1374, %v1446
    %v1511 = vadd.f32 %v1375, %v1447
    %v1512 = vadd.f32 %v1376, %v1448
    %v1513 = vadd.f32 %v1377, %v1449
    %v1514 = vadd.f32 %v1378, %v1450
    %v1515 = vadd.f32 %v1379, %v1451
    %v1516 = vadd.f32 %v1380, %v1452
    %v1517 = vadd.f32 %v1381, %v1453
    %v1518 = vadd.f32 %v1382, %v1454
    %v1519 = vadd.f32 %v1383, %v1455
    %v1520 = vadd.f32 %v1384, %v1456
    %v1521 = vadd.f32 %v1385, %v1457
    %v1522 = vadd.f32 %v1386, %v1458
    %v1523 = vadd.f32 %v1387, %v1459
    %v1524 = vadd.f32 %v1388, %v1460
    %v1525 = vadd.f32 %v1389, %v1461
    %v1526 = vadd.f32 %v1390, %v1462
    %v1527 = vadd.f32 %v1391, %v1463
    %v1528 = vadd.f32 %v1392, %v1464
    %v1529 = vadd.f32 %v1393, %v1465
    %v1530 = vadd.f32 %v1394, %v1466
    %v1531 = vadd.f32 %v1395, %v1467
    %v1532 = vadd.f32 %v1396, %v1468
    %v1533 = vadd.f32 %v1397, %v1469
    %v1534 = vadd.f32 %v1398, %v1470
    %v1535 = vadd.f32 %v1399, %v1471
    %v1536 = vadd.f32 %v1400, %v1472
    %v1537 = vadd.f32 %v1401, %v1473
    %v1538 = vadd.f32 %v1402, %v1474
    %v1539 = vadd.f32 %v1403, %v1475
    %v1540 = vrot.slane %v1074, 1
    %v1541 = vrot.slane %v1077, 1
    %v1542 = vrot.slane %v1080, 1
    %v1543 = vrot.slane %v1083, 1
    %v1544 = vrot.slane %v1086, 1
    %v1545 = vrot.slane %v1089, 1
    %v1546 = vrot.slane %v1092, 1
    %v1547 = vrot.slane %v1095, 1
    %v1548 = vrot.slane %v1098, 1
    %v1549 = vrot.slane %v1101, 1
    %v1550 = vrot.slane %v1104, 1
    %v1551 = vrot.slane %v1107, 1
    %v1552 = vrot.slane %v1110, 1
    %v1553 = vrot.slane %v1113, 1
    %v1554 = vrot.slane %v1116, 1
    %v1555 = vrot.slane %v1119, 1
    %v1556 = vrot.slane %v1122, 1
    %v1557 = vrot.slane %v1125, 1
    %v1558 = vrot.slane %v1128, 1
    %v1559 = vrot.slane %v1131, 1
    %v1560 = vrot.slane %v1134, 1
    %v1561 = vrot.slane %v1137, 1
    %v1562 = vrot.slane %v1140, 1
    %v1563 = vrot.slane %v1143, 1
    %v1564 = vrot.slane %v1146, 1
    %v1565 = vrot.slane %v1149, 1
    %v1566 = vrot.slane %v1152, 1
    %v1567 = vrot.slane %v1155, 1
    %v1568 = vrot.slane %v1158, 1
    %v1569 = vrot.slane %v1161, 1
    %v1570 = vrot.slane %v1164, 1
    %v1571 = vrot.slane %v1167, 1
    %v1572 = vrot.slane %v1075, 1
    %v1573 = vrot.slane %v1078, 1
    %v1574 = vrot.slane %v1081, 1
    %v1575 = vrot.slane %v1084, 1
    %v1576 = vrot.slane %v1087, 1
    %v1577 = vrot.slane %v1090, 1
    %v1578 = vrot.slane %v1093, 1
    %v1579 = vrot.slane %v1096, 1
    %v1580 = vrot.slane %v1099, 1
    %v1581 = vrot.slane %v1102, 1
    %v1582 = vrot.slane %v1105, 1
    %v1583 = vrot.slane %v1108, 1
    %v1584 = vrot.slane %v1111, 1
    %v1585 = vrot.slane %v1114, 1
    %v1586 = vrot.slane %v1117, 1
    %v1587 = vrot.slane %v1120, 1
    %v1588 = vrot.slane %v1123, 1
    %v1589 = vrot.slane %v1126, 1
    %v1590 = vrot.slane %v1129, 1
    %v1591 = vrot.slane %v1132, 1
    %v1592 = vrot.slane %v1135, 1
    %v1593 = vrot.slane %v1138, 1
    %v1594 = vrot.slane %v1141, 1
    %v1595 = vrot.slane %v1144, 1
    %v1596 = vrot.slane %v1147, 1
    %v1597 = vrot.slane %v1150, 1
    %v1598 = vrot.slane %v1153, 1
    %v1599 = vrot.slane %v1156, 1
    %v1600 = vrot.slane %v1159, 1
    %v1601 = vrot.slane %v1162, 1
    %v1602 = vrot.slane %v1165, 1
    %v1603 = vrot.slane %v1168, 1
    %v1604 = vrot.slane %v1076, 1
    %v1605 = vrot.slane %v1079, 1
    %v1606 = vrot.slane %v1082, 1
    %v1607 = vrot.slane %v1085, 1
    %v1608 = vrot.slane %v1088, 1
    %v1609 = vrot.slane %v1091, 1
    %v1610 = vrot.slane %v1094, 1
    %v1611 = vrot.slane %v1097, 1
    %v1612 = vrot.slane %v1100, 1
    %v1613 = vrot.slane %v1103, 1
    %v1614 = vrot.slane %v1106, 1
    %v1615 = vrot.slane %v1109, 1
    %v1616 = vrot.slane %v1112, 1
    %v1617 = vrot.slane %v1115, 1
    %v1618 = vrot.slane %v1118, 1
    %v1619 = vrot.slane %v1121, 1
    %v1620 = vrot.slane %v1124, 1
    %v1621 = vrot.slane %v1127, 1
    %v1622 = vrot.slane %v1130, 1
    %v1623 = vrot.slane %v1133, 1
    %v1624 = vrot.slane %v1136, 1
    %v1625 = vrot.slane %v1139, 1
    %v1626 = vrot.slane %v1142, 1
    %v1627 = vrot.slane %v1145, 1
    %v1628 = vrot.slane %v1148, 1
    %v1629 = vrot.slane %v1151, 1
    %v1630 = vrot.slane %v1154, 1
    %v1631 = vrot.slane %v1157, 1
    %v1632 = vrot.slane %v1160, 1
    %v1633 = vrot.slane %v1163, 1
    %v1634 = vrot.slane %v1166, 1
    %v1635 = vrot.slane %v1169, 1
    %vm1636 = vcmp.lt.s32.totalorder %v1267, 7
    %v1637 = vsel %vm1636, %v1572, %v1604
    %v1638 = vsel %vm1636, %v1573, %v1605
    %v1639 = vsel %vm1636, %v1574, %v1606
    %v1640 = vsel %vm1636, %v1575, %v1607
    %v1641 = vsel %vm1636, %v1576, %v1608
    %v1642 = vsel %vm1636, %v1577, %v1609
    %v1643 = vsel %vm1636, %v1578, %v1610
    %v1644 = vsel %vm1636, %v1579, %v1611
    %v1645 = vsel %vm1636, %v1580, %v1612
    %v1646 = vsel %vm1636, %v1581, %v1613
    %v1647 = vsel %vm1636, %v1582, %v1614
    %v1648 = vsel %vm1636, %v1583, %v1615
    %v1649 = vsel %vm1636, %v1584, %v1616
    %v1650 = vsel %vm1636, %v1585, %v1617
    %v1651 = vsel %vm1636, %v1586, %v1618
    %v1652 = vsel %vm1636, %v1587, %v1619
    %v1653 = vsel %vm1636, %v1588, %v1620
    %v1654 = vsel %vm1636, %v1589, %v1621
    %v1655 = vsel %vm1636, %v1590, %v1622
    %v1656 = vsel %vm1636, %v1591, %v1623
    %v1657 = vsel %vm1636, %v1592, %v1624
    %v1658 = vsel %vm1636, %v1593, %v1625
    %v1659 = vsel %vm1636, %v1594, %v1626
    %v1660 = vsel %vm1636, %v1595, %v1627
    %v1661 = vsel %vm1636, %v1596, %v1628
    %v1662 = vsel %vm1636, %v1597, %v1629
    %v1663 = vsel %vm1636, %v1598, %v1630
    %v1664 = vsel %vm1636, %v1599, %v1631
    %v1665 = vsel %vm1636, %v1600, %v1632
    %v1666 = vsel %vm1636, %v1601, %v1633
    %v1667 = vsel %vm1636, %v1602, %v1634
    %v1668 = vsel %vm1636, %v1603, %v1635
    %v1669 = vsel %vm1636, %v1604, %v1540
    %v1670 = vsel %vm1636, %v1605, %v1541
    %v1671 = vsel %vm1636, %v1606, %v1542
    %v1672 = vsel %vm1636, %v1607, %v1543
    %v1673 = vsel %vm1636, %v1608, %v1544
    %v1674 = vsel %vm1636, %v1609, %v1545
    %v1675 = vsel %vm1636, %v1610, %v1546
    %v1676 = vsel %vm1636, %v1611, %v1547
    %v1677 = vsel %vm1636, %v1612, %v1548
    %v1678 = vsel %vm1636, %v1613, %v1549
    %v1679 = vsel %vm1636, %v1614, %v1550
    %v1680 = vsel %vm1636, %v1615, %v1551
    %v1681 = vsel %vm1636, %v1616, %v1552
    %v1682 = vsel %vm1636, %v1617, %v1553
    %v1683 = vsel %vm1636, %v1618, %v1554
    %v1684 = vsel %vm1636, %v1619, %v1555
    %v1685 = vsel %vm1636, %v1620, %v1556
    %v1686 = vsel %vm1636, %v1621, %v1557
    %v1687 = vsel %vm1636, %v1622, %v1558
    %v1688 = vsel %vm1636, %v1623, %v1559
    %v1689 = vsel %vm1636, %v1624, %v1560
    %v1690 = vsel %vm1636, %v1625, %v1561
    %v1691 = vsel %vm1636, %v1626, %v1562
    %v1692 = vsel %vm1636, %v1627, %v1563
    %v1693 = vsel %vm1636, %v1628, %v1564
    %v1694 = vsel %vm1636, %v1629, %v1565
    %v1695 = vsel %vm1636, %v1630, %v1566
    %v1696 = vsel %vm1636, %v1631, %v1567
    %v1697 = vsel %vm1636, %v1632, %v1568
    %v1698 = vsel %vm1636, %v1633, %v1569
    %v1699 = vsel %vm1636, %v1634, %v1570
    %v1700 = vsel %vm1636, %v1635, %v1571
    %s1701 = scalar_lea.vmem [#allocation8], 2
    %v1702 = vld [vmem:[%s1701] sm:$0x1]
    %v1704 = vlaneseq
    %v1705 = vshrl.u32 %v1704, 7
    %v1706 = vsub.s32 0, %v1705
    %v1707 = vrot.slane %v1702, %v1706
    %v1709 = vmul.f32 %v1637, %v1707
    %v1710 = vmul.f32 %v1669, %v1707
    %v1711 = vmul.f32 %v1638, %v1707
    %v1712 = vmul.f32 %v1670, %v1707
    %v1713 = vmul.f32 %v1639, %v1707
    %v1714 = vmul.f32 %v1671, %v1707
    %v1715 = vmul.f32 %v1640, %v1707
    %v1716 = vmul.f32 %v1672, %v1707
    %v1717 = vmul.f32 %v1641, %v1707
    %v1718 = vmul.f32 %v1673, %v1707
    %v1719 = vmul.f32 %v1642, %v1707
    %v1720 = vmul.f32 %v1674, %v1707
    %v1721 = vmul.f32 %v1643, %v1707
    %v1722 = vmul.f32 %v1675, %v1707
    %v1723 = vmul.f32 %v1644, %v1707
    %v1724 = vmul.f32 %v1676, %v1707
    %v1725 = vmul.f32 %v1645, %v1707
    %v1726 = vmul.f32 %v1677, %v1707
    %v1727 = vmul.f32 %v1646, %v1707
    %v1728 = vmul.f32 %v1678, %v1707
    %v1729 = vmul.f32 %v1647, %v1707
    %v1730 = vmul.f32 %v1679, %v1707
    %v1731 = vmul.f32 %v1648, %v1707
    %v1732 = vmul.f32 %v1680, %v1707
    %v1733 = vmul.f32 %v1649, %v1707
    %v1734 = vmul.f32 %v1681, %v1707
    %v1735 = vmul.f32 %v1650, %v1707
    %v1736 = vmul.f32 %v1682, %v1707
    %v1737 = vmul.f32 %v1651, %v1707
    %v1738 = vmul.f32 %v1683, %v1707
    %v1739 = vmul.f32 %v1652, %v1707
    %v1740 = vmul.f32 %v1684, %v1707
    %v1741 = vmul.f32 %v1653, %v1707
    %v1742 = vmul.f32 %v1685, %v1707
    %v1743 = vmul.f32 %v1654, %v1707
    %v1744 = vmul.f32 %v1686, %v1707
    %v1745 = vmul.f32 %v1655, %v1707
    %v1746 = vmul.f32 %v1687, %v1707
    %v1747 = vmul.f32 %v1656, %v1707
    %v1748 = vmul.f32 %v1688, %v1707
    %v1749 = vmul.f32 %v1657, %v1707
    %v1750 = vmul.f32 %v1689, %v1707
    %v1751 = vmul.f32 %v1658, %v1707
    %v1752 = vmul.f32 %v1690, %v1707
    %v1753 = vmul.f32 %v1659, %v1707
    %v1754 = vmul.f32 %v1691, %v1707
    %v1755 = vmul.f32 %v1660, %v1707
    %v1756 = vmul.f32 %v1692, %v1707
    %v1757 = vmul.f32 %v1661, %v1707
    %v1758 = vmul.f32 %v1693, %v1707
    %v1759 = vmul.f32 %v1662, %v1707
    %v1760 = vmul.f32 %v1694, %v1707
    %v1761 = vmul.f32 %v1663, %v1707
    %v1762 = vmul.f32 %v1695, %v1707
    %v1763 = vmul.f32 %v1664, %v1707
    %v1764 = vmul.f32 %v1696, %v1707
    %v1765 = vmul.f32 %v1665, %v1707
    %v1766 = vmul.f32 %v1697, %v1707
    %v1767 = vmul.f32 %v1666, %v1707
    %v1768 = vmul.f32 %v1698, %v1707
    %v1769 = vmul.f32 %v1667, %v1707
    %v1770 = vmul.f32 %v1699, %v1707
    %v1771 = vmul.f32 %v1668, %v1707
    %v1772 = vmul.f32 %v1700, %v1707
    %v1773 = vadd.f32 %v1476, %v1709
    %v1774 = vadd.f32 %v1477, %v1710
    %v1775 = vadd.f32 %v1478, %v1711
    %v1776 = vadd.f32 %v1479, %v1712
    %v1777 = vadd.f32 %v1480, %v1713
    %v1778 = vadd.f32 %v1481, %v1714
    %v1779 = vadd.f32 %v1482, %v1715
    %v1780 = vadd.f32 %v1483, %v1716
    %v1781 = vadd.f32 %v1484, %v1717
    %v1782 = vadd.f32 %v1485, %v1718
    %v1783 = vadd.f32 %v1486, %v1719
    %v1784 = vadd.f32 %v1487, %v1720
    %v1785 = vadd.f32 %v1488, %v1721
    %v1786 = vadd.f32 %v1489, %v1722
    %v1787 = vadd.f32 %v1490, %v1723
    %v1788 = vadd.f32 %v1491, %v1724
    %v1789 = vadd.f32 %v1492, %v1725
    %v1790 = vadd.f32 %v1493, %v1726
    %v1791 = vadd.f32 %v1494, %v1727
    %v1792 = vadd.f32 %v1495, %v1728
    %v1793 = vadd.f32 %v1496, %v1729
    %v1794 = vadd.f32 %v1497, %v1730
    %v1795 = vadd.f32 %v1498, %v1731
    %v1796 = vadd.f32 %v1499, %v1732
    %v1797 = vadd.f32 %v1500, %v1733
    %v1798 = vadd.f32 %v1501, %v1734
    %v1799 = vadd.f32 %v1502, %v1735
    %v1800 = vadd.f32 %v1503, %v1736
    %v1801 = vadd.f32 %v1504, %v1737
    %v1802 = vadd.f32 %v1505, %v1738
    %v1803 = vadd.f32 %v1506, %v1739
    %v1804 = vadd.f32 %v1507, %v1740
    %v1805 = vadd.f32 %v1508, %v1741
    %v1806 = vadd.f32 %v1509, %v1742
    %v1807 = vadd.f32 %v1510, %v1743
    %v1808 = vadd.f32 %v1511, %v1744
    %v1809 = vadd.f32 %v1512, %v1745
    %v1810 = vadd.f32 %v1513, %v1746
    %v1811 = vadd.f32 %v1514, %v1747
    %v1812 = vadd.f32 %v1515, %v1748
    %v1813 = vadd.f32 %v1516, %v1749
    %v1814 = vadd.f32 %v1517, %v1750
    %v1815 = vadd.f32 %v1518, %v1751
    %v1816 = vadd.f32 %v1519, %v1752
    %v1817 = vadd.f32 %v1520, %v1753
    %v1818 = vadd.f32 %v1521, %v1754
    %v1819 = vadd.f32 %v1522, %v1755
    %v1820 = vadd.f32 %v1523, %v1756
    %v1821 = vadd.f32 %v1524, %v1757
    %v1822 = vadd.f32 %v1525, %v1758
    %v1823 = vadd.f32 %v1526, %v1759
    %v1824 = vadd.f32 %v1527, %v1760
    %v1825 = vadd.f32 %v1528, %v1761
    %v1826 = vadd.f32 %v1529, %v1762
    %v1827 = vadd.f32 %v1530, %v1763
    %v1828 = vadd.f32 %v1531, %v1764
    %v1829 = vadd.f32 %v1532, %v1765
    %v1830 = vadd.f32 %v1533, %v1766
    %v1831 = vadd.f32 %v1534, %v1767
    %v1832 = vadd.f32 %v1535, %v1768
    %v1833 = vadd.f32 %v1536, %v1769
    %v1834 = vadd.f32 %v1537, %v1770
    %v1835 = vadd.f32 %v1538, %v1771
    %v1836 = vadd.f32 %v1539, %v1772
    %v1837 = vld [vmem:[%s126] sm:$0xff]
    %v1838 = vld [vmem:[%s126 + $0x8] sm:$0xff]
    %v1839 = vld [vmem:[%s126 + $0x10] sm:$0xff]
    %v1840 = vld [vmem:[%s126 + $0x18] sm:$0xff]
    %v1841 = vld [vmem:[%s126 + $0x20] sm:$0xff]
    %v1842 = vld [vmem:[%s126 + $0x28] sm:$0xff]
    %v1843 = vld [vmem:[%s126 + $0x30] sm:$0xff]
    %v1844 = vld [vmem:[%s126 + $0x38] sm:$0xff]
    %v1845 = vld [vmem:[%s126 + $0x40] sm:$0xff]
    %v1846 = vld [vmem:[%s126 + $0x48] sm:$0xff]
    %v1847 = vld [vmem:[%s126 + $0x50] sm:$0xff]
    %v1848 = vld [vmem:[%s126 + $0x58] sm:$0xff]
    %v1849 = vld [vmem:[%s126 + $0x60] sm:$0xff]
    %v1850 = vld [vmem:[%s126 + $0x68] sm:$0xff]
    %v1851 = vld [vmem:[%s126 + $0x70] sm:$0xff]
    %v1852 = vld [vmem:[%s126 + $0x78] sm:$0xff]
    %v1853 = vld [vmem:[%s126 + $0x80] sm:$0xff]
    %v1854 = vld [vmem:[%s126 + $0x88] sm:$0xff]
    %v1855 = vld [vmem:[%s126 + $0x90] sm:$0xff]
    %v1856 = vld [vmem:[%s126 + $0x98] sm:$0xff]
    %v1857 = vld [vmem:[%s126 + $0xa0] sm:$0xff]
    %v1858 = vld [vmem:[%s126 + $0xa8] sm:$0xff]
    %v1859 = vld [vmem:[%s126 + $0xb0] sm:$0xff]
    %v1860 = vld [vmem:[%s126 + $0xb8] sm:$0xff]
    %v1861 = vld [vmem:[%s126 + $0xc0] sm:$0xff]
    %v1862 = vld [vmem:[%s126 + $0xc8] sm:$0xff]
    %v1863 = vld [vmem:[%s126 + $0xd0] sm:$0xff]
    %v1864 = vld [vmem:[%s126 + $0xd8] sm:$0xff]
    %v1865 = vld [vmem:[%s126 + $0xe0] sm:$0xff]
    %v1866 = vld [vmem:[%s126 + $0xe8] sm:$0xff]
    %v1867 = vld [vmem:[%s126 + $0xf0] sm:$0xff]
    %v1868 = vld [vmem:[%s126 + $0xf8] sm:$0xff]
    %v1869 = vld [vmem:[%s126 + $0x100] sm:$0xff]
    %v1870 = vld [vmem:[%s126 + $0x108] sm:$0xff]
    %v1871 = vld [vmem:[%s126 + $0x110] sm:$0xff]
    %v1872 = vld [vmem:[%s126 + $0x118] sm:$0xff]
    %v1873 = vld [vmem:[%s126 + $0x120] sm:$0xff]
    %v1874 = vld [vmem:[%s126 + $0x128] sm:$0xff]
    %v1875 = vld [vmem:[%s126 + $0x130] sm:$0xff]
    %v1876 = vld [vmem:[%s126 + $0x138] sm:$0xff]
    %v1877 = vld [vmem:[%s126 + $0x140] sm:$0xff]
    %v1878 = vld [vmem:[%s126 + $0x148] sm:$0xff]
    %v1879 = vld [vmem:[%s126 + $0x150] sm:$0xff]
    %v1880 = vld [vmem:[%s126 + $0x158] sm:$0xff]
    %v1881 = vld [vmem:[%s126 + $0x160] sm:$0xff]
    %v1882 = vld [vmem:[%s126 + $0x168] sm:$0xff]
    %v1883 = vld [vmem:[%s126 + $0x170] sm:$0xff]
    %v1884 = vld [vmem:[%s126 + $0x178] sm:$0xff]
    %v1885 = vld [vmem:[%s126 + $0x1b0] sm:$0xff]
    %v1886 = vld [vmem:[%s126 + $0x1b8] sm:$0xff]
    %v1887 = vld [vmem:[%s126 + $0x1c0] sm:$0xff]
    %v1888 = vld [vmem:[%s126 + $0x1c8] sm:$0xff]
    %v1889 = vld [vmem:[%s126 + $0x1d0] sm:$0xff]
    %v1890 = vld [vmem:[%s126 + $0x1d8] sm:$0xff]
    %v1891 = vld [vmem:[%s126 + $0x1e0] sm:$0xff]
    %v1892 = vld [vmem:[%s126 + $0x1e8] sm:$0xff]
    %v1893 = vld [vmem:[%s126 + $0x1f0] sm:$0xff]
    %v1894 = vld [vmem:[%s126 + $0x1f8] sm:$0xff]
    %v1895 = vld [vmem:[%s126 + $0x200] sm:$0xff]
    %v1896 = vld [vmem:[%s126 + $0x208] sm:$0xff]
    %v1897 = vld [vmem:[%s126 + $0x210] sm:$0xff]
    %v1898 = vld [vmem:[%s126 + $0x218] sm:$0xff]
    %v1899 = vld [vmem:[%s126 + $0x220] sm:$0xff]
    %v1900 = vld [vmem:[%s126 + $0x228] sm:$0xff]
    %v1901 = vld [vmem:[%s126 + $0x230] sm:$0xff]
    %v1902 = vld [vmem:[%s126 + $0x238] sm:$0xff]
    %v1903 = vld [vmem:[%s126 + $0x240] sm:$0xff]
    %v1904 = vld [vmem:[%s126 + $0x248] sm:$0xff]
    %v1905 = vld [vmem:[%s126 + $0x250] sm:$0xff]
    %v1906 = vld [vmem:[%s126 + $0x258] sm:$0xff]
    %v1907 = vld [vmem:[%s126 + $0x260] sm:$0xff]
    %v1908 = vld [vmem:[%s126 + $0x268] sm:$0xff]
    %v1909 = vld [vmem:[%s126 + $0x270] sm:$0xff]
    %v1910 = vld [vmem:[%s126 + $0x278] sm:$0xff]
    %v1911 = vld [vmem:[%s126 + $0x280] sm:$0xff]
    %v1912 = vld [vmem:[%s126 + $0x288] sm:$0xff]
    %v1913 = vld [vmem:[%s126 + $0x290] sm:$0xff]
    %v1914 = vld [vmem:[%s126 + $0x298] sm:$0xff]
    %v1915 = vld [vmem:[%s126 + $0x2a0] sm:$0xff]
    %v1916 = vld [vmem:[%s126 + $0x2a8] sm:$0xff]
    %v1917 = vld [vmem:[%s126 + $0x2b0] sm:$0xff]
    %v1918 = vld [vmem:[%s126 + $0x2b8] sm:$0xff]
    %v1919 = vld [vmem:[%s126 + $0x2c0] sm:$0xff]
    %v1920 = vld [vmem:[%s126 + $0x2c8] sm:$0xff]
    %v1921 = vld [vmem:[%s126 + $0x2d0] sm:$0xff]
    %v1922 = vld [vmem:[%s126 + $0x2d8] sm:$0xff]
    %v1923 = vld [vmem:[%s126 + $0x2e0] sm:$0xff]
    %v1924 = vld [vmem:[%s126 + $0x2e8] sm:$0xff]
    %v1925 = vld [vmem:[%s126 + $0x2f0] sm:$0xff]
    %v1926 = vld [vmem:[%s126 + $0x2f8] sm:$0xff]
    %v1927 = vld [vmem:[%s126 + $0x300] sm:$0xff]
    %v1928 = vld [vmem:[%s126 + $0x308] sm:$0xff]
    %v1929 = vld [vmem:[%s126 + $0x310] sm:$0xff]
    %v1930 = vld [vmem:[%s126 + $0x318] sm:$0xff]
    %v1931 = vld [vmem:[%s126 + $0x320] sm:$0xff]
    %v1932 = vld [vmem:[%s126 + $0x328] sm:$0xff]
    %v1933 = vrot.slane %v1837, 7
    %v1934 = vrot.slane %v1840, 7
    %v1935 = vrot.slane %v1843, 7
    %v1936 = vrot.slane %v1846, 7
    %v1937 = vrot.slane %v1849, 7
    %v1938 = vrot.slane %v1852, 7
    %v1939 = vrot.slane %v1855, 7
    %v1940 = vrot.slane %v1858, 7
    %v1941 = vrot.slane %v1861, 7
    %v1942 = vrot.slane %v1864, 7
    %v1943 = vrot.slane %v1867, 7
    %v1944 = vrot.slane %v1870, 7
    %v1945 = vrot.slane %v1873, 7
    %v1946 = vrot.slane %v1876, 7
    %v1947 = vrot.slane %v1879, 7
    %v1948 = vrot.slane %v1882, 7
    %v1949 = vrot.slane %v1885, 7
    %v1950 = vrot.slane %v1888, 7
    %v1951 = vrot.slane %v1891, 7
    %v1952 = vrot.slane %v1894, 7
    %v1953 = vrot.slane %v1897, 7
    %v1954 = vrot.slane %v1900, 7
    %v1955 = vrot.slane %v1903, 7
    %v1956 = vrot.slane %v1906, 7
    %v1957 = vrot.slane %v1909, 7
    %v1958 = vrot.slane %v1912, 7
    %v1959 = vrot.slane %v1915, 7
    %v1960 = vrot.slane %v1918, 7
    %v1961 = vrot.slane %v1921, 7
    %v1962 = vrot.slane %v1924, 7
    %v1963 = vrot.slane %v1927, 7
    %v1964 = vrot.slane %v1930, 7
    %v1965 = vrot.slane %v1838, 7
    %v1966 = vrot.slane %v1841, 7
    %v1967 = vrot.slane %v1844, 7
    %v1968 = vrot.slane %v1847, 7
    %v1969 = vrot.slane %v1850, 7
    %v1970 = vrot.slane %v1853, 7
    %v1971 = vrot.slane %v1856, 7
    %v1972 = vrot.slane %v1859, 7
    %v1973 = vrot.slane %v1862, 7
    %v1974 = vrot.slane %v1865, 7
    %v1975 = vrot.slane %v1868, 7
    %v1976 = vrot.slane %v1871, 7
    %v1977 = vrot.slane %v1874, 7
    %v1978 = vrot.slane %v1877, 7
    %v1979 = vrot.slane %v1880, 7
    %v1980 = vrot.slane %v1883, 7
    %v1981 = vrot.slane %v1886, 7
    %v1982 = vrot.slane %v1889, 7
    %v1983 = vrot.slane %v1892, 7
    %v1984 = vrot.slane %v1895, 7
    %v1985 = vrot.slane %v1898, 7
    %v1986 = vrot.slane %v1901, 7
    %v1987 = vrot.slane %v1904, 7
    %v1988 = vrot.slane %v1907, 7
    %v1989 = vrot.slane %v1910, 7
    %v1990 = vrot.slane %v1913, 7
    %v1991 = vrot.slane %v1916, 7
    %v1992 = vrot.slane %v1919, 7
    %v1993 = vrot.slane %v1922, 7
    %v1994 = vrot.slane %v1925, 7
    %v1995 = vrot.slane %v1928, 7
    %v1996 = vrot.slane %v1931, 7
    %v1997 = vrot.slane %v1839, 7
    %v1998 = vrot.slane %v1842, 7
    %v1999 = vrot.slane %v1845, 7
    %v2000 = vrot.slane %v1848, 7
    %v2001 = vrot.slane %v1851, 7
    %v2002 = vrot.slane %v1854, 7
    %v2003 = vrot.slane %v1857, 7
    %v2004 = vrot.slane %v1860, 7
    %v2005 = vrot.slane %v1863, 7
    %v2006 = vrot.slane %v1866, 7
    %v2007 = vrot.slane %v1869, 7
    %v2008 = vrot.slane %v1872, 7
    %v2009 = vrot.slane %v1875, 7
    %v2010 = vrot.slane %v1878, 7
    %v2011 = vrot.slane %v1881, 7
    %v2012 = vrot.slane %v1884, 7
    %v2013 = vrot.slane %v1887, 7
    %v2014 = vrot.slane %v1890, 7
    %v2015 = vrot.slane %v1893, 7
    %v2016 = vrot.slane %v1896, 7
    %v2017 = vrot.slane %v1899, 7
    %v2018 = vrot.slane %v1902, 7
    %v2019 = vrot.slane %v1905, 7
    %v2020 = vrot.slane %v1908, 7
    %v2021 = vrot.slane %v1911, 7
    %v2022 = vrot.slane %v1914, 7
    %v2023 = vrot.slane %v1917, 7
    %v2024 = vrot.slane %v1920, 7
    %v2025 = vrot.slane %v1923, 7
    %v2026 = vrot.slane %v1926, 7
    %v2027 = vrot.slane %v1929, 7
    %v2028 = vrot.slane %v1932, 7
    %v2029 = vsel %vm1268, %v1965, %v1997
    %v2030 = vsel %vm1268, %v1966, %v1998
    %v2031 = vsel %vm1268, %v1967, %v1999
    %v2032 = vsel %vm1268, %v1968, %v2000
    %v2033 = vsel %vm1268, %v1969, %v2001
    %v2034 = vsel %vm1268, %v1970, %v2002
    %v2035 = vsel %vm1268, %v1971, %v2003
    %v2036 = vsel %vm1268, %v1972, %v2004
    %v2037 = vsel %vm1268, %v1973, %v2005
    %v2038 = vsel %vm1268, %v1974, %v2006
    %v2039 = vsel %vm1268, %v1975, %v2007
    %v2040 = vsel %vm1268, %v1976, %v2008
    %v2041 = vsel %vm1268, %v1977, %v2009
    %v2042 = vsel %vm1268, %v1978, %v2010
    %v2043 = vsel %vm1268, %v1979, %v2011
    %v2044 = vsel %vm1268, %v1980, %v2012
    %v2045 = vsel %vm1268, %v1981, %v2013
    %v2046 = vsel %vm1268, %v1982, %v2014
    %v2047 = vsel %vm1268, %v1983, %v2015
    %v2048 = vsel %vm1268, %v1984, %v2016
    %v2049 = vsel %vm1268, %v1985, %v2017
    %v2050 = vsel %vm1268, %v1986, %v2018
    %v2051 = vsel %vm1268, %v1987, %v2019
    %v2052 = vsel %vm1268, %v1988, %v2020
    %v2053 = vsel %vm1268, %v1989, %v2021
    %v2054 = vsel %vm1268, %v1990, %v2022
    %v2055 = vsel %vm1268, %v1991, %v2023
    %v2056 = vsel %vm1268, %v1992, %v2024
    %v2057 = vsel %vm1268, %v1993, %v2025
    %v2058 = vsel %vm1268, %v1994, %v2026
    %v2059 = vsel %vm1268, %v1995, %v2027
    %v2060 = vsel %vm1268, %v1996, %v2028
    %v2061 = vsel %vm1268, %v1933, %v1965
    %v2062 = vsel %vm1268, %v1934, %v1966
    %v2063 = vsel %vm1268, %v1935, %v1967
    %v2064 = vsel %vm1268, %v1936, %v1968
    %v2065 = vsel %vm1268, %v1937, %v1969
    %v2066 = vsel %vm1268, %v1938, %v1970
    %v2067 = vsel %vm1268, %v1939, %v1971
    %v2068 = vsel %vm1268, %v1940, %v1972
    %v2069 = vsel %vm1268, %v1941, %v1973
    %v2070 = vsel %vm1268, %v1942, %v1974
    %v2071 = vsel %vm1268, %v1943, %v1975
    %v2072 = vsel %vm1268, %v1944, %v1976
    %v2073 = vsel %vm1268, %v1945, %v1977
    %v2074 = vsel %vm1268, %v1946, %v1978
    %v2075 = vsel %vm1268, %v1947, %v1979
    %v2076 = vsel %vm1268, %v1948, %v1980
    %v2077 = vsel %vm1268, %v1949, %v1981
    %v2078 = vsel %vm1268, %v1950, %v1982
    %v2079 = vsel %vm1268, %v1951, %v1983
    %v2080 = vsel %vm1268, %v1952, %v1984
    %v2081 = vsel %vm1268, %v1953, %v1985
    %v2082 = vsel %vm1268, %v1954, %v1986
    %v2083 = vsel %vm1268, %v1955, %v1987
    %v2084 = vsel %vm1268, %v1956, %v1988
    %v2085 = vsel %vm1268, %v1957, %v1989
    %v2086 = vsel %vm1268, %v1958, %v1990
    %v2087 = vsel %vm1268, %v1959, %v1991
    %v2088 = vsel %vm1268, %v1960, %v1992
    %v2089 = vsel %vm1268, %v1961, %v1993
    %v2090 = vsel %vm1268, %v1962, %v1994
    %v2091 = vsel %vm1268, %v1963, %v1995
    %v2092 = vsel %vm1268, %v1964, %v1996
    %s2093 = scalar_lea.vmem [#allocation8], 3
    %v2094 = vld [vmem:[%s2093] sm:$0x1]
    %v2096 = vlaneseq
    %v2097 = vshrl.u32 %v2096, 7
    %v2098 = vsub.s32 0, %v2097
    %v2099 = vrot.slane %v2094, %v2098
    %v2101 = vmul.f32 %v2061, %v2099
    %v2102 = vmul.f32 %v2029, %v2099
    %v2103 = vmul.f32 %v2062, %v2099
    %v2104 = vmul.f32 %v2030, %v2099
    %v2105 = vmul.f32 %v2063, %v2099
    %v2106 = vmul.f32 %v2031, %v2099
    %v2107 = vmul.f32 %v2064, %v2099
    %v2108 = vmul.f32 %v2032, %v2099
    %v2109 = vmul.f32 %v2065, %v2099
    %v2110 = vmul.f32 %v2033, %v2099
    %v2111 = vmul.f32 %v2066, %v2099
    %v2112 = vmul.f32 %v2034, %v2099
    %v2113 = vmul.f32 %v2067, %v2099
    %v2114 = vmul.f32 %v2035, %v2099
    %v2115 = vmul.f32 %v2068, %v2099
    %v2116 = vmul.f32 %v2036, %v2099
    %v2117 = vmul.f32 %v2069, %v2099
    %v2118 = vmul.f32 %v2037, %v2099
    %v2119 = vmul.f32 %v2070, %v2099
    %v2120 = vmul.f32 %v2038, %v2099
    %v2121 = vmul.f32 %v2071, %v2099
    %v2122 = vmul.f32 %v2039, %v2099
    %v2123 = vmul.f32 %v2072, %v2099
    %v2124 = vmul.f32 %v2040, %v2099
    %v2125 = vmul.f32 %v2073, %v2099
    %v2126 = vmul.f32 %v2041, %v2099
    %v2127 = vmul.f32 %v2074, %v2099
    %v2128 = vmul.f32 %v2042, %v2099
    %v2129 = vmul.f32 %v2075, %v2099
    %v2130 = vmul.f32 %v2043, %v2099
    %v2131 = vmul.f32 %v2076, %v2099
    %v2132 = vmul.f32 %v2044, %v2099
    %v2133 = vmul.f32 %v2077, %v2099
    %v2134 = vmul.f32 %v2045, %v2099
    %v2135 = vmul.f32 %v2078, %v2099
    %v2136 = vmul.f32 %v2046, %v2099
    %v2137 = vmul.f32 %v2079, %v2099
    %v2138 = vmul.f32 %v2047, %v2099
    %v2139 = vmul.f32 %v2080, %v2099
    %v2140 = vmul.f32 %v2048, %v2099
    %v2141 = vmul.f32 %v2081, %v2099
    %v2142 = vmul.f32 %v2049, %v2099
    %v2143 = vmul.f32 %v2082, %v2099
    %v2144 = vmul.f32 %v2050, %v2099
    %v2145 = vmul.f32 %v2083, %v2099
    %v2146 = vmul.f32 %v2051, %v2099
    %v2147 = vmul.f32 %v2084, %v2099
    %v2148 = vmul.f32 %v2052, %v2099
    %v2149 = vmul.f32 %v2085, %v2099
    %v2150 = vmul.f32 %v2053, %v2099
    %v2151 = vmul.f32 %v2086, %v2099
    %v2152 = vmul.f32 %v2054, %v2099
    %v2153 = vmul.f32 %v2087, %v2099
    %v2154 = vmul.f32 %v2055, %v2099
    %v2155 = vmul.f32 %v2088, %v2099
    %v2156 = vmul.f32 %v2056, %v2099
    %v2157 = vmul.f32 %v2089, %v2099
    %v2158 = vmul.f32 %v2057, %v2099
    %v2159 = vmul.f32 %v2090, %v2099
    %v2160 = vmul.f32 %v2058, %v2099
    %v2161 = vmul.f32 %v2091, %v2099
    %v2162 = vmul.f32 %v2059, %v2099
    %v2163 = vmul.f32 %v2092, %v2099
    %v2164 = vmul.f32 %v2060, %v2099
    %v2165 = vadd.f32 %v1773, %v2101
    %v2166 = vadd.f32 %v1774, %v2102
    %v2167 = vadd.f32 %v1775, %v2103
    %v2168 = vadd.f32 %v1776, %v2104
    %v2169 = vadd.f32 %v1777, %v2105
    %v2170 = vadd.f32 %v1778, %v2106
    %v2171 = vadd.f32 %v1779, %v2107
    %v2172 = vadd.f32 %v1780, %v2108
    %v2173 = vadd.f32 %v1781, %v2109
    %v2174 = vadd.f32 %v1782, %v2110
    %v2175 = vadd.f32 %v1783, %v2111
    %v2176 = vadd.f32 %v1784, %v2112
    %v2177 = vadd.f32 %v1785, %v2113
    %v2178 = vadd.f32 %v1786, %v2114
    %v2179 = vadd.f32 %v1787, %v2115
    %v2180 = vadd.f32 %v1788, %v2116
    %v2181 = vadd.f32 %v1789, %v2117
    %v2182 = vadd.f32 %v1790, %v2118
    %v2183 = vadd.f32 %v1791, %v2119
    %v2184 = vadd.f32 %v1792, %v2120
    %v2185 = vadd.f32 %v1793, %v2121
    %v2186 = vadd.f32 %v1794, %v2122
    %v2187 = vadd.f32 %v1795, %v2123
    %v2188 = vadd.f32 %v1796, %v2124
    %v2189 = vadd.f32 %v1797, %v2125
    %v2190 = vadd.f32 %v1798, %v2126
    %v2191 = vadd.f32 %v1799, %v2127
    %v2192 = vadd.f32 %v1800, %v2128
    %v2193 = vadd.f32 %v1801, %v2129
    %v2194 = vadd.f32 %v1802, %v2130
    %v2195 = vadd.f32 %v1803, %v2131
    %v2196 = vadd.f32 %v1804, %v2132
    %v2197 = vadd.f32 %v1805, %v2133
    %v2198 = vadd.f32 %v1806, %v2134
    %v2199 = vadd.f32 %v1807, %v2135
    %v2200 = vadd.f32 %v1808, %v2136
    %v2201 = vadd.f32 %v1809, %v2137
    %v2202 = vadd.f32 %v1810, %v2138
    %v2203 = vadd.f32 %v1811, %v2139
    %v2204 = vadd.f32 %v1812, %v2140
    %v2205 = vadd.f32 %v1813, %v2141
    %v2206 = vadd.f32 %v1814, %v2142
    %v2207 = vadd.f32 %v1815, %v2143
    %v2208 = vadd.f32 %v1816, %v2144
    %v2209 = vadd.f32 %v1817, %v2145
    %v2210 = vadd.f32 %v1818, %v2146
    %v2211 = vadd.f32 %v1819, %v2147
    %v2212 = vadd.f32 %v1820, %v2148
    %v2213 = vadd.f32 %v1821, %v2149
    %v2214 = vadd.f32 %v1822, %v2150
    %v2215 = vadd.f32 %v1823, %v2151
    %v2216 = vadd.f32 %v1824, %v2152
    %v2217 = vadd.f32 %v1825, %v2153
    %v2218 = vadd.f32 %v1826, %v2154
    %v2219 = vadd.f32 %v1827, %v2155
    %v2220 = vadd.f32 %v1828, %v2156
    %v2221 = vadd.f32 %v1829, %v2157
    %v2222 = vadd.f32 %v1830, %v2158
    %v2223 = vadd.f32 %v1831, %v2159
    %v2224 = vadd.f32 %v1832, %v2160
    %v2225 = vadd.f32 %v1833, %v2161
    %v2226 = vadd.f32 %v1834, %v2162
    %v2227 = vadd.f32 %v1835, %v2163
    %v2228 = vadd.f32 %v1836, %v2164
    %s2229 = scalar_lea.vmem [#allocation8], 4
    %v2230 = vld [vmem:[%s2229] sm:$0x1]
    %v2232 = vlaneseq
    %v2233 = vshrl.u32 %v2232, 7
    %v2234 = vsub.s32 0, %v2233
    %v2235 = vrot.slane %v2230, %v2234
    %v2237 = vmul.f32 %v1838, %v2235
    %v2238 = vmul.f32 %v1839, %v2235
    %v2239 = vmul.f32 %v1841, %v2235
    %v2240 = vmul.f32 %v1842, %v2235
    %v2241 = vmul.f32 %v1844, %v2235
    %v2242 = vmul.f32 %v1845, %v2235
    %v2243 = vmul.f32 %v1847, %v2235
    %v2244 = vmul.f32 %v1848, %v2235
    %v2245 = vmul.f32 %v1850, %v2235
    %v2246 = vmul.f32 %v1851, %v2235
    %v2247 = vmul.f32 %v1853, %v2235
    %v2248 = vmul.f32 %v1854, %v2235
    %v2249 = vmul.f32 %v1856, %v2235
    %v2250 = vmul.f32 %v1857, %v2235
    %v2251 = vmul.f32 %v1859, %v2235
    %v2252 = vmul.f32 %v1860, %v2235
    %v2253 = vmul.f32 %v1862, %v2235
    %v2254 = vmul.f32 %v1863, %v2235
    %v2255 = vmul.f32 %v1865, %v2235
    %v2256 = vmul.f32 %v1866, %v2235
    %v2257 = vmul.f32 %v1868, %v2235
    %v2258 = vmul.f32 %v1869, %v2235
    %v2259 = vmul.f32 %v1871, %v2235
    %v2260 = vmul.f32 %v1872, %v2235
    %v2261 = vmul.f32 %v1874, %v2235
    %v2262 = vmul.f32 %v1875, %v2235
    %v2263 = vmul.f32 %v1877, %v2235
    %v2264 = vmul.f32 %v1878, %v2235
    %v2265 = vmul.f32 %v1880, %v2235
    %v2266 = vmul.f32 %v1881, %v2235
    %v2267 = vmul.f32 %v1883, %v2235
    %v2268 = vmul.f32 %v1884, %v2235
    %v2269 = vmul.f32 %v1886, %v2235
    %v2270 = vmul.f32 %v1887, %v2235
    %v2271 = vmul.f32 %v1889, %v2235
    %v2272 = vmul.f32 %v1890, %v2235
    %v2273 = vmul.f32 %v1892, %v2235
    %v2274 = vmul.f32 %v1893, %v2235
    %v2275 = vmul.f32 %v1895, %v2235
    %v2276 = vmul.f32 %v1896, %v2235
    %v2277 = vmul.f32 %v1898, %v2235
    %v2278 = vmul.f32 %v1899, %v2235
    %v2279 = vmul.f32 %v1901, %v2235
    %v2280 = vmul.f32 %v1902, %v2235
    %v2281 = vmul.f32 %v1904, %v2235
    %v2282 = vmul.f32 %v1905, %v2235
    %v2283 = vmul.f32 %v1907, %v2235
    %v2284 = vmul.f32 %v1908, %v2235
    %v2285 = vmul.f32 %v1910, %v2235
    %v2286 = vmul.f32 %v1911, %v2235
    %v2287 = vmul.f32 %v1913, %v2235
    %v2288 = vmul.f32 %v1914, %v2235
    %v2289 = vmul.f32 %v1916, %v2235
    %v2290 = vmul.f32 %v1917, %v2235
    %v2291 = vmul.f32 %v1919, %v2235
    %v2292 = vmul.f32 %v1920, %v2235
    %v2293 = vmul.f32 %v1922, %v2235
    %v2294 = vmul.f32 %v1923, %v2235
    %v2295 = vmul.f32 %v1925, %v2235
    %v2296 = vmul.f32 %v1926, %v2235
    %v2297 = vmul.f32 %v1928, %v2235
    %v2298 = vmul.f32 %v1929, %v2235
    %v2299 = vmul.f32 %v1931, %v2235
    %v2300 = vmul.f32 %v1932, %v2235
    %v2301 = vadd.f32 %v2165, %v2237
    %v2302 = vadd.f32 %v2166, %v2238
    %v2303 = vadd.f32 %v2167, %v2239
    %v2304 = vadd.f32 %v2168, %v2240
    %v2305 = vadd.f32 %v2169, %v2241
    %v2306 = vadd.f32 %v2170, %v2242
    %v2307 = vadd.f32 %v2171, %v2243
    %v2308 = vadd.f32 %v2172, %v2244
    %v2309 = vadd.f32 %v2173, %v2245
    %v2310 = vadd.f32 %v2174, %v2246
    %v2311 = vadd.f32 %v2175, %v2247
    %v2312 = vadd.f32 %v2176, %v2248
    %v2313 = vadd.f32 %v2177, %v2249
    %v2314 = vadd.f32 %v2178, %v2250
    %v2315 = vadd.f32 %v2179, %v2251
    %v2316 = vadd.f32 %v2180, %v2252
    %v2317 = vadd.f32 %v2181, %v2253
    %v2318 = vadd.f32 %v2182, %v2254
    %v2319 = vadd.f32 %v2183, %v2255
    %v2320 = vadd.f32 %v2184, %v2256
    %v2321 = vadd.f32 %v2185, %v2257
    %v2322 = vadd.f32 %v2186, %v2258
    %v2323 = vadd.f32 %v2187, %v2259
    %v2324 = vadd.f32 %v2188, %v2260
    %v2325 = vadd.f32 %v2189, %v2261
    %v2326 = vadd.f32 %v2190, %v2262
    %v2327 = vadd.f32 %v2191, %v2263
    %v2328 = vadd.f32 %v2192, %v2264
    %v2329 = vadd.f32 %v2193, %v2265
    %v2330 = vadd.f32 %v2194, %v2266
    %v2331 = vadd.f32 %v2195, %v2267
    %v2332 = vadd.f32 %v2196, %v2268
    %v2333 = vadd.f32 %v2197, %v2269
    %v2334 = vadd.f32 %v2198, %v2270
    %v2335 = vadd.f32 %v2199, %v2271
    %v2336 = vadd.f32 %v2200, %v2272
    %v2337 = vadd.f32 %v2201, %v2273
    %v2338 = vadd.f32 %v2202, %v2274
    %v2339 = vadd.f32 %v2203, %v2275
    %v2340 = vadd.f32 %v2204, %v2276
    %v2341 = vadd.f32 %v2205, %v2277
    %v2342 = vadd.f32 %v2206, %v2278
    %v2343 = vadd.f32 %v2207, %v2279
    %v2344 = vadd.f32 %v2208, %v2280
    %v2345 = vadd.f32 %v2209, %v2281
    %v2346 = vadd.f32 %v2210, %v2282
    %v2347 = vadd.f32 %v2211, %v2283
    %v2348 = vadd.f32 %v2212, %v2284
    %v2349 = vadd.f32 %v2213, %v2285
    %v2350 = vadd.f32 %v2214, %v2286
    %v2351 = vadd.f32 %v2215, %v2287
    %v2352 = vadd.f32 %v2216, %v2288
    %v2353 = vadd.f32 %v2217, %v2289
    %v2354 = vadd.f32 %v2218, %v2290
    %v2355 = vadd.f32 %v2219, %v2291
    %v2356 = vadd.f32 %v2220, %v2292
    %v2357 = vadd.f32 %v2221, %v2293
    %v2358 = vadd.f32 %v2222, %v2294
    %v2359 = vadd.f32 %v2223, %v2295
    %v2360 = vadd.f32 %v2224, %v2296
    %v2361 = vadd.f32 %v2225, %v2297
    %v2362 = vadd.f32 %v2226, %v2298
    %v2363 = vadd.f32 %v2227, %v2299
    %v2364 = vadd.f32 %v2228, %v2300
    %v2365 = vrot.slane %v1837, 1
    %v2366 = vrot.slane %v1840, 1
    %v2367 = vrot.slane %v1843, 1
    %v2368 = vrot.slane %v1846, 1
    %v2369 = vrot.slane %v1849, 1
    %v2370 = vrot.slane %v1852, 1
    %v2371 = vrot.slane %v1855, 1
    %v2372 = vrot.slane %v1858, 1
    %v2373 = vrot.slane %v1861, 1
    %v2374 = vrot.slane %v1864, 1
    %v2375 = vrot.slane %v1867, 1
    %v2376 = vrot.slane %v1870, 1
    %v2377 = vrot.slane %v1873, 1
    %v2378 = vrot.slane %v1876, 1
    %v2379 = vrot.slane %v1879, 1
    %v2380 = vrot.slane %v1882, 1
    %v2381 = vrot.slane %v1885, 1
    %v2382 = vrot.slane %v1888, 1
    %v2383 = vrot.slane %v1891, 1
    %v2384 = vrot.slane %v1894, 1
    %v2385 = vrot.slane %v1897, 1
    %v2386 = vrot.slane %v1900, 1
    %v2387 = vrot.slane %v1903, 1
    %v2388 = vrot.slane %v1906, 1
    %v2389 = vrot.slane %v1909, 1
    %v2390 = vrot.slane %v1912, 1
    %v2391 = vrot.slane %v1915, 1
    %v2392 = vrot.slane %v1918, 1
    %v2393 = vrot.slane %v1921, 1
    %v2394 = vrot.slane %v1924, 1
    %v2395 = vrot.slane %v1927, 1
    %v2396 = vrot.slane %v1930, 1
    %v2397 = vrot.slane %v1838, 1
    %v2398 = vrot.slane %v1841, 1
    %v2399 = vrot.slane %v1844, 1
    %v2400 = vrot.slane %v1847, 1
    %v2401 = vrot.slane %v1850, 1
    %v2402 = vrot.slane %v1853, 1
    %v2403 = vrot.slane %v1856, 1
    %v2404 = vrot.slane %v1859, 1
    %v2405 = vrot.slane %v1862, 1
    %v2406 = vrot.slane %v1865, 1
    %v2407 = vrot.slane %v1868, 1
    %v2408 = vrot.slane %v1871, 1
    %v2409 = vrot.slane %v1874, 1
    %v2410 = vrot.slane %v1877, 1
    %v2411 = vrot.slane %v1880, 1
    %v2412 = vrot.slane %v1883, 1
    %v2413 = vrot.slane %v1886, 1
    %v2414 = vrot.slane %v1889, 1
    %v2415 = vrot.slane %v1892, 1
    %v2416 = vrot.slane %v1895, 1
    %v2417 = vrot.slane %v1898, 1
    %v2418 = vrot.slane %v1901, 1
    %v2419 = vrot.slane %v1904, 1
    %v2420 = vrot.slane %v1907, 1
    %v2421 = vrot.slane %v1910, 1
    %v2422 = vrot.slane %v1913, 1
    %v2423 = vrot.slane %v1916, 1
    %v2424 = vrot.slane %v1919, 1
    %v2425 = vrot.slane %v1922, 1
    %v2426 = vrot.slane %v1925, 1
    %v2427 = vrot.slane %v1928, 1
    %v2428 = vrot.slane %v1931, 1
    %v2429 = vrot.slane %v1839, 1
    %v2430 = vrot.slane %v1842, 1
    %v2431 = vrot.slane %v1845, 1
    %v2432 = vrot.slane %v1848, 1
    %v2433 = vrot.slane %v1851, 1
    %v2434 = vrot.slane %v1854, 1
    %v2435 = vrot.slane %v1857, 1
    %v2436 = vrot.slane %v1860, 1
    %v2437 = vrot.slane %v1863, 1
    %v2438 = vrot.slane %v1866, 1
    %v2439 = vrot.slane %v1869, 1
    %v2440 = vrot.slane %v1872, 1
    %v2441 = vrot.slane %v1875, 1
    %v2442 = vrot.slane %v1878, 1
    %v2443 = vrot.slane %v1881, 1
    %v2444 = vrot.slane %v1884, 1
    %v2445 = vrot.slane %v1887, 1
    %v2446 = vrot.slane %v1890, 1
    %v2447 = vrot.slane %v1893, 1
    %v2448 = vrot.slane %v1896, 1
    %v2449 = vrot.slane %v1899, 1
    %v2450 = vrot.slane %v1902, 1
    %v2451 = vrot.slane %v1905, 1
    %v2452 = vrot.slane %v1908, 1
    %v2453 = vrot.slane %v1911, 1
    %v2454 = vrot.slane %v1914, 1
    %v2455 = vrot.slane %v1917, 1
    %v2456 = vrot.slane %v1920, 1
    %v2457 = vrot.slane %v1923, 1
    %v2458 = vrot.slane %v1926, 1
    %v2459 = vrot.slane %v1929, 1
    %v2460 = vrot.slane %v1932, 1
    %v2461 = vsel %vm1636, %v2397, %v2429
    %v2462 = vsel %vm1636, %v2398, %v2430
    %v2463 = vsel %vm1636, %v2399, %v2431
    %v2464 = vsel %vm1636, %v2400, %v2432
    %v2465 = vsel %vm1636, %v2401, %v2433
    %v2466 = vsel %vm1636, %v2402, %v2434
    %v2467 = vsel %vm1636, %v2403, %v2435
    %v2468 = vsel %vm1636, %v2404, %v2436
    %v2469 = vsel %vm1636, %v2405, %v2437
    %v2470 = vsel %vm1636, %v2406, %v2438
    %v2471 = vsel %vm1636, %v2407, %v2439
    %v2472 = vsel %vm1636, %v2408, %v2440
    %v2473 = vsel %vm1636, %v2409, %v2441
    %v2474 = vsel %vm1636, %v2410, %v2442
    %v2475 = vsel %vm1636, %v2411, %v2443
    %v2476 = vsel %vm1636, %v2412, %v2444
    %v2477 = vsel %vm1636, %v2413, %v2445
    %v2478 = vsel %vm1636, %v2414, %v2446
    %v2479 = vsel %vm1636, %v2415, %v2447
    %v2480 = vsel %vm1636, %v2416, %v2448
    %v2481 = vsel %vm1636, %v2417, %v2449
    %v2482 = vsel %vm1636, %v2418, %v2450
    %v2483 = vsel %vm1636, %v2419, %v2451
    %v2484 = vsel %vm1636, %v2420, %v2452
    %v2485 = vsel %vm1636, %v2421, %v2453
    %v2486 = vsel %vm1636, %v2422, %v2454
    %v2487 = vsel %vm1636, %v2423, %v2455
    %v2488 = vsel %vm1636, %v2424, %v2456
    %v2489 = vsel %vm1636, %v2425, %v2457
    %v2490 = vsel %vm1636, %v2426, %v2458
    %v2491 = vsel %vm1636, %v2427, %v2459
    %v2492 = vsel %vm1636, %v2428, %v2460
    %v2493 = vsel %vm1636, %v2429, %v2365
    %v2494 = vsel %vm1636, %v2430, %v2366
    %v2495 = vsel %vm1636, %v2431, %v2367
    %v2496 = vsel %vm1636, %v2432, %v2368
    %v2497 = vsel %vm1636, %v2433, %v2369
    %v2498 = vsel %vm1636, %v2434, %v2370
    %v2499 = vsel %vm1636, %v2435, %v2371
    %v2500 = vsel %vm1636, %v2436, %v2372
    %v2501 = vsel %vm1636, %v2437, %v2373
    %v2502 = vsel %vm1636, %v2438, %v2374
    %v2503 = vsel %vm1636, %v2439, %v2375
    %v2504 = vsel %vm1636, %v2440, %v2376
    %v2505 = vsel %vm1636, %v2441, %v2377
    %v2506 = vsel %vm1636, %v2442, %v2378
    %v2507 = vsel %vm1636, %v2443, %v2379
    %v2508 = vsel %vm1636, %v2444, %v2380
    %v2509 = vsel %vm1636, %v2445, %v2381
    %v2510 = vsel %vm1636, %v2446, %v2382
    %v2511 = vsel %vm1636, %v2447, %v2383
    %v2512 = vsel %vm1636, %v2448, %v2384
    %v2513 = vsel %vm1636, %v2449, %v2385
    %v2514 = vsel %vm1636, %v2450, %v2386
    %v2515 = vsel %vm1636, %v2451, %v2387
    %v2516 = vsel %vm1636, %v2452, %v2388
    %v2517 = vsel %vm1636, %v2453, %v2389
    %v2518 = vsel %vm1636, %v2454, %v2390
    %v2519 = vsel %vm1636, %v2455, %v2391
    %v2520 = vsel %vm1636, %v2456, %v2392
    %v2521 = vsel %vm1636, %v2457, %v2393
    %v2522 = vsel %vm1636, %v2458, %v2394
    %v2523 = vsel %vm1636, %v2459, %v2395
    %v2524 = vsel %vm1636, %v2460, %v2396
    %s2525 = scalar_lea.vmem [#allocation8], 5
    %v2526 = vld [vmem:[%s2525] sm:$0x1]
    %v2528 = vlaneseq
    %v2529 = vshrl.u32 %v2528, 7
    %v2530 = vsub.s32 0, %v2529
    %v2531 = vrot.slane %v2526, %v2530
    %v2533 = vmul.f32 %v2461, %v2531
    %v2534 = vmul.f32 %v2493, %v2531
    %v2535 = vmul.f32 %v2462, %v2531
    %v2536 = vmul.f32 %v2494, %v2531
    %v2537 = vmul.f32 %v2463, %v2531
    %v2538 = vmul.f32 %v2495, %v2531
    %v2539 = vmul.f32 %v2464, %v2531
    %v2540 = vmul.f32 %v2496, %v2531
    %v2541 = vmul.f32 %v2465, %v2531
    %v2542 = vmul.f32 %v2497, %v2531
    %v2543 = vmul.f32 %v2466, %v2531
    %v2544 = vmul.f32 %v2498, %v2531
    %v2545 = vmul.f32 %v2467, %v2531
    %v2546 = vmul.f32 %v2499, %v2531
    %v2547 = vmul.f32 %v2468, %v2531
    %v2548 = vmul.f32 %v2500, %v2531
    %v2549 = vmul.f32 %v2469, %v2531
    %v2550 = vmul.f32 %v2501, %v2531
    %v2551 = vmul.f32 %v2470, %v2531
    %v2552 = vmul.f32 %v2502, %v2531
    %v2553 = vmul.f32 %v2471, %v2531
    %v2554 = vmul.f32 %v2503, %v2531
    %v2555 = vmul.f32 %v2472, %v2531
    %v2556 = vmul.f32 %v2504, %v2531
    %v2557 = vmul.f32 %v2473, %v2531
    %v2558 = vmul.f32 %v2505, %v2531
    %v2559 = vmul.f32 %v2474, %v2531
    %v2560 = vmul.f32 %v2506, %v2531
    %v2561 = vmul.f32 %v2475, %v2531
    %v2562 = vmul.f32 %v2507, %v2531
    %v2563 = vmul.f32 %v2476, %v2531
    %v2564 = vmul.f32 %v2508, %v2531
    %v2565 = vmul.f32 %v2477, %v2531
    %v2566 = vmul.f32 %v2509, %v2531
    %v2567 = vmul.f32 %v2478, %v2531
    %v2568 = vmul.f32 %v2510, %v2531
    %v2569 = vmul.f32 %v2479, %v2531
    %v2570 = vmul.f32 %v2511, %v2531
    %v2571 = vmul.f32 %v2480, %v2531
    %v2572 = vmul.f32 %v2512, %v2531
    %v2573 = vmul.f32 %v2481, %v2531
    %v2574 = vmul.f32 %v2513, %v2531
    %v2575 = vmul.f32 %v2482, %v2531
    %v2576 = vmul.f32 %v2514, %v2531
    %v2577 = vmul.f32 %v2483, %v2531
    %v2578 = vmul.f32 %v2515, %v2531
    %v2579 = vmul.f32 %v2484, %v2531
    %v2580 = vmul.f32 %v2516, %v2531
    %v2581 = vmul.f32 %v2485, %v2531
    %v2582 = vmul.f32 %v2517, %v2531
    %v2583 = vmul.f32 %v2486, %v2531
    %v2584 = vmul.f32 %v2518, %v2531
    %v2585 = vmul.f32 %v2487, %v2531
    %v2586 = vmul.f32 %v2519, %v2531
    %v2587 = vmul.f32 %v2488, %v2531
    %v2588 = vmul.f32 %v2520, %v2531
    %v2589 = vmul.f32 %v2489, %v2531
    %v2590 = vmul.f32 %v2521, %v2531
    %v2591 = vmul.f32 %v2490, %v2531
    %v2592 = vmul.f32 %v2522, %v2531
    %v2593 = vmul.f32 %v2491, %v2531
    %v2594 = vmul.f32 %v2523, %v2531
    %v2595 = vmul.f32 %v2492, %v2531
    %v2596 = vmul.f32 %v2524, %v2531
    %v2597 = vadd.f32 %v2301, %v2533
    %v2598 = vadd.f32 %v2302, %v2534
    %v2599 = vadd.f32 %v2303, %v2535
    %v2600 = vadd.f32 %v2304, %v2536
    %v2601 = vadd.f32 %v2305, %v2537
    %v2602 = vadd.f32 %v2306, %v2538
    %v2603 = vadd.f32 %v2307, %v2539
    %v2604 = vadd.f32 %v2308, %v2540
    %v2605 = vadd.f32 %v2309, %v2541
    %v2606 = vadd.f32 %v2310, %v2542
    %v2607 = vadd.f32 %v2311, %v2543
    %v2608 = vadd.f32 %v2312, %v2544
    %v2609 = vadd.f32 %v2313, %v2545
    %v2610 = vadd.f32 %v2314, %v2546
    %v2611 = vadd.f32 %v2315, %v2547
    %v2612 = vadd.f32 %v2316, %v2548
    %v2613 = vadd.f32 %v2317, %v2549
    %v2614 = vadd.f32 %v2318, %v2550
    %v2615 = vadd.f32 %v2319, %v2551
    %v2616 = vadd.f32 %v2320, %v2552
    %v2617 = vadd.f32 %v2321, %v2553
    %v2618 = vadd.f32 %v2322, %v2554
    %v2619 = vadd.f32 %v2323, %v2555
    %v2620 = vadd.f32 %v2324, %v2556
    %v2621 = vadd.f32 %v2325, %v2557
    %v2622 = vadd.f32 %v2326, %v2558
    %v2623 = vadd.f32 %v2327, %v2559
    %v2624 = vadd.f32 %v2328, %v2560
    %v2625 = vadd.f32 %v2329, %v2561
    %v2626 = vadd.f32 %v2330, %v2562
    %v2627 = vadd.f32 %v2331, %v2563
    %v2628 = vadd.f32 %v2332, %v2564
    %v2629 = vadd.f32 %v2333, %v2565
    %v2630 = vadd.f32 %v2334, %v2566
    %v2631 = vadd.f32 %v2335, %v2567
    %v2632 = vadd.f32 %v2336, %v2568
    %v2633 = vadd.f32 %v2337, %v2569
    %v2634 = vadd.f32 %v2338, %v2570
    %v2635 = vadd.f32 %v2339, %v2571
    %v2636 = vadd.f32 %v2340, %v2572
    %v2637 = vadd.f32 %v2341, %v2573
    %v2638 = vadd.f32 %v2342, %v2574
    %v2639 = vadd.f32 %v2343, %v2575
    %v2640 = vadd.f32 %v2344, %v2576
    %v2641 = vadd.f32 %v2345, %v2577
    %v2642 = vadd.f32 %v2346, %v2578
    %v2643 = vadd.f32 %v2347, %v2579
    %v2644 = vadd.f32 %v2348, %v2580
    %v2645 = vadd.f32 %v2349, %v2581
    %v2646 = vadd.f32 %v2350, %v2582
    %v2647 = vadd.f32 %v2351, %v2583
    %v2648 = vadd.f32 %v2352, %v2584
    %v2649 = vadd.f32 %v2353, %v2585
    %v2650 = vadd.f32 %v2354, %v2586
    %v2651 = vadd.f32 %v2355, %v2587
    %v2652 = vadd.f32 %v2356, %v2588
    %v2653 = vadd.f32 %v2357, %v2589
    %v2654 = vadd.f32 %v2358, %v2590
    %v2655 = vadd.f32 %v2359, %v2591
    %v2656 = vadd.f32 %v2360, %v2592
    %v2657 = vadd.f32 %v2361, %v2593
    %v2658 = vadd.f32 %v2362, %v2594
    %v2659 = vadd.f32 %v2363, %v2595
    %v2660 = vadd.f32 %v2364, %v2596
    %s2661 = scalar_lea.vmem [#allocation2], 48
    %v2662 = vld [vmem:[%s2661] sm:$0xff]
    %v2663 = vld [vmem:[%s2661 + $0x8] sm:$0xff]
    %v2664 = vld [vmem:[%s2661 + $0x10] sm:$0xff]
    %v2665 = vld [vmem:[%s2661 + $0x18] sm:$0xff]
    %v2666 = vld [vmem:[%s2661 + $0x20] sm:$0xff]
    %v2667 = vld [vmem:[%s2661 + $0x28] sm:$0xff]
    %v2668 = vld [vmem:[%s2661 + $0x30] sm:$0xff]
    %v2669 = vld [vmem:[%s2661 + $0x38] sm:$0xff]
    %v2670 = vld [vmem:[%s2661 + $0x40] sm:$0xff]
    %v2671 = vld [vmem:[%s2661 + $0x48] sm:$0xff]
    %v2672 = vld [vmem:[%s2661 + $0x50] sm:$0xff]
    %v2673 = vld [vmem:[%s2661 + $0x58] sm:$0xff]
    %v2674 = vld [vmem:[%s2661 + $0x60] sm:$0xff]
    %v2675 = vld [vmem:[%s2661 + $0x68] sm:$0xff]
    %v2676 = vld [vmem:[%s2661 + $0x70] sm:$0xff]
    %v2677 = vld [vmem:[%s2661 + $0x78] sm:$0xff]
    %v2678 = vld [vmem:[%s2661 + $0x80] sm:$0xff]
    %v2679 = vld [vmem:[%s2661 + $0x88] sm:$0xff]
    %v2680 = vld [vmem:[%s2661 + $0x90] sm:$0xff]
    %v2681 = vld [vmem:[%s2661 + $0x98] sm:$0xff]
    %v2682 = vld [vmem:[%s2661 + $0xa0] sm:$0xff]
    %v2683 = vld [vmem:[%s2661 + $0xa8] sm:$0xff]
    %v2684 = vld [vmem:[%s2661 + $0xb0] sm:$0xff]
    %v2685 = vld [vmem:[%s2661 + $0xb8] sm:$0xff]
    %v2686 = vld [vmem:[%s2661 + $0xc0] sm:$0xff]
    %v2687 = vld [vmem:[%s2661 + $0xc8] sm:$0xff]
    %v2688 = vld [vmem:[%s2661 + $0xd0] sm:$0xff]
    %v2689 = vld [vmem:[%s2661 + $0xd8] sm:$0xff]
    %v2690 = vld [vmem:[%s2661 + $0xe0] sm:$0xff]
    %v2691 = vld [vmem:[%s2661 + $0xe8] sm:$0xff]
    %v2692 = vld [vmem:[%s2661 + $0xf0] sm:$0xff]
    %v2693 = vld [vmem:[%s2661 + $0xf8] sm:$0xff]
    %v2694 = vld [vmem:[%s2661 + $0x100] sm:$0xff]
    %v2695 = vld [vmem:[%s2661 + $0x108] sm:$0xff]
    %v2696 = vld [vmem:[%s2661 + $0x110] sm:$0xff]
    %v2697 = vld [vmem:[%s2661 + $0x118] sm:$0xff]
    %v2698 = vld [vmem:[%s2661 + $0x120] sm:$0xff]
    %v2699 = vld [vmem:[%s2661 + $0x128] sm:$0xff]
    %v2700 = vld [vmem:[%s2661 + $0x130] sm:$0xff]
    %v2701 = vld [vmem:[%s2661 + $0x138] sm:$0xff]
    %v2702 = vld [vmem:[%s2661 + $0x140] sm:$0xff]
    %v2703 = vld [vmem:[%s2661 + $0x148] sm:$0xff]
    %v2704 = vld [vmem:[%s2661 + $0x150] sm:$0xff]
    %v2705 = vld [vmem:[%s2661 + $0x158] sm:$0xff]
    %v2706 = vld [vmem:[%s2661 + $0x160] sm:$0xff]
    %v2707 = vld [vmem:[%s2661 + $0x168] sm:$0xff]
    %v2708 = vld [vmem:[%s2661 + $0x170] sm:$0xff]
    %v2709 = vld [vmem:[%s2661 + $0x178] sm:$0xff]
    %v2710 = vld [vmem:[%s2661 + $0x1b0] sm:$0xff]
    %v2711 = vld [vmem:[%s2661 + $0x1b8] sm:$0xff]
    %v2712 = vld [vmem:[%s2661 + $0x1c0] sm:$0xff]
    %v2713 = vld [vmem:[%s2661 + $0x1c8] sm:$0xff]
    %v2714 = vld [vmem:[%s2661 + $0x1d0] sm:$0xff]
    %v2715 = vld [vmem:[%s2661 + $0x1d8] sm:$0xff]
    %v2716 = vld [vmem:[%s2661 + $0x1e0] sm:$0xff]
    %v2717 = vld [vmem:[%s2661 + $0x1e8] sm:$0xff]
    %v2718 = vld [vmem:[%s2661 + $0x1f0] sm:$0xff]
    %v2719 = vld [vmem:[%s2661 + $0x1f8] sm:$0xff]
    %v2720 = vld [vmem:[%s2661 + $0x200] sm:$0xff]
    %v2721 = vld [vmem:[%s2661 + $0x208] sm:$0xff]
    %v2722 = vld [vmem:[%s2661 + $0x210] sm:$0xff]
    %v2723 = vld [vmem:[%s2661 + $0x218] sm:$0xff]
    %v2724 = vld [vmem:[%s2661 + $0x220] sm:$0xff]
    %v2725 = vld [vmem:[%s2661 + $0x228] sm:$0xff]
    %v2726 = vld [vmem:[%s2661 + $0x230] sm:$0xff]
    %v2727 = vld [vmem:[%s2661 + $0x238] sm:$0xff]
    %v2728 = vld [vmem:[%s2661 + $0x240] sm:$0xff]
    %v2729 = vld [vmem:[%s2661 + $0x248] sm:$0xff]
    %v2730 = vld [vmem:[%s2661 + $0x250] sm:$0xff]
    %v2731 = vld [vmem:[%s2661 + $0x258] sm:$0xff]
    %v2732 = vld [vmem:[%s2661 + $0x260] sm:$0xff]
    %v2733 = vld [vmem:[%s2661 + $0x268] sm:$0xff]
    %v2734 = vld [vmem:[%s2661 + $0x270] sm:$0xff]
    %v2735 = vld [vmem:[%s2661 + $0x278] sm:$0xff]
    %v2736 = vld [vmem:[%s2661 + $0x280] sm:$0xff]
    %v2737 = vld [vmem:[%s2661 + $0x288] sm:$0xff]
    %v2738 = vld [vmem:[%s2661 + $0x290] sm:$0xff]
    %v2739 = vld [vmem:[%s2661 + $0x298] sm:$0xff]
    %v2740 = vld [vmem:[%s2661 + $0x2a0] sm:$0xff]
    %v2741 = vld [vmem:[%s2661 + $0x2a8] sm:$0xff]
    %v2742 = vld [vmem:[%s2661 + $0x2b0] sm:$0xff]
    %v2743 = vld [vmem:[%s2661 + $0x2b8] sm:$0xff]
    %v2744 = vld [vmem:[%s2661 + $0x2c0] sm:$0xff]
    %v2745 = vld [vmem:[%s2661 + $0x2c8] sm:$0xff]
    %v2746 = vld [vmem:[%s2661 + $0x2d0] sm:$0xff]
    %v2747 = vld [vmem:[%s2661 + $0x2d8] sm:$0xff]
    %v2748 = vld [vmem:[%s2661 + $0x2e0] sm:$0xff]
    %v2749 = vld [vmem:[%s2661 + $0x2e8] sm:$0xff]
    %v2750 = vld [vmem:[%s2661 + $0x2f0] sm:$0xff]
    %v2751 = vld [vmem:[%s2661 + $0x2f8] sm:$0xff]
    %v2752 = vld [vmem:[%s2661 + $0x300] sm:$0xff]
    %v2753 = vld [vmem:[%s2661 + $0x308] sm:$0xff]
    %v2754 = vld [vmem:[%s2661 + $0x310] sm:$0xff]
    %v2755 = vld [vmem:[%s2661 + $0x318] sm:$0xff]
    %v2756 = vld [vmem:[%s2661 + $0x320] sm:$0xff]
    %v2757 = vld [vmem:[%s2661 + $0x328] sm:$0xff]
    %v2758 = vrot.slane %v2662, 7
    %v2759 = vrot.slane %v2665, 7
    %v2760 = vrot.slane %v2668, 7
    %v2761 = vrot.slane %v2671, 7
    %v2762 = vrot.slane %v2674, 7
    %v2763 = vrot.slane %v2677, 7
    %v2764 = vrot.slane %v2680, 7
    %v2765 = vrot.slane %v2683, 7
    %v2766 = vrot.slane %v2686, 7
    %v2767 = vrot.slane %v2689, 7
    %v2768 = vrot.slane %v2692, 7
    %v2769 = vrot.slane %v2695, 7
    %v2770 = vrot.slane %v2698, 7
    %v2771 = vrot.slane %v2701, 7
    %v2772 = vrot.slane %v2704, 7
    %v2773 = vrot.slane %v2707, 7
    %v2774 = vrot.slane %v2710, 7
    %v2775 = vrot.slane %v2713, 7
    %v2776 = vrot.slane %v2716, 7
    %v2777 = vrot.slane %v2719, 7
    %v2778 = vrot.slane %v2722, 7
    %v2779 = vrot.slane %v2725, 7
    %v2780 = vrot.slane %v2728, 7
    %v2781 = vrot.slane %v2731, 7
    %v2782 = vrot.slane %v2734, 7
    %v2783 = vrot.slane %v2737, 7
    %v2784 = vrot.slane %v2740, 7
    %v2785 = vrot.slane %v2743, 7
    %v2786 = vrot.slane %v2746, 7
    %v2787 = vrot.slane %v2749, 7
    %v2788 = vrot.slane %v2752, 7
    %v2789 = vrot.slane %v2755, 7
    %v2790 = vrot.slane %v2663, 7
    %v2791 = vrot.slane %v2666, 7
    %v2792 = vrot.slane %v2669, 7
    %v2793 = vrot.slane %v2672, 7
    %v2794 = vrot.slane %v2675, 7
    %v2795 = vrot.slane %v2678, 7
    %v2796 = vrot.slane %v2681, 7
    %v2797 = vrot.slane %v2684, 7
    %v2798 = vrot.slane %v2687, 7
    %v2799 = vrot.slane %v2690, 7
    %v2800 = vrot.slane %v2693, 7
    %v2801 = vrot.slane %v2696, 7
    %v2802 = vrot.slane %v2699, 7
    %v2803 = vrot.slane %v2702, 7
    %v2804 = vrot.slane %v2705, 7
    %v2805 = vrot.slane %v2708, 7
    %v2806 = vrot.slane %v2711, 7
    %v2807 = vrot.slane %v2714, 7
    %v2808 = vrot.slane %v2717, 7
    %v2809 = vrot.slane %v2720, 7
    %v2810 = vrot.slane %v2723, 7
    %v2811 = vrot.slane %v2726, 7
    %v2812 = vrot.slane %v2729, 7
    %v2813 = vrot.slane %v2732, 7
    %v2814 = vrot.slane %v2735, 7
    %v2815 = vrot.slane %v2738, 7
    %v2816 = vrot.slane %v2741, 7
    %v2817 = vrot.slane %v2744, 7
    %v2818 = vrot.slane %v2747, 7
    %v2819 = vrot.slane %v2750, 7
    %v2820 = vrot.slane %v2753, 7
    %v2821 = vrot.slane %v2756, 7
    %v2822 = vrot.slane %v2664, 7
    %v2823 = vrot.slane %v2667, 7
    %v2824 = vrot.slane %v2670, 7
    %v2825 = vrot.slane %v2673, 7
    %v2826 = vrot.slane %v2676, 7
    %v2827 = vrot.slane %v2679, 7
    %v2828 = vrot.slane %v2682, 7
    %v2829 = vrot.slane %v2685, 7
    %v2830 = vrot.slane %v2688, 7
    %v2831 = vrot.slane %v2691, 7
    %v2832 = vrot.slane %v2694, 7
    %v2833 = vrot.slane %v2697, 7
    %v2834 = vrot.slane %v2700, 7
    %v2835 = vrot.slane %v2703, 7
    %v2836 = vrot.slane %v2706, 7
    %v2837 = vrot.slane %v2709, 7
    %v2838 = vrot.slane %v2712, 7
    %v2839 = vrot.slane %v2715, 7
    %v2840 = vrot.slane %v2718, 7
    %v2841 = vrot.slane %v2721, 7
    %v2842 = vrot.slane %v2724, 7
    %v2843 = vrot.slane %v2727, 7
    %v2844 = vrot.slane %v2730, 7
    %v2845 = vrot.slane %v2733, 7
    %v2846 = vrot.slane %v2736, 7
    %v2847 = vrot.slane %v2739, 7
    %v2848 = vrot.slane %v2742, 7
    %v2849 = vrot.slane %v2745, 7
    %v2850 = vrot.slane %v2748, 7
    %v2851 = vrot.slane %v2751, 7
    %v2852 = vrot.slane %v2754, 7
    %v2853 = vrot.slane %v2757, 7
    %v2854 = vsel %vm1268, %v2790, %v2822
    %v2855 = vsel %vm1268, %v2791, %v2823
    %v2856 = vsel %vm1268, %v2792, %v2824
    %v2857 = vsel %vm1268, %v2793, %v2825
    %v2858 = vsel %vm1268, %v2794, %v2826
    %v2859 = vsel %vm1268, %v2795, %v2827
    %v2860 = vsel %vm1268, %v2796, %v2828
    %v2861 = vsel %vm1268, %v2797, %v2829
    %v2862 = vsel %vm1268, %v2798, %v2830
    %v2863 = vsel %vm1268, %v2799, %v2831
    %v2864 = vsel %vm1268, %v2800, %v2832
    %v2865 = vsel %vm1268, %v2801, %v2833
    %v2866 = vsel %vm1268, %v2802, %v2834
    %v2867 = vsel %vm1268, %v2803, %v2835
    %v2868 = vsel %vm1268, %v2804, %v2836
    %v2869 = vsel %vm1268, %v2805, %v2837
    %v2870 = vsel %vm1268, %v2806, %v2838
    %v2871 = vsel %vm1268, %v2807, %v2839
    %v2872 = vsel %vm1268, %v2808, %v2840
    %v2873 = vsel %vm1268, %v2809, %v2841
    %v2874 = vsel %vm1268, %v2810, %v2842
    %v2875 = vsel %vm1268, %v2811, %v2843
    %v2876 = vsel %vm1268, %v2812, %v2844
    %v2877 = vsel %vm1268, %v2813, %v2845
    %v2878 = vsel %vm1268, %v2814, %v2846
    %v2879 = vsel %vm1268, %v2815, %v2847
    %v2880 = vsel %vm1268, %v2816, %v2848
    %v2881 = vsel %vm1268, %v2817, %v2849
    %v2882 = vsel %vm1268, %v2818, %v2850
    %v2883 = vsel %vm1268, %v2819, %v2851
    %v2884 = vsel %vm1268, %v2820, %v2852
    %v2885 = vsel %vm1268, %v2821, %v2853
    %v2886 = vsel %vm1268, %v2758, %v2790
    %v2887 = vsel %vm1268, %v2759, %v2791
    %v2888 = vsel %vm1268, %v2760, %v2792
    %v2889 = vsel %vm1268, %v2761, %v2793
    %v2890 = vsel %vm1268, %v2762, %v2794
    %v2891 = vsel %vm1268, %v2763, %v2795
    %v2892 = vsel %vm1268, %v2764, %v2796
    %v2893 = vsel %vm1268, %v2765, %v2797
    %v2894 = vsel %vm1268, %v2766, %v2798
    %v2895 = vsel %vm1268, %v2767, %v2799
    %v2896 = vsel %vm1268, %v2768, %v2800
    %v2897 = vsel %vm1268, %v2769, %v2801
    %v2898 = vsel %vm1268, %v2770, %v2802
    %v2899 = vsel %vm1268, %v2771, %v2803
    %v2900 = vsel %vm1268, %v2772, %v2804
    %v2901 = vsel %vm1268, %v2773, %v2805
    %v2902 = vsel %vm1268, %v2774, %v2806
    %v2903 = vsel %vm1268, %v2775, %v2807
    %v2904 = vsel %vm1268, %v2776, %v2808
    %v2905 = vsel %vm1268, %v2777, %v2809
    %v2906 = vsel %vm1268, %v2778, %v2810
    %v2907 = vsel %vm1268, %v2779, %v2811
    %v2908 = vsel %vm1268, %v2780, %v2812
    %v2909 = vsel %vm1268, %v2781, %v2813
    %v2910 = vsel %vm1268, %v2782, %v2814
    %v2911 = vsel %vm1268, %v2783, %v2815
    %v2912 = vsel %vm1268, %v2784, %v2816
    %v2913 = vsel %vm1268, %v2785, %v2817
    %v2914 = vsel %vm1268, %v2786, %v2818
    %v2915 = vsel %vm1268, %v2787, %v2819
    %v2916 = vsel %vm1268, %v2788, %v2820
    %v2917 = vsel %vm1268, %v2789, %v2821
    %s2918 = scalar_lea.vmem [#allocation8], 6
    %v2919 = vld [vmem:[%s2918] sm:$0x1]
    %v2921 = vlaneseq
    %v2922 = vshrl.u32 %v2921, 7
    %v2923 = vsub.s32 0, %v2922
    %v2924 = vrot.slane %v2919, %v2923
    %v2926 = vmul.f32 %v2886, %v2924
    %v2927 = vmul.f32 %v2854, %v2924
    %v2928 = vmul.f32 %v2887, %v2924
    %v2929 = vmul.f32 %v2855, %v2924
    %v2930 = vmul.f32 %v2888, %v2924
    %v2931 = vmul.f32 %v2856, %v2924
    %v2932 = vmul.f32 %v2889, %v2924
    %v2933 = vmul.f32 %v2857, %v2924
    %v2934 = vmul.f32 %v2890, %v2924
    %v2935 = vmul.f32 %v2858, %v2924
    %v2936 = vmul.f32 %v2891, %v2924
    %v2937 = vmul.f32 %v2859, %v2924
    %v2938 = vmul.f32 %v2892, %v2924
    %v2939 = vmul.f32 %v2860, %v2924
    %v2940 = vmul.f32 %v2893, %v2924
    %v2941 = vmul.f32 %v2861, %v2924
    %v2942 = vmul.f32 %v2894, %v2924
    %v2943 = vmul.f32 %v2862, %v2924
    %v2944 = vmul.f32 %v2895, %v2924
    %v2945 = vmul.f32 %v2863, %v2924
    %v2946 = vmul.f32 %v2896, %v2924
    %v2947 = vmul.f32 %v2864, %v2924
    %v2948 = vmul.f32 %v2897, %v2924
    %v2949 = vmul.f32 %v2865, %v2924
    %v2950 = vmul.f32 %v2898, %v2924
    %v2951 = vmul.f32 %v2866, %v2924
    %v2952 = vmul.f32 %v2899, %v2924
    %v2953 = vmul.f32 %v2867, %v2924
    %v2954 = vmul.f32 %v2900, %v2924
    %v2955 = vmul.f32 %v2868, %v2924
    %v2956 = vmul.f32 %v2901, %v2924
    %v2957 = vmul.f32 %v2869, %v2924
    %v2958 = vmul.f32 %v2902, %v2924
    %v2959 = vmul.f32 %v2870, %v2924
    %v2960 = vmul.f32 %v2903, %v2924
    %v2961 = vmul.f32 %v2871, %v2924
    %v2962 = vmul.f32 %v2904, %v2924
    %v2963 = vmul.f32 %v2872, %v2924
    %v2964 = vmul.f32 %v2905, %v2924
    %v2965 = vmul.f32 %v2873, %v2924
    %v2966 = vmul.f32 %v2906, %v2924
    %v2967 = vmul.f32 %v2874, %v2924
    %v2968 = vmul.f32 %v2907, %v2924
    %v2969 = vmul.f32 %v2875, %v2924
    %v2970 = vmul.f32 %v2908, %v2924
    %v2971 = vmul.f32 %v2876, %v2924
    %v2972 = vmul.f32 %v2909, %v2924
    %v2973 = vmul.f32 %v2877, %v2924
    %v2974 = vmul.f32 %v2910, %v2924
    %v2975 = vmul.f32 %v2878, %v2924
    %v2976 = vmul.f32 %v2911, %v2924
    %v2977 = vmul.f32 %v2879, %v2924
    %v2978 = vmul.f32 %v2912, %v2924
    %v2979 = vmul.f32 %v2880, %v2924
    %v2980 = vmul.f32 %v2913, %v2924
    %v2981 = vmul.f32 %v2881, %v2924
    %v2982 = vmul.f32 %v2914, %v2924
    %v2983 = vmul.f32 %v2882, %v2924
    %v2984 = vmul.f32 %v2915, %v2924
    %v2985 = vmul.f32 %v2883, %v2924
    %v2986 = vmul.f32 %v2916, %v2924
    %v2987 = vmul.f32 %v2884, %v2924
    %v2988 = vmul.f32 %v2917, %v2924
    %v2989 = vmul.f32 %v2885, %v2924
    %v2990 = vadd.f32 %v2597, %v2926
    %v2991 = vadd.f32 %v2598, %v2927
    %v2992 = vadd.f32 %v2599, %v2928
    %v2993 = vadd.f32 %v2600, %v2929
    %v2994 = vadd.f32 %v2601, %v2930
    %v2995 = vadd.f32 %v2602, %v2931
    %v2996 = vadd.f32 %v2603, %v2932
    %v2997 = vadd.f32 %v2604, %v2933
    %v2998 = vadd.f32 %v2605, %v2934
    %v2999 = vadd.f32 %v2606, %v2935
    %v3000 = vadd.f32 %v2607, %v2936
    %v3001 = vadd.f32 %v2608, %v2937
    %v3002 = vadd.f32 %v2609, %v2938
    %v3003 = vadd.f32 %v2610, %v2939
    %v3004 = vadd.f32 %v2611, %v2940
    %v3005 = vadd.f32 %v2612, %v2941
    %v3006 = vadd.f32 %v2613, %v2942
    %v3007 = vadd.f32 %v2614, %v2943
    %v3008 = vadd.f32 %v2615, %v2944
    %v3009 = vadd.f32 %v2616, %v2945
    %v3010 = vadd.f32 %v2617, %v2946
    %v3011 = vadd.f32 %v2618, %v2947
    %v3012 = vadd.f32 %v2619, %v2948
    %v3013 = vadd.f32 %v2620, %v2949
    %v3014 = vadd.f32 %v2621, %v2950
    %v3015 = vadd.f32 %v2622, %v2951
    %v3016 = vadd.f32 %v2623, %v2952
    %v3017 = vadd.f32 %v2624, %v2953
    %v3018 = vadd.f32 %v2625, %v2954
    %v3019 = vadd.f32 %v2626, %v2955
    %v3020 = vadd.f32 %v2627, %v2956
    %v3021 = vadd.f32 %v2628, %v2957
    %v3022 = vadd.f32 %v2629, %v2958
    %v3023 = vadd.f32 %v2630, %v2959
    %v3024 = vadd.f32 %v2631, %v2960
    %v3025 = vadd.f32 %v2632, %v2961
    %v3026 = vadd.f32 %v2633, %v2962
    %v3027 = vadd.f32 %v2634, %v2963
    %v3028 = vadd.f32 %v2635, %v2964
    %v3029 = vadd.f32 %v2636, %v2965
    %v3030 = vadd.f32 %v2637, %v2966
    %v3031 = vadd.f32 %v2638, %v2967
    %v3032 = vadd.f32 %v2639, %v2968
    %v3033 = vadd.f32 %v2640, %v2969
    %v3034 = vadd.f32 %v2641, %v2970
    %v3035 = vadd.f32 %v2642, %v2971
    %v3036 = vadd.f32 %v2643, %v2972
    %v3037 = vadd.f32 %v2644, %v2973
    %v3038 = vadd.f32 %v2645, %v2974
    %v3039 = vadd.f32 %v2646, %v2975
    %v3040 = vadd.f32 %v2647, %v2976
    %v3041 = vadd.f32 %v2648, %v2977
    %v3042 = vadd.f32 %v2649, %v2978
    %v3043 = vadd.f32 %v2650, %v2979
    %v3044 = vadd.f32 %v2651, %v2980
    %v3045 = vadd.f32 %v2652, %v2981
    %v3046 = vadd.f32 %v2653, %v2982
    %v3047 = vadd.f32 %v2654, %v2983
    %v3048 = vadd.f32 %v2655, %v2984
    %v3049 = vadd.f32 %v2656, %v2985
    %v3050 = vadd.f32 %v2657, %v2986
    %v3051 = vadd.f32 %v2658, %v2987
    %v3052 = vadd.f32 %v2659, %v2988
    %v3053 = vadd.f32 %v2660, %v2989
    %s3054 = scalar_lea.vmem [#allocation8], 7
    %v3055 = vld [vmem:[%s3054] sm:$0x1]
    %v3057 = vlaneseq
    %v3058 = vshrl.u32 %v3057, 7
    %v3059 = vsub.s32 0, %v3058
    %v3060 = vrot.slane %v3055, %v3059
    %v3062 = vmul.f32 %v2663, %v3060
    %v3063 = vmul.f32 %v2664, %v3060
    %v3064 = vmul.f32 %v2666, %v3060
    %v3065 = vmul.f32 %v2667, %v3060
    %v3066 = vmul.f32 %v2669, %v3060
    %v3067 = vmul.f32 %v2670, %v3060
    %v3068 = vmul.f32 %v2672, %v3060
    %v3069 = vmul.f32 %v2673, %v3060
    %v3070 = vmul.f32 %v2675, %v3060
    %v3071 = vmul.f32 %v2676, %v3060
    %v3072 = vmul.f32 %v2678, %v3060
    %v3073 = vmul.f32 %v2679, %v3060
    %v3074 = vmul.f32 %v2681, %v3060
    %v3075 = vmul.f32 %v2682, %v3060
    %v3076 = vmul.f32 %v2684, %v3060
    %v3077 = vmul.f32 %v2685, %v3060
    %v3078 = vmul.f32 %v2687, %v3060
    %v3079 = vmul.f32 %v2688, %v3060
    %v3080 = vmul.f32 %v2690, %v3060
    %v3081 = vmul.f32 %v2691, %v3060
    %v3082 = vmul.f32 %v2693, %v3060
    %v3083 = vmul.f32 %v2694, %v3060
    %v3084 = vmul.f32 %v2696, %v3060
    %v3085 = vmul.f32 %v2697, %v3060
    %v3086 = vmul.f32 %v2699, %v3060
    %v3087 = vmul.f32 %v2700, %v3060
    %v3088 = vmul.f32 %v2702, %v3060
    %v3089 = vmul.f32 %v2703, %v3060
    %v3090 = vmul.f32 %v2705, %v3060
    %v3091 = vmul.f32 %v2706, %v3060
    %v3092 = vmul.f32 %v2708, %v3060
    %v3093 = vmul.f32 %v2709, %v3060
    %v3094 = vmul.f32 %v2711, %v3060
    %v3095 = vmul.f32 %v2712, %v3060
    %v3096 = vmul.f32 %v2714, %v3060
    %v3097 = vmul.f32 %v2715, %v3060
    %v3098 = vmul.f32 %v2717, %v3060
    %v3099 = vmul.f32 %v2718, %v3060
    %v3100 = vmul.f32 %v2720, %v3060
    %v3101 = vmul.f32 %v2721, %v3060
    %v3102 = vmul.f32 %v2723, %v3060
    %v3103 = vmul.f32 %v2724, %v3060
    %v3104 = vmul.f32 %v2726, %v3060
    %v3105 = vmul.f32 %v2727, %v3060
    %v3106 = vmul.f32 %v2729, %v3060
    %v3107 = vmul.f32 %v2730, %v3060
    %v3108 = vmul.f32 %v2732, %v3060
    %v3109 = vmul.f32 %v2733, %v3060
    %v3110 = vmul.f32 %v2735, %v3060
    %v3111 = vmul.f32 %v2736, %v3060
    %v3112 = vmul.f32 %v2738, %v3060
    %v3113 = vmul.f32 %v2739, %v3060
    %v3114 = vmul.f32 %v2741, %v3060
    %v3115 = vmul.f32 %v2742, %v3060
    %v3116 = vmul.f32 %v2744, %v3060
    %v3117 = vmul.f32 %v2745, %v3060
    %v3118 = vmul.f32 %v2747, %v3060
    %v3119 = vmul.f32 %v2748, %v3060
    %v3120 = vmul.f32 %v2750, %v3060
    %v3121 = vmul.f32 %v2751, %v3060
    %v3122 = vmul.f32 %v2753, %v3060
    %v3123 = vmul.f32 %v2754, %v3060
    %v3124 = vmul.f32 %v2756, %v3060
    %v3125 = vmul.f32 %v2757, %v3060
    %v3126 = vadd.f32 %v2990, %v3062
    %v3127 = vadd.f32 %v2991, %v3063
    %v3128 = vadd.f32 %v2992, %v3064
    %v3129 = vadd.f32 %v2993, %v3065
    %v3130 = vadd.f32 %v2994, %v3066
    %v3131 = vadd.f32 %v2995, %v3067
    %v3132 = vadd.f32 %v2996, %v3068
    %v3133 = vadd.f32 %v2997, %v3069
    %v3134 = vadd.f32 %v2998, %v3070
    %v3135 = vadd.f32 %v2999, %v3071
    %v3136 = vadd.f32 %v3000, %v3072
    %v3137 = vadd.f32 %v3001, %v3073
    %v3138 = vadd.f32 %v3002, %v3074
    %v3139 = vadd.f32 %v3003, %v3075
    %v3140 = vadd.f32 %v3004, %v3076
    %v3141 = vadd.f32 %v3005, %v3077
    %v3142 = vadd.f32 %v3006, %v3078
    %v3143 = vadd.f32 %v3007, %v3079
    %v3144 = vadd.f32 %v3008, %v3080
    %v3145 = vadd.f32 %v3009, %v3081
    %v3146 = vadd.f32 %v3010, %v3082
    %v3147 = vadd.f32 %v3011, %v3083
    %v3148 = vadd.f32 %v3012, %v3084
    %v3149 = vadd.f32 %v3013, %v3085
    %v3150 = vadd.f32 %v3014, %v3086
    %v3151 = vadd.f32 %v3015, %v3087
    %v3152 = vadd.f32 %v3016, %v3088
    %v3153 = vadd.f32 %v3017, %v3089
    %v3154 = vadd.f32 %v3018, %v3090
    %v3155 = vadd.f32 %v3019, %v3091
    %v3156 = vadd.f32 %v3020, %v3092
    %v3157 = vadd.f32 %v3021, %v3093
    %v3158 = vadd.f32 %v3022, %v3094
    %v3159 = vadd.f32 %v3023, %v3095
    %v3160 = vadd.f32 %v3024, %v3096
    %v3161 = vadd.f32 %v3025, %v3097
    %v3162 = vadd.f32 %v3026, %v3098
    %v3163 = vadd.f32 %v3027, %v3099
    %v3164 = vadd.f32 %v3028, %v3100
    %v3165 = vadd.f32 %v3029, %v3101
    %v3166 = vadd.f32 %v3030, %v3102
    %v3167 = vadd.f32 %v3031, %v3103
    %v3168 = vadd.f32 %v3032, %v3104
    %v3169 = vadd.f32 %v3033, %v3105
    %v3170 = vadd.f32 %v3034, %v3106
    %v3171 = vadd.f32 %v3035, %v3107
    %v3172 = vadd.f32 %v3036, %v3108
    %v3173 = vadd.f32 %v3037, %v3109
    %v3174 = vadd.f32 %v3038, %v3110
    %v3175 = vadd.f32 %v3039, %v3111
    %v3176 = vadd.f32 %v3040, %v3112
    %v3177 = vadd.f32 %v3041, %v3113
    %v3178 = vadd.f32 %v3042, %v3114
    %v3179 = vadd.f32 %v3043, %v3115
    %v3180 = vadd.f32 %v3044, %v3116
    %v3181 = vadd.f32 %v3045, %v3117
    %v3182 = vadd.f32 %v3046, %v3118
    %v3183 = vadd.f32 %v3047, %v3119
    %v3184 = vadd.f32 %v3048, %v3120
    %v3185 = vadd.f32 %v3049, %v3121
    %v3186 = vadd.f32 %v3050, %v3122
    %v3187 = vadd.f32 %v3051, %v3123
    %v3188 = vadd.f32 %v3052, %v3124
    %v3189 = vadd.f32 %v3053, %v3125
    %v3190 = vrot.slane %v2662, 1
    %v3191 = vrot.slane %v2665, 1
    %v3192 = vrot.slane %v2668, 1
    %v3193 = vrot.slane %v2671, 1
    %v3194 = vrot.slane %v2674, 1
    %v3195 = vrot.slane %v2677, 1
    %v3196 = vrot.slane %v2680, 1
    %v3197 = vrot.slane %v2683, 1
    %v3198 = vrot.slane %v2686, 1
    %v3199 = vrot.slane %v2689, 1
    %v3200 = vrot.slane %v2692, 1
    %v3201 = vrot.slane %v2695, 1
    %v3202 = vrot.slane %v2698, 1
    %v3203 = vrot.slane %v2701, 1
    %v3204 = vrot.slane %v2704, 1
    %v3205 = vrot.slane %v2707, 1
    %v3206 = vrot.slane %v2710, 1
    %v3207 = vrot.slane %v2713, 1
    %v3208 = vrot.slane %v2716, 1
    %v3209 = vrot.slane %v2719, 1
    %v3210 = vrot.slane %v2722, 1
    %v3211 = vrot.slane %v2725, 1
    %v3212 = vrot.slane %v2728, 1
    %v3213 = vrot.slane %v2731, 1
    %v3214 = vrot.slane %v2734, 1
    %v3215 = vrot.slane %v2737, 1
    %v3216 = vrot.slane %v2740, 1
    %v3217 = vrot.slane %v2743, 1
    %v3218 = vrot.slane %v2746, 1
    %v3219 = vrot.slane %v2749, 1
    %v3220 = vrot.slane %v2752, 1
    %v3221 = vrot.slane %v2755, 1
    %v3222 = vrot.slane %v2663, 1
    %v3223 = vrot.slane %v2666, 1
    %v3224 = vrot.slane %v2669, 1
    %v3225 = vrot.slane %v2672, 1
    %v3226 = vrot.slane %v2675, 1
    %v3227 = vrot.slane %v2678, 1
    %v3228 = vrot.slane %v2681, 1
    %v3229 = vrot.slane %v2684, 1
    %v3230 = vrot.slane %v2687, 1
    %v3231 = vrot.slane %v2690, 1
    %v3232 = vrot.slane %v2693, 1
    %v3233 = vrot.slane %v2696, 1
    %v3234 = vrot.slane %v2699, 1
    %v3235 = vrot.slane %v2702, 1
    %v3236 = vrot.slane %v2705, 1
    %v3237 = vrot.slane %v2708, 1
    %v3238 = vrot.slane %v2711, 1
    %v3239 = vrot.slane %v2714, 1
    %v3240 = vrot.slane %v2717, 1
    %v3241 = vrot.slane %v2720, 1
    %v3242 = vrot.slane %v2723, 1
    %v3243 = vrot.slane %v2726, 1
    %v3244 = vrot.slane %v2729, 1
    %v3245 = vrot.slane %v2732, 1
    %v3246 = vrot.slane %v2735, 1
    %v3247 = vrot.slane %v2738, 1
    %v3248 = vrot.slane %v2741, 1
    %v3249 = vrot.slane %v2744, 1
    %v3250 = vrot.slane %v2747, 1
    %v3251 = vrot.slane %v2750, 1
    %v3252 = vrot.slane %v2753, 1
    %v3253 = vrot.slane %v2756, 1
    %v3254 = vrot.slane %v2664, 1
    %v3255 = vrot.slane %v2667, 1
    %v3256 = vrot.slane %v2670, 1
    %v3257 = vrot.slane %v2673, 1
    %v3258 = vrot.slane %v2676, 1
    %v3259 = vrot.slane %v2679, 1
    %v3260 = vrot.slane %v2682, 1
    %v3261 = vrot.slane %v2685, 1
    %v3262 = vrot.slane %v2688, 1
    %v3263 = vrot.slane %v2691, 1
    %v3264 = vrot.slane %v2694, 1
    %v3265 = vrot.slane %v2697, 1
    %v3266 = vrot.slane %v2700, 1
    %v3267 = vrot.slane %v2703, 1
    %v3268 = vrot.slane %v2706, 1
    %v3269 = vrot.slane %v2709, 1
    %v3270 = vrot.slane %v2712, 1
    %v3271 = vrot.slane %v2715, 1
    %v3272 = vrot.slane %v2718, 1
    %v3273 = vrot.slane %v2721, 1
    %v3274 = vrot.slane %v2724, 1
    %v3275 = vrot.slane %v2727, 1
    %v3276 = vrot.slane %v2730, 1
    %v3277 = vrot.slane %v2733, 1
    %v3278 = vrot.slane %v2736, 1
    %v3279 = vrot.slane %v2739, 1
    %v3280 = vrot.slane %v2742, 1
    %v3281 = vrot.slane %v2745, 1
    %v3282 = vrot.slane %v2748, 1
    %v3283 = vrot.slane %v2751, 1
    %v3284 = vrot.slane %v2754, 1
    %v3285 = vrot.slane %v2757, 1
    %v3286 = vsel %vm1636, %v3222, %v3254
    %v3287 = vsel %vm1636, %v3223, %v3255
    %v3288 = vsel %vm1636, %v3224, %v3256
    %v3289 = vsel %vm1636, %v3225, %v3257
    %v3290 = vsel %vm1636, %v3226, %v3258
    %v3291 = vsel %vm1636, %v3227, %v3259
    %v3292 = vsel %vm1636, %v3228, %v3260
    %v3293 = vsel %vm1636, %v3229, %v3261
    %v3294 = vsel %vm1636, %v3230, %v3262
    %v3295 = vsel %vm1636, %v3231, %v3263
    %v3296 = vsel %vm1636, %v3232, %v3264
    %v3297 = vsel %vm1636, %v3233, %v3265
    %v3298 = vsel %vm1636, %v3234, %v3266
    %v3299 = vsel %vm1636, %v3235, %v3267
    %v3300 = vsel %vm1636, %v3236, %v3268
    %v3301 = vsel %vm1636, %v3237, %v3269
    %v3302 = vsel %vm1636, %v3238, %v3270
    %v3303 = vsel %vm1636, %v3239, %v3271
    %v3304 = vsel %vm1636, %v3240, %v3272
    %v3305 = vsel %vm1636, %v3241, %v3273
    %v3306 = vsel %vm1636, %v3242, %v3274
    %v3307 = vsel %vm1636, %v3243, %v3275
    %v3308 = vsel %vm1636, %v3244, %v3276
    %v3309 = vsel %vm1636, %v3245, %v3277
    %v3310 = vsel %vm1636, %v3246, %v3278
    %v3311 = vsel %vm1636, %v3247, %v3279
    %v3312 = vsel %vm1636, %v3248, %v3280
    %v3313 = vsel %vm1636, %v3249, %v3281
    %v3314 = vsel %vm1636, %v3250, %v3282
    %v3315 = vsel %vm1636, %v3251, %v3283
    %v3316 = vsel %vm1636, %v3252, %v3284
    %v3317 = vsel %vm1636, %v3253, %v3285
    %v3318 = vsel %vm1636, %v3254, %v3190
    %v3319 = vsel %vm1636, %v3255, %v3191
    %v3320 = vsel %vm1636, %v3256, %v3192
    %v3321 = vsel %vm1636, %v3257, %v3193
    %v3322 = vsel %vm1636, %v3258, %v3194
    %v3323 = vsel %vm1636, %v3259, %v3195
    %v3324 = vsel %vm1636, %v3260, %v3196
    %v3325 = vsel %vm1636, %v3261, %v3197
    %v3326 = vsel %vm1636, %v3262, %v3198
    %v3327 = vsel %vm1636, %v3263, %v3199
    %v3328 = vsel %vm1636, %v3264, %v3200
    %v3329 = vsel %vm1636, %v3265, %v3201
    %v3330 = vsel %vm1636, %v3266, %v3202
    %v3331 = vsel %vm1636, %v3267, %v3203
    %v3332 = vsel %vm1636, %v3268, %v3204
    %v3333 = vsel %vm1636, %v3269, %v3205
    %v3334 = vsel %vm1636, %v3270, %v3206
    %v3335 = vsel %vm1636, %v3271, %v3207
    %v3336 = vsel %vm1636, %v3272, %v3208
    %v3337 = vsel %vm1636, %v3273, %v3209
    %v3338 = vsel %vm1636, %v3274, %v3210
    %v3339 = vsel %vm1636, %v3275, %v3211
    %v3340 = vsel %vm1636, %v3276, %v3212
    %v3341 = vsel %vm1636, %v3277, %v3213
    %v3342 = vsel %vm1636, %v3278, %v3214
    %v3343 = vsel %vm1636, %v3279, %v3215
    %v3344 = vsel %vm1636, %v3280, %v3216
    %v3345 = vsel %vm1636, %v3281, %v3217
    %v3346 = vsel %vm1636, %v3282, %v3218
    %v3347 = vsel %vm1636, %v3283, %v3219
    %v3348 = vsel %vm1636, %v3284, %v3220
    %v3349 = vsel %vm1636, %v3285, %v3221
    %s3350 = scalar_lea.vmem [#allocation8], 8
    %v3351 = vld [vmem:[%s3350] sm:$0x1]
    %v3353 = vlaneseq
    %v3354 = vshrl.u32 %v3353, 7
    %v3355 = vsub.s32 0, %v3354
    %v3356 = vrot.slane %v3351, %v3355
    %v3358 = vmul.f32 %v3286, %v3356
    %v3359 = vmul.f32 %v3318, %v3356
    %v3360 = vmul.f32 %v3287, %v3356
    %v3361 = vmul.f32 %v3319, %v3356
    %v3362 = vmul.f32 %v3288, %v3356
    %v3363 = vmul.f32 %v3320, %v3356
    %v3364 = vmul.f32 %v3289, %v3356
    %v3365 = vmul.f32 %v3321, %v3356
    %v3366 = vmul.f32 %v3290, %v3356
    %v3367 = vmul.f32 %v3322, %v3356
    %v3368 = vmul.f32 %v3291, %v3356
    %v3369 = vmul.f32 %v3323, %v3356
    %v3370 = vmul.f32 %v3292, %v3356
    %v3371 = vmul.f32 %v3324, %v3356
    %v3372 = vmul.f32 %v3293, %v3356
    %v3373 = vmul.f32 %v3325, %v3356
    %v3374 = vmul.f32 %v3294, %v3356
    %v3375 = vmul.f32 %v3326, %v3356
    %v3376 = vmul.f32 %v3295, %v3356
    %v3377 = vmul.f32 %v3327, %v3356
    %v3378 = vmul.f32 %v3296, %v3356
    %v3379 = vmul.f32 %v3328, %v3356
    %v3380 = vmul.f32 %v3297, %v3356
    %v3381 = vmul.f32 %v3329, %v3356
    %v3382 = vmul.f32 %v3298, %v3356
    %v3383 = vmul.f32 %v3330, %v3356
    %v3384 = vmul.f32 %v3299, %v3356
    %v3385 = vmul.f32 %v3331, %v3356
    %v3386 = vmul.f32 %v3300, %v3356
    %v3387 = vmul.f32 %v3332, %v3356
    %v3388 = vmul.f32 %v3301, %v3356
    %v3389 = vmul.f32 %v3333, %v3356
    %v3390 = vmul.f32 %v3302, %v3356
    %v3391 = vmul.f32 %v3334, %v3356
    %v3392 = vmul.f32 %v3303, %v3356
    %v3393 = vmul.f32 %v3335, %v3356
    %v3394 = vmul.f32 %v3304, %v3356
    %v3395 = vmul.f32 %v3336, %v3356
    %v3396 = vmul.f32 %v3305, %v3356
    %v3397 = vmul.f32 %v3337, %v3356
    %v3398 = vmul.f32 %v3306, %v3356
    %v3399 = vmul.f32 %v3338, %v3356
    %v3400 = vmul.f32 %v3307, %v3356
    %v3401 = vmul.f32 %v3339, %v3356
    %v3402 = vmul.f32 %v3308, %v3356
    %v3403 = vmul.f32 %v3340, %v3356
    %v3404 = vmul.f32 %v3309, %v3356
    %v3405 = vmul.f32 %v3341, %v3356
    %v3406 = vmul.f32 %v3310, %v3356
    %v3407 = vmul.f32 %v3342, %v3356
    %v3408 = vmul.f32 %v3311, %v3356
    %v3409 = vmul.f32 %v3343, %v3356
    %v3410 = vmul.f32 %v3312, %v3356
    %v3411 = vmul.f32 %v3344, %v3356
    %v3412 = vmul.f32 %v3313, %v3356
    %v3413 = vmul.f32 %v3345, %v3356
    %v3414 = vmul.f32 %v3314, %v3356
    %v3415 = vmul.f32 %v3346, %v3356
    %v3416 = vmul.f32 %v3315, %v3356
    %v3417 = vmul.f32 %v3347, %v3356
    %v3418 = vmul.f32 %v3316, %v3356
    %v3419 = vmul.f32 %v3348, %v3356
    %v3420 = vmul.f32 %v3317, %v3356
    %v3421 = vmul.f32 %v3349, %v3356
    %v3422 = vadd.f32 %v3126, %v3358
    %v3423 = vadd.f32 %v3127, %v3359
    %v3424 = vadd.f32 %v3128, %v3360
    %v3425 = vadd.f32 %v3129, %v3361
    %v3426 = vadd.f32 %v3130, %v3362
    %v3427 = vadd.f32 %v3131, %v3363
    %v3428 = vadd.f32 %v3132, %v3364
    %v3429 = vadd.f32 %v3133, %v3365
    %v3430 = vadd.f32 %v3134, %v3366
    %v3431 = vadd.f32 %v3135, %v3367
    %v3432 = vadd.f32 %v3136, %v3368
    %v3433 = vadd.f32 %v3137, %v3369
    %v3434 = vadd.f32 %v3138, %v3370
    %v3435 = vadd.f32 %v3139, %v3371
    %v3436 = vadd.f32 %v3140, %v3372
    %v3437 = vadd.f32 %v3141, %v3373
    %v3438 = vadd.f32 %v3142, %v3374
    %v3439 = vadd.f32 %v3143, %v3375
    %v3440 = vadd.f32 %v3144, %v3376
    %v3441 = vadd.f32 %v3145, %v3377
    %v3442 = vadd.f32 %v3146, %v3378
    %v3443 = vadd.f32 %v3147, %v3379
    %v3444 = vadd.f32 %v3148, %v3380
    %v3445 = vadd.f32 %v3149, %v3381
    %v3446 = vadd.f32 %v3150, %v3382
    %v3447 = vadd.f32 %v3151, %v3383
    %v3448 = vadd.f32 %v3152, %v3384
    %v3449 = vadd.f32 %v3153, %v3385
    %v3450 = vadd.f32 %v3154, %v3386
    %v3451 = vadd.f32 %v3155, %v3387
    %v3452 = vadd.f32 %v3156, %v3388
    %v3453 = vadd.f32 %v3157, %v3389
    %v3454 = vadd.f32 %v3158, %v3390
    %v3455 = vadd.f32 %v3159, %v3391
    %v3456 = vadd.f32 %v3160, %v3392
    %v3457 = vadd.f32 %v3161, %v3393
    %v3458 = vadd.f32 %v3162, %v3394
    %v3459 = vadd.f32 %v3163, %v3395
    %v3460 = vadd.f32 %v3164, %v3396
    %v3461 = vadd.f32 %v3165, %v3397
    %v3462 = vadd.f32 %v3166, %v3398
    %v3463 = vadd.f32 %v3167, %v3399
    %v3464 = vadd.f32 %v3168, %v3400
    %v3465 = vadd.f32 %v3169, %v3401
    %v3466 = vadd.f32 %v3170, %v3402
    %v3467 = vadd.f32 %v3171, %v3403
    %v3468 = vadd.f32 %v3172, %v3404
    %v3469 = vadd.f32 %v3173, %v3405
    %v3470 = vadd.f32 %v3174, %v3406
    %v3471 = vadd.f32 %v3175, %v3407
    %v3472 = vadd.f32 %v3176, %v3408
    %v3473 = vadd.f32 %v3177, %v3409
    %v3474 = vadd.f32 %v3178, %v3410
    %v3475 = vadd.f32 %v3179, %v3411
    %v3476 = vadd.f32 %v3180, %v3412
    %v3477 = vadd.f32 %v3181, %v3413
    %v3478 = vadd.f32 %v3182, %v3414
    %v3479 = vadd.f32 %v3183, %v3415
    %v3480 = vadd.f32 %v3184, %v3416
    %v3481 = vadd.f32 %v3185, %v3417
    %v3482 = vadd.f32 %v3186, %v3418
    %v3483 = vadd.f32 %v3187, %v3419
    %v3484 = vadd.f32 %v3188, %v3420
    %v3485 = vadd.f32 %v3189, %v3421
    %v3486 = vld [vmem:[%s5] sm:$0x1]
    %v3488 = vlaneseq
    %v3489 = vshrl.u32 %v3488, 7
    %v3490 = vsub.s32 0, %v3489
    %v3491 = vrot.slane %v3486, %v3490
    %v3493 = vmul.f32 %v3422, %v3491
    %v3494 = vmul.f32 %v3423, %v3491
    %v3495 = vmul.f32 %v3424, %v3491
    %v3496 = vmul.f32 %v3425, %v3491
    %v3497 = vmul.f32 %v3426, %v3491
    %v3498 = vmul.f32 %v3427, %v3491
    %v3499 = vmul.f32 %v3428, %v3491
    %v3500 = vmul.f32 %v3429, %v3491
    %v3501 = vmul.f32 %v3430, %v3491
    %v3502 = vmul.f32 %v3431, %v3491
    %v3503 = vmul.f32 %v3432, %v3491
    %v3504 = vmul.f32 %v3433, %v3491
    %v3505 = vmul.f32 %v3434, %v3491
    %v3506 = vmul.f32 %v3435, %v3491
    %v3507 = vmul.f32 %v3436, %v3491
    %v3508 = vmul.f32 %v3437, %v3491
    %v3509 = vmul.f32 %v3438, %v3491
    %v3510 = vmul.f32 %v3439, %v3491
    %v3511 = vmul.f32 %v3440, %v3491
    %v3512 = vmul.f32 %v3441, %v3491
    %v3513 = vmul.f32 %v3442, %v3491
    %v3514 = vmul.f32 %v3443, %v3491
    %v3515 = vmul.f32 %v3444, %v3491
    %v3516 = vmul.f32 %v3445, %v3491
    %v3517 = vmul.f32 %v3446, %v3491
    %v3518 = vmul.f32 %v3447, %v3491
    %v3519 = vmul.f32 %v3448, %v3491
    %v3520 = vmul.f32 %v3449, %v3491
    %v3521 = vmul.f32 %v3450, %v3491
    %v3522 = vmul.f32 %v3451, %v3491
    %v3523 = vmul.f32 %v3452, %v3491
    %v3524 = vmul.f32 %v3453, %v3491
    %v3525 = vmul.f32 %v3454, %v3491
    %v3526 = vmul.f32 %v3455, %v3491
    %v3527 = vmul.f32 %v3456, %v3491
    %v3528 = vmul.f32 %v3457, %v3491
    %v3529 = vmul.f32 %v3458, %v3491
    %v3530 = vmul.f32 %v3459, %v3491
    %v3531 = vmul.f32 %v3460, %v3491
    %v3532 = vmul.f32 %v3461, %v3491
    %v3533 = vmul.f32 %v3462, %v3491
    %v3534 = vmul.f32 %v3463, %v3491
    %v3535 = vmul.f32 %v3464, %v3491
    %v3536 = vmul.f32 %v3465, %v3491
    %v3537 = vmul.f32 %v3466, %v3491
    %v3538 = vmul.f32 %v3467, %v3491
    %v3539 = vmul.f32 %v3468, %v3491
    %v3540 = vmul.f32 %v3469, %v3491
    %v3541 = vmul.f32 %v3470, %v3491
    %v3542 = vmul.f32 %v3471, %v3491
    %v3543 = vmul.f32 %v3472, %v3491
    %v3544 = vmul.f32 %v3473, %v3491
    %v3545 = vmul.f32 %v3474, %v3491
    %v3546 = vmul.f32 %v3475, %v3491
    %v3547 = vmul.f32 %v3476, %v3491
    %v3548 = vmul.f32 %v3477, %v3491
    %v3549 = vmul.f32 %v3478, %v3491
    %v3550 = vmul.f32 %v3479, %v3491
    %v3551 = vmul.f32 %v3480, %v3491
    %v3552 = vmul.f32 %v3481, %v3491
    %v3553 = vmul.f32 %v3482, %v3491
    %v3554 = vmul.f32 %v3483, %v3491
    %v3555 = vmul.f32 %v3484, %v3491
    %v3556 = vmul.f32 %v3485, %v3491
    %v3557 = vld [vmem:[%s6] sm:$0x1]
    %v3559 = vlaneseq
    %v3560 = vshrl.u32 %v3559, 7
    %v3561 = vsub.s32 0, %v3560
    %v3562 = vrot.slane %v3557, %v3561
    %v3564 = vadd.f32 %v3493, %v3562
    %v3565 = vadd.f32 %v3494, %v3562
    %v3566 = vadd.f32 %v3495, %v3562
    %v3567 = vadd.f32 %v3496, %v3562
    %v3568 = vadd.f32 %v3497, %v3562
    %v3569 = vadd.f32 %v3498, %v3562
    %v3570 = vadd.f32 %v3499, %v3562
    %v3571 = vadd.f32 %v3500, %v3562
    %v3572 = vadd.f32 %v3501, %v3562
    %v3573 = vadd.f32 %v3502, %v3562
    %v3574 = vadd.f32 %v3503, %v3562
    %v3575 = vadd.f32 %v3504, %v3562
    %v3576 = vadd.f32 %v3505, %v3562
    %v3577 = vadd.f32 %v3506, %v3562
    %v3578 = vadd.f32 %v3507, %v3562
    %v3579 = vadd.f32 %v3508, %v3562
    %v3580 = vadd.f32 %v3509, %v3562
    %v3581 = vadd.f32 %v3510, %v3562
    %v3582 = vadd.f32 %v3511, %v3562
    %v3583 = vadd.f32 %v3512, %v3562
    %v3584 = vadd.f32 %v3513, %v3562
    %v3585 = vadd.f32 %v3514, %v3562
    %v3586 = vadd.f32 %v3515, %v3562
    %v3587 = vadd.f32 %v3516, %v3562
    %v3588 = vadd.f32 %v3517, %v3562
    %v3589 = vadd.f32 %v3518, %v3562
    %v3590 = vadd.f32 %v3519, %v3562
    %v3591 = vadd.f32 %v3520, %v3562
    %v3592 = vadd.f32 %v3521, %v3562
    %v3593 = vadd.f32 %v3522, %v3562
    %v3594 = vadd.f32 %v3523, %v3562
    %v3595 = vadd.f32 %v3524, %v3562
    %v3596 = vadd.f32 %v3525, %v3562
    %v3597 = vadd.f32 %v3526, %v3562
    %v3598 = vadd.f32 %v3527, %v3562
    %v3599 = vadd.f32 %v3528, %v3562
    %v3600 = vadd.f32 %v3529, %v3562
    %v3601 = vadd.f32 %v3530, %v3562
    %v3602 = vadd.f32 %v3531, %v3562
    %v3603 = vadd.f32 %v3532, %v3562
    %v3604 = vadd.f32 %v3533, %v3562
    %v3605 = vadd.f32 %v3534, %v3562
    %v3606 = vadd.f32 %v3535, %v3562
    %v3607 = vadd.f32 %v3536, %v3562
    %v3608 = vadd.f32 %v3537, %v3562
    %v3609 = vadd.f32 %v3538, %v3562
    %v3610 = vadd.f32 %v3539, %v3562
    %v3611 = vadd.f32 %v3540, %v3562
    %v3612 = vadd.f32 %v3541, %v3562
    %v3613 = vadd.f32 %v3542, %v3562
    %v3614 = vadd.f32 %v3543, %v3562
    %v3615 = vadd.f32 %v3544, %v3562
    %v3616 = vadd.f32 %v3545, %v3562
    %v3617 = vadd.f32 %v3546, %v3562
    %v3618 = vadd.f32 %v3547, %v3562
    %v3619 = vadd.f32 %v3548, %v3562
    %v3620 = vadd.f32 %v3549, %v3562
    %v3621 = vadd.f32 %v3550, %v3562
    %v3622 = vadd.f32 %v3551, %v3562
    %v3623 = vadd.f32 %v3552, %v3562
    %v3624 = vadd.f32 %v3553, %v3562
    %v3625 = vadd.f32 %v3554, %v3562
    %v3626 = vadd.f32 %v3555, %v3562
    %v3627 = vadd.f32 %v3556, %v3562
    %v3628 = vld [vmem:[#allocation9] sm:$0xff]
    %v3629 = vld [vmem:[#allocation9 + $0x8] sm:$0xff]
    %v3630 = vld [vmem:[#allocation9 + $0x10] sm:$0xff]
    %v3631 = vld [vmem:[#allocation9 + $0x18] sm:$0xff]
    %v3632 = vld [vmem:[#allocation9 + $0x20] sm:$0xff]
    %v3633 = vld [vmem:[#allocation9 + $0x28] sm:$0xff]
    %v3634 = vld [vmem:[#allocation9 + $0x30] sm:$0xff]
    %v3635 = vld [vmem:[#allocation9 + $0x38] sm:$0xff]
    %v3636 = vld [vmem:[#allocation9 + $0x40] sm:$0xff]
    %v3637 = vld [vmem:[#allocation9 + $0x48] sm:$0xff]
    %v3638 = vld [vmem:[#allocation9 + $0x50] sm:$0xff]
    %v3639 = vld [vmem:[#allocation9 + $0x58] sm:$0xff]
    %v3640 = vld [vmem:[#allocation9 + $0x60] sm:$0xff]
    %v3641 = vld [vmem:[#allocation9 + $0x68] sm:$0xff]
    %v3642 = vld [vmem:[#allocation9 + $0x70] sm:$0xff]
    %v3643 = vld [vmem:[#allocation9 + $0x78] sm:$0xff]
    %3644 = vmatprep.subr.mxu0 0.0
    %3645 = vmatpush1.msra.mxu0 %v3643
    %3646 = vmatprep.subr.mxu0 0.0
    %3647 = vmatpush1.msra.mxu0 %v3642
    %3648 = vmatprep.subr.mxu0 0.0
    %3649 = vmatpush1.msra.mxu0 %v3641
    %3650 = vmatprep.subr.mxu0 0.0
    %3651 = vmatpush1.msra.mxu0 %v3640
    %3652 = vmatprep.subr.mxu0 0.0
    %3653 = vmatpush1.msra.mxu0 %v3639
    %3654 = vmatprep.subr.mxu0 0.0
    %3655 = vmatpush1.msra.mxu0 %v3638
    %3656 = vmatprep.subr.mxu0 0.0
    %3657 = vmatpush1.msra.mxu0 %v3637
    %3658 = vmatprep.subr.mxu0 0.0
    %3659 = vmatpush1.msra.mxu0 %v3636
    %3660 = vmatprep.subr.mxu0 0.0
    %3661 = vmatpush1.msra.mxu0 %v3635
    %3662 = vmatprep.subr.mxu0 0.0
    %3663 = vmatpush1.msra.mxu0 %v3634
    %3664 = vmatprep.subr.mxu0 0.0
    %3665 = vmatpush1.msra.mxu0 %v3633
    %3666 = vmatprep.subr.mxu0 0.0
    %3667 = vmatpush1.msra.mxu0 %v3632
    %3668 = vmatprep.subr.mxu0 0.0
    %3669 = vmatpush1.msra.mxu0 %v3631
    %3670 = vmatprep.subr.mxu0 0.0
    %3671 = vmatpush1.msra.mxu0 %v3630
    %3672 = vmatprep.subr.mxu0 0.0
    %3673 = vmatpush1.msra.mxu0 %v3629
    %3674 = vmatprep.subr.mxu0 0.0
    %3675 = vmatpush1.msra.mxu0 %v3628
    %3676 = vmatprep.subr.mxu0 0.0
    %3677 = vmatpush2.msra.mxu0 0.0
    %3678 = vmatprep.subr.mxu0 0.0
    %3679 = vmatpush2.msra.mxu0 0.0
    %3680 = vmatprep.subr.mxu0 0.0
    %3681 = vmatpush2.msra.mxu0 0.0
    %3682 = vmatprep.subr.mxu0 0.0
    %3683 = vmatpush2.msra.mxu0 0.0
    %3684 = vmatprep.subr.mxu0 0.0
    %3685 = vmatpush2.msra.mxu0 0.0
    %3686 = vmatprep.subr.mxu0 0.0
    %3687 = vmatpush2.msra.mxu0 0.0
    %3688 = vmatprep.subr.mxu0 0.0
    %3689 = vmatpush2.msra.mxu0 0.0
    %3690 = vmatprep.subr.mxu0 0.0
    %3691 = vmatpush2.msra.mxu0 0.0
    %3692 = vmatprep.subr.mxu0 0.0
    %3693 = vmatpush2.msra.mxu0 0.0
    %3694 = vmatprep.subr.mxu0 0.0
    %3695 = vmatpush2.msra.mxu0 0.0
    %3696 = vmatprep.subr.mxu0 0.0
    %3697 = vmatpush2.msra.mxu0 0.0
    %3698 = vmatprep.subr.mxu0 0.0
    %3699 = vmatpush2.msra.mxu0 0.0
    %3700 = vmatprep.subr.mxu0 0.0
    %3701 = vmatpush2.msra.mxu0 0.0
    %3702 = vmatprep.subr.mxu0 0.0
    %3703 = vmatpush2.msra.mxu0 0.0
    %3704 = vmatprep.subr.mxu0 0.0
    %3705 = vmatpush2.msra.mxu0 0.0
    %3706 = vmatprep.subr.mxu0 0.0
    %3707 = vmatpush2.msra.mxu0 0.0
    %3708 = vmatprep.mubr.f32.mxu0 0.0
    %3709 = vmatmul.mubr.f32.gmra.mxu0 %v3564
    %v3710 = vpop.f32.mrf.mxu0
    %v3711 = vadd.f32 0.0, %v3710
    %v3712 = vpop.f32.mrf.mxu0
    %3713 = vmatprep.mubr.f32.mxu0 0.0
    %3714 = vmatmul.mubr.f32.gmra.mxu0 %v3565
    %v3715 = vpop.f32.mrf.mxu0
    %v3716 = vadd.f32 0.0, %v3715
    %v3717 = vpop.f32.mrf.mxu0
    %3718 = vmatprep.mubr.f32.mxu0 0.0
    %3719 = vmatmul.mubr.f32.gmra.mxu0 %v3566
    %v3720 = vpop.f32.mrf.mxu0
    %v3721 = vadd.f32 0.0, %v3720
    %v3722 = vpop.f32.mrf.mxu0
    %3723 = vmatprep.mubr.f32.mxu0 0.0
    %3724 = vmatmul.mubr.f32.gmra.mxu0 %v3567
    %v3725 = vpop.f32.mrf.mxu0
    %v3726 = vadd.f32 0.0, %v3725
    %v3727 = vpop.f32.mrf.mxu0
    %3728 = vmatprep.mubr.f32.mxu0 0.0
    %3729 = vmatmul.mubr.f32.gmra.mxu0 %v3568
    %v3730 = vpop.f32.mrf.mxu0
    %v3731 = vadd.f32 0.0, %v3730
    %v3732 = vpop.f32.mrf.mxu0
    %3733 = vmatprep.mubr.f32.mxu0 0.0
    %3734 = vmatmul.mubr.f32.gmra.mxu0 %v3569
    %v3735 = vpop.f32.mrf.mxu0
    %v3736 = vadd.f32 0.0, %v3735
    %v3737 = vpop.f32.mrf.mxu0
    %3738 = vmatprep.mubr.f32.mxu0 0.0
    %3739 = vmatmul.mubr.f32.gmra.mxu0 %v3570
    %v3740 = vpop.f32.mrf.mxu0
    %v3741 = vadd.f32 0.0, %v3740
    %v3742 = vpop.f32.mrf.mxu0
    %3743 = vmatprep.mubr.f32.mxu0 0.0
    %3744 = vmatmul.mubr.f32.gmra.mxu0 %v3571
    %v3745 = vpop.f32.mrf.mxu0
    %v3746 = vadd.f32 0.0, %v3745
    %v3747 = vpop.f32.mrf.mxu0
    %3748 = vmatprep.mubr.f32.mxu0 0.0
    %3749 = vmatmul.mubr.f32.gmra.mxu0 %v3572
    %v3750 = vpop.f32.mrf.mxu0
    %v3751 = vadd.f32 0.0, %v3750
    %v3752 = vpop.f32.mrf.mxu0
    %3753 = vmatprep.mubr.f32.mxu0 0.0
    %3754 = vmatmul.mubr.f32.gmra.mxu0 %v3573
    %v3755 = vpop.f32.mrf.mxu0
    %v3756 = vadd.f32 0.0, %v3755
    %v3757 = vpop.f32.mrf.mxu0
    %3758 = vmatprep.mubr.f32.mxu0 0.0
    %3759 = vmatmul.mubr.f32.gmra.mxu0 %v3574
    %v3760 = vpop.f32.mrf.mxu0
    %v3761 = vadd.f32 0.0, %v3760
    %v3762 = vpop.f32.mrf.mxu0
    %3763 = vmatprep.mubr.f32.mxu0 0.0
    %3764 = vmatmul.mubr.f32.gmra.mxu0 %v3575
    %v3765 = vpop.f32.mrf.mxu0
    %v3766 = vadd.f32 0.0, %v3765
    %v3767 = vpop.f32.mrf.mxu0
    %3768 = vmatprep.mubr.f32.mxu0 0.0
    %3769 = vmatmul.mubr.f32.gmra.mxu0 %v3576
    %v3770 = vpop.f32.mrf.mxu0
    %v3771 = vadd.f32 0.0, %v3770
    %v3772 = vpop.f32.mrf.mxu0
    %3773 = vmatprep.mubr.f32.mxu0 0.0
    %3774 = vmatmul.mubr.f32.gmra.mxu0 %v3577
    %v3775 = vpop.f32.mrf.mxu0
    %v3776 = vadd.f32 0.0, %v3775
    %v3777 = vpop.f32.mrf.mxu0
    %3778 = vmatprep.mubr.f32.mxu0 0.0
    %3779 = vmatmul.mubr.f32.gmra.mxu0 %v3578
    %v3780 = vpop.f32.mrf.mxu0
    %v3781 = vadd.f32 0.0, %v3780
    %v3782 = vpop.f32.mrf.mxu0
    %3783 = vmatprep.mubr.f32.mxu0 0.0
    %3784 = vmatmul.mubr.f32.gmra.mxu0 %v3579
    %v3785 = vpop.f32.mrf.mxu0
    %v3786 = vadd.f32 0.0, %v3785
    %v3787 = vpop.f32.mrf.mxu0
    %3788 = vmatprep.mubr.f32.mxu0 0.0
    %3789 = vmatmul.mubr.f32.gmra.mxu0 %v3580
    %v3790 = vpop.f32.mrf.mxu0
    %v3791 = vadd.f32 0.0, %v3790
    %v3792 = vpop.f32.mrf.mxu0
    %3793 = vmatprep.mubr.f32.mxu0 0.0
    %3794 = vmatmul.mubr.f32.gmra.mxu0 %v3581
    %v3795 = vpop.f32.mrf.mxu0
    %v3796 = vadd.f32 0.0, %v3795
    %v3797 = vpop.f32.mrf.mxu0
    %3798 = vmatprep.mubr.f32.mxu0 0.0
    %3799 = vmatmul.mubr.f32.gmra.mxu0 %v3582
    %v3800 = vpop.f32.mrf.mxu0
    %v3801 = vadd.f32 0.0, %v3800
    %v3802 = vpop.f32.mrf.mxu0
    %3803 = vmatprep.mubr.f32.mxu0 0.0
    %3804 = vmatmul.mubr.f32.gmra.mxu0 %v3583
    %v3805 = vpop.f32.mrf.mxu0
    %v3806 = vadd.f32 0.0, %v3805
    %v3807 = vpop.f32.mrf.mxu0
    %3808 = vmatprep.mubr.f32.mxu0 0.0
    %3809 = vmatmul.mubr.f32.gmra.mxu0 %v3584
    %v3810 = vpop.f32.mrf.mxu0
    %v3811 = vadd.f32 0.0, %v3810
    %v3812 = vpop.f32.mrf.mxu0
    %3813 = vmatprep.mubr.f32.mxu0 0.0
    %3814 = vmatmul.mubr.f32.gmra.mxu0 %v3585
    %v3815 = vpop.f32.mrf.mxu0
    %v3816 = vadd.f32 0.0, %v3815
    %v3817 = vpop.f32.mrf.mxu0
    %3818 = vmatprep.mubr.f32.mxu0 0.0
    %3819 = vmatmul.mubr.f32.gmra.mxu0 %v3586
    %v3820 = vpop.f32.mrf.mxu0
    %v3821 = vadd.f32 0.0, %v3820
    %v3822 = vpop.f32.mrf.mxu0
    %3823 = vmatprep.mubr.f32.mxu0 0.0
    %3824 = vmatmul.mubr.f32.gmra.mxu0 %v3587
    %v3825 = vpop.f32.mrf.mxu0
    %v3826 = vadd.f32 0.0, %v3825
    %v3827 = vpop.f32.mrf.mxu0
    %3828 = vmatprep.mubr.f32.mxu0 0.0
    %3829 = vmatmul.mubr.f32.gmra.mxu0 %v3588
    %v3830 = vpop.f32.mrf.mxu0
    %v3831 = vadd.f32 0.0, %v3830
    %v3832 = vpop.f32.mrf.mxu0
    %3833 = vmatprep.mubr.f32.mxu0 0.0
    %3834 = vmatmul.mubr.f32.gmra.mxu0 %v3589
    %v3835 = vpop.f32.mrf.mxu0
    %v3836 = vadd.f32 0.0, %v3835
    %v3837 = vpop.f32.mrf.mxu0
    %3838 = vmatprep.mubr.f32.mxu0 0.0
    %3839 = vmatmul.mubr.f32.gmra.mxu0 %v3590
    %v3840 = vpop.f32.mrf.mxu0
    %v3841 = vadd.f32 0.0, %v3840
    %v3842 = vpop.f32.mrf.mxu0
    %3843 = vmatprep.mubr.f32.mxu0 0.0
    %3844 = vmatmul.mubr.f32.gmra.mxu0 %v3591
    %v3845 = vpop.f32.mrf.mxu0
    %v3846 = vadd.f32 0.0, %v3845
    %v3847 = vpop.f32.mrf.mxu0
    %3848 = vmatprep.mubr.f32.mxu0 0.0
    %3849 = vmatmul.mubr.f32.gmra.mxu0 %v3592
    %v3850 = vpop.f32.mrf.mxu0
    %v3851 = vadd.f32 0.0, %v3850
    %v3852 = vpop.f32.mrf.mxu0
    %3853 = vmatprep.mubr.f32.mxu0 0.0
    %3854 = vmatmul.mubr.f32.gmra.mxu0 %v3593
    %v3855 = vpop.f32.mrf.mxu0
    %v3856 = vadd.f32 0.0, %v3855
    %v3857 = vpop.f32.mrf.mxu0
    %3858 = vmatprep.mubr.f32.mxu0 0.0
    %3859 = vmatmul.mubr.f32.gmra.mxu0 %v3594
    %v3860 = vpop.f32.mrf.mxu0
    %v3861 = vadd.f32 0.0, %v3860
    %v3862 = vpop.f32.mrf.mxu0
    %3863 = vmatprep.mubr.f32.mxu0 0.0
    %3864 = vmatmul.mubr.f32.gmra.mxu0 %v3595
    %v3865 = vpop.f32.mrf.mxu0
    %v3866 = vadd.f32 0.0, %v3865
    %v3867 = vpop.f32.mrf.mxu0
    %3868 = vmatprep.mubr.f32.mxu0 0.0
    %3869 = vmatmul.mubr.f32.gmra.mxu0 %v3596
    %v3870 = vpop.f32.mrf.mxu0
    %v3871 = vadd.f32 0.0, %v3870
    %v3872 = vpop.f32.mrf.mxu0
    %3873 = vmatprep.mubr.f32.mxu0 0.0
    %3874 = vmatmul.mubr.f32.gmra.mxu0 %v3597
    %v3875 = vpop.f32.mrf.mxu0
    %v3876 = vadd.f32 0.0, %v3875
    %v3877 = vpop.f32.mrf.mxu0
    %3878 = vmatprep.mubr.f32.mxu0 0.0
    %3879 = vmatmul.mubr.f32.gmra.mxu0 %v3598
    %v3880 = vpop.f32.mrf.mxu0
    %v3881 = vadd.f32 0.0, %v3880
    %v3882 = vpop.f32.mrf.mxu0
    %3883 = vmatprep.mubr.f32.mxu0 0.0
    %3884 = vmatmul.mubr.f32.gmra.mxu0 %v3599
    %v3885 = vpop.f32.mrf.mxu0
    %v3886 = vadd.f32 0.0, %v3885
    %v3887 = vpop.f32.mrf.mxu0
    %3888 = vmatprep.mubr.f32.mxu0 0.0
    %3889 = vmatmul.mubr.f32.gmra.mxu0 %v3600
    %v3890 = vpop.f32.mrf.mxu0
    %v3891 = vadd.f32 0.0, %v3890
    %v3892 = vpop.f32.mrf.mxu0
    %3893 = vmatprep.mubr.f32.mxu0 0.0
    %3894 = vmatmul.mubr.f32.gmra.mxu0 %v3601
    %v3895 = vpop.f32.mrf.mxu0
    %v3896 = vadd.f32 0.0, %v3895
    %v3897 = vpop.f32.mrf.mxu0
    %3898 = vmatprep.mubr.f32.mxu0 0.0
    %3899 = vmatmul.mubr.f32.gmra.mxu0 %v3602
    %v3900 = vpop.f32.mrf.mxu0
    %v3901 = vadd.f32 0.0, %v3900
    %v3902 = vpop.f32.mrf.mxu0
    %3903 = vmatprep.mubr.f32.mxu0 0.0
    %3904 = vmatmul.mubr.f32.gmra.mxu0 %v3603
    %v3905 = vpop.f32.mrf.mxu0
    %v3906 = vadd.f32 0.0, %v3905
    %v3907 = vpop.f32.mrf.mxu0
    %3908 = vmatprep.mubr.f32.mxu0 0.0
    %3909 = vmatmul.mubr.f32.gmra.mxu0 %v3604
    %v3910 = vpop.f32.mrf.mxu0
    %v3911 = vadd.f32 0.0, %v3910
    %v3912 = vpop.f32.mrf.mxu0
    %3913 = vmatprep.mubr.f32.mxu0 0.0
    %3914 = vmatmul.mubr.f32.gmra.mxu0 %v3605
    %v3915 = vpop.f32.mrf.mxu0
    %v3916 = vadd.f32 0.0, %v3915
    %v3917 = vpop.f32.mrf.mxu0
    %3918 = vmatprep.mubr.f32.mxu0 0.0
    %3919 = vmatmul.mubr.f32.gmra.mxu0 %v3606
    %v3920 = vpop.f32.mrf.mxu0
    %v3921 = vadd.f32 0.0, %v3920
    %v3922 = vpop.f32.mrf.mxu0
    %3923 = vmatprep.mubr.f32.mxu0 0.0
    %3924 = vmatmul.mubr.f32.gmra.mxu0 %v3607
    %v3925 = vpop.f32.mrf.mxu0
    %v3926 = vadd.f32 0.0, %v3925
    %v3927 = vpop.f32.mrf.mxu0
    %3928 = vmatprep.mubr.f32.mxu0 0.0
    %3929 = vmatmul.mubr.f32.gmra.mxu0 %v3608
    %v3930 = vpop.f32.mrf.mxu0
    %v3931 = vadd.f32 0.0, %v3930
    %v3932 = vpop.f32.mrf.mxu0
    %3933 = vmatprep.mubr.f32.mxu0 0.0
    %3934 = vmatmul.mubr.f32.gmra.mxu0 %v3609
    %v3935 = vpop.f32.mrf.mxu0
    %v3936 = vadd.f32 0.0, %v3935
    %v3937 = vpop.f32.mrf.mxu0
    %3938 = vmatprep.mubr.f32.mxu0 0.0
    %3939 = vmatmul.mubr.f32.gmra.mxu0 %v3610
    %v3940 = vpop.f32.mrf.mxu0
    %v3941 = vadd.f32 0.0, %v3940
    %v3942 = vpop.f32.mrf.mxu0
    %3943 = vmatprep.mubr.f32.mxu0 0.0
    %3944 = vmatmul.mubr.f32.gmra.mxu0 %v3611
    %v3945 = vpop.f32.mrf.mxu0
    %v3946 = vadd.f32 0.0, %v3945
    %v3947 = vpop.f32.mrf.mxu0
    %3948 = vmatprep.mubr.f32.mxu0 0.0
    %3949 = vmatmul.mubr.f32.gmra.mxu0 %v3612
    %v3950 = vpop.f32.mrf.mxu0
    %v3951 = vadd.f32 0.0, %v3950
    %v3952 = vpop.f32.mrf.mxu0
    %3953 = vmatprep.mubr.f32.mxu0 0.0
    %3954 = vmatmul.mubr.f32.gmra.mxu0 %v3613
    %v3955 = vpop.f32.mrf.mxu0
    %v3956 = vadd.f32 0.0, %v3955
    %v3957 = vpop.f32.mrf.mxu0
    %3958 = vmatprep.mubr.f32.mxu0 0.0
    %3959 = vmatmul.mubr.f32.gmra.mxu0 %v3614
    %v3960 = vpop.f32.mrf.mxu0
    %v3961 = vadd.f32 0.0, %v3960
    %v3962 = vpop.f32.mrf.mxu0
    %3963 = vmatprep.mubr.f32.mxu0 0.0
    %3964 = vmatmul.mubr.f32.gmra.mxu0 %v3615
    %v3965 = vpop.f32.mrf.mxu0
    %v3966 = vadd.f32 0.0, %v3965
    %v3967 = vpop.f32.mrf.mxu0
    %3968 = vmatprep.mubr.f32.mxu0 0.0
    %3969 = vmatmul.mubr.f32.gmra.mxu0 %v3616
    %v3970 = vpop.f32.mrf.mxu0
    %v3971 = vadd.f32 0.0, %v3970
    %v3972 = vpop.f32.mrf.mxu0
    %3973 = vmatprep.mubr.f32.mxu0 0.0
    %3974 = vmatmul.mubr.f32.gmra.mxu0 %v3617
    %v3975 = vpop.f32.mrf.mxu0
    %v3976 = vadd.f32 0.0, %v3975
    %v3977 = vpop.f32.mrf.mxu0
    %3978 = vmatprep.mubr.f32.mxu0 0.0
    %3979 = vmatmul.mubr.f32.gmra.mxu0 %v3618
    %v3980 = vpop.f32.mrf.mxu0
    %v3981 = vadd.f32 0.0, %v3980
    %v3982 = vpop.f32.mrf.mxu0
    %3983 = vmatprep.mubr.f32.mxu0 0.0
    %3984 = vmatmul.mubr.f32.gmra.mxu0 %v3619
    %v3985 = vpop.f32.mrf.mxu0
    %v3986 = vadd.f32 0.0, %v3985
    %v3987 = vpop.f32.mrf.mxu0
    %3988 = vmatprep.mubr.f32.mxu0 0.0
    %3989 = vmatmul.mubr.f32.gmra.mxu0 %v3620
    %v3990 = vpop.f32.mrf.mxu0
    %v3991 = vadd.f32 0.0, %v3990
    %v3992 = vpop.f32.mrf.mxu0
    %3993 = vmatprep.mubr.f32.mxu0 0.0
    %3994 = vmatmul.mubr.f32.gmra.mxu0 %v3621
    %v3995 = vpop.f32.mrf.mxu0
    %v3996 = vadd.f32 0.0, %v3995
    %v3997 = vpop.f32.mrf.mxu0
    %3998 = vmatprep.mubr.f32.mxu0 0.0
    %3999 = vmatmul.mubr.f32.gmra.mxu0 %v3622
    %v4000 = vpop.f32.mrf.mxu0
    %v4001 = vadd.f32 0.0, %v4000
    %v4002 = vpop.f32.mrf.mxu0
    %4003 = vmatprep.mubr.f32.mxu0 0.0
    %4004 = vmatmul.mubr.f32.gmra.mxu0 %v3623
    %v4005 = vpop.f32.mrf.mxu0
    %v4006 = vadd.f32 0.0, %v4005
    %v4007 = vpop.f32.mrf.mxu0
    %4008 = vmatprep.mubr.f32.mxu0 0.0
    %4009 = vmatmul.mubr.f32.gmra.mxu0 %v3624
    %v4010 = vpop.f32.mrf.mxu0
    %v4011 = vadd.f32 0.0, %v4010
    %v4012 = vpop.f32.mrf.mxu0
    %4013 = vmatprep.mubr.f32.mxu0 0.0
    %4014 = vmatmul.mubr.f32.gmra.mxu0 %v3625
    %v4015 = vpop.f32.mrf.mxu0
    %v4016 = vadd.f32 0.0, %v4015
    %v4017 = vpop.f32.mrf.mxu0
    %4018 = vmatprep.mubr.f32.mxu0 0.0
    %4019 = vmatmul.mubr.f32.gmra.mxu0 %v3626
    %v4020 = vpop.f32.mrf.mxu0
    %v4021 = vadd.f32 0.0, %v4020
    %v4022 = vpop.f32.mrf.mxu0
    %4023 = vmatprep.mubr.f32.mxu0 0.0
    %4024 = vmatmul.mubr.f32.gmra.mxu0 %v3627
    %v4025 = vpop.f32.mrf.mxu0
    %v4026 = vadd.f32 0.0, %v4025
    %v4027 = vpop.f32.mrf.mxu0
    %4028 = vdwg.mxu0
    %v4029 = vld [vmem:[%s8] sm:$0x1]
    %v4031 = vlaneseq
    %v4032 = vshrl.u32 %v4031, 7
    %v4033 = vsub.s32 0, %v4032
    %v4034 = vrot.slane %v4029, %v4033
    %v4036 = vmul.f32 %v3711, %v4034
    %v4037 = vmul.f32 %v3716, %v4034
    %v4038 = vmul.f32 %v3721, %v4034
    %v4039 = vmul.f32 %v3726, %v4034
    %v4040 = vmul.f32 %v3731, %v4034
    %v4041 = vmul.f32 %v3736, %v4034
    %v4042 = vmul.f32 %v3741, %v4034
    %v4043 = vmul.f32 %v3746, %v4034
    %v4044 = vmul.f32 %v3751, %v4034
    %v4045 = vmul.f32 %v3756, %v4034
    %v4046 = vmul.f32 %v3761, %v4034
    %v4047 = vmul.f32 %v3766, %v4034
    %v4048 = vmul.f32 %v3771, %v4034
    %v4049 = vmul.f32 %v3776, %v4034
    %v4050 = vmul.f32 %v3781, %v4034
    %v4051 = vmul.f32 %v3786, %v4034
    %v4052 = vmul.f32 %v3791, %v4034
    %v4053 = vmul.f32 %v3796, %v4034
    %v4054 = vmul.f32 %v3801, %v4034
    %v4055 = vmul.f32 %v3806, %v4034
    %v4056 = vmul.f32 %v3811, %v4034
    %v4057 = vmul.f32 %v3816, %v4034
    %v4058 = vmul.f32 %v3821, %v4034
    %v4059 = vmul.f32 %v3826, %v4034
    %v4060 = vmul.f32 %v3831, %v4034
    %v4061 = vmul.f32 %v3836, %v4034
    %v4062 = vmul.f32 %v3841, %v4034
    %v4063 = vmul.f32 %v3846, %v4034
    %v4064 = vmul.f32 %v3851, %v4034
    %v4065 = vmul.f32 %v3856, %v4034
    %v4066 = vmul.f32 %v3861, %v4034
    %v4067 = vmul.f32 %v3866, %v4034
    %v4068 = vmul.f32 %v3871, %v4034
    %v4069 = vmul.f32 %v3876, %v4034
    %v4070 = vmul.f32 %v3881, %v4034
    %v4071 = vmul.f32 %v3886, %v4034
    %v4072 = vmul.f32 %v3891, %v4034
    %v4073 = vmul.f32 %v3896, %v4034
    %v4074 = vmul.f32 %v3901, %v4034
    %v4075 = vmul.f32 %v3906, %v4034
    %v4076 = vmul.f32 %v3911, %v4034
    %v4077 = vmul.f32 %v3916, %v4034
    %v4078 = vmul.f32 %v3921, %v4034
    %v4079 = vmul.f32 %v3926, %v4034
    %v4080 = vmul.f32 %v3931, %v4034
    %v4081 = vmul.f32 %v3936, %v4034
    %v4082 = vmul.f32 %v3941, %v4034
    %v4083 = vmul.f32 %v3946, %v4034
    %v4084 = vmul.f32 %v3951, %v4034
    %v4085 = vmul.f32 %v3956, %v4034
    %v4086 = vmul.f32 %v3961, %v4034
    %v4087 = vmul.f32 %v3966, %v4034
    %v4088 = vmul.f32 %v3971, %v4034
    %v4089 = vmul.f32 %v3976, %v4034
    %v4090 = vmul.f32 %v3981, %v4034
    %v4091 = vmul.f32 %v3986, %v4034
    %v4092 = vmul.f32 %v3991, %v4034
    %v4093 = vmul.f32 %v3996, %v4034
    %v4094 = vmul.f32 %v4001, %v4034
    %v4095 = vmul.f32 %v4006, %v4034
    %v4096 = vmul.f32 %v4011, %v4034
    %v4097 = vmul.f32 %v4016, %v4034
    %v4098 = vmul.f32 %v4021, %v4034
    %v4099 = vmul.f32 %v4026, %v4034
    %v4100 = vld [vmem:[%s9] sm:$0x1]
    %v4102 = vlaneseq
    %v4103 = vshrl.u32 %v4102, 7
    %v4104 = vsub.s32 0, %v4103
    %v4105 = vrot.slane %v4100, %v4104
    %v4107 = vadd.f32 %v4036, %v4105
    %v4108 = vadd.f32 %v4037, %v4105
    %v4109 = vadd.f32 %v4038, %v4105
    %v4110 = vadd.f32 %v4039, %v4105
    %v4111 = vadd.f32 %v4040, %v4105
    %v4112 = vadd.f32 %v4041, %v4105
    %v4113 = vadd.f32 %v4042, %v4105
    %v4114 = vadd.f32 %v4043, %v4105
    %v4115 = vadd.f32 %v4044, %v4105
    %v4116 = vadd.f32 %v4045, %v4105
    %v4117 = vadd.f32 %v4046, %v4105
    %v4118 = vadd.f32 %v4047, %v4105
    %v4119 = vadd.f32 %v4048, %v4105
    %v4120 = vadd.f32 %v4049, %v4105
    %v4121 = vadd.f32 %v4050, %v4105
    %v4122 = vadd.f32 %v4051, %v4105
    %v4123 = vadd.f32 %v4052, %v4105
    %v4124 = vadd.f32 %v4053, %v4105
    %v4125 = vadd.f32 %v4054, %v4105
    %v4126 = vadd.f32 %v4055, %v4105
    %v4127 = vadd.f32 %v4056, %v4105
    %v4128 = vadd.f32 %v4057, %v4105
    %v4129 = vadd.f32 %v4058, %v4105
    %v4130 = vadd.f32 %v4059, %v4105
    %v4131 = vadd.f32 %v4060, %v4105
    %v4132 = vadd.f32 %v4061, %v4105
    %v4133 = vadd.f32 %v4062, %v4105
    %v4134 = vadd.f32 %v4063, %v4105
    %v4135 = vadd.f32 %v4064, %v4105
    %v4136 = vadd.f32 %v4065, %v4105
    %v4137 = vadd.f32 %v4066, %v4105
    %v4138 = vadd.f32 %v4067, %v4105
    %v4139 = vadd.f32 %v4068, %v4105
    %v4140 = vadd.f32 %v4069, %v4105
    %v4141 = vadd.f32 %v4070, %v4105
    %v4142 = vadd.f32 %v4071, %v4105
    %v4143 = vadd.f32 %v4072, %v4105
    %v4144 = vadd.f32 %v4073, %v4105
    %v4145 = vadd.f32 %v4074, %v4105
    %v4146 = vadd.f32 %v4075, %v4105
    %v4147 = vadd.f32 %v4076, %v4105
    %v4148 = vadd.f32 %v4077, %v4105
    %v4149 = vadd.f32 %v4078, %v4105
    %v4150 = vadd.f32 %v4079, %v4105
    %v4151 = vadd.f32 %v4080, %v4105
    %v4152 = vadd.f32 %v4081, %v4105
    %v4153 = vadd.f32 %v4082, %v4105
    %v4154 = vadd.f32 %v4083, %v4105
    %v4155 = vadd.f32 %v4084, %v4105
    %v4156 = vadd.f32 %v4085, %v4105
    %v4157 = vadd.f32 %v4086, %v4105
    %v4158 = vadd.f32 %v4087, %v4105
    %v4159 = vadd.f32 %v4088, %v4105
    %v4160 = vadd.f32 %v4089, %v4105
    %v4161 = vadd.f32 %v4090, %v4105
    %v4162 = vadd.f32 %v4091, %v4105
    %v4163 = vadd.f32 %v4092, %v4105
    %v4164 = vadd.f32 %v4093, %v4105
    %v4165 = vadd.f32 %v4094, %v4105
    %v4166 = vadd.f32 %v4095, %v4105
    %v4167 = vadd.f32 %v4096, %v4105
    %v4168 = vadd.f32 %v4097, %v4105
    %v4169 = vadd.f32 %v4098, %v4105
    %v4170 = vadd.f32 %v4099, %v4105
    %v4171 = vmax.f32 %v4107, 0.0
    %v4172 = vmax.f32 %v4108, 0.0
    %v4173 = vmax.f32 %v4109, 0.0
    %v4174 = vmax.f32 %v4110, 0.0
    %v4175 = vmax.f32 %v4111, 0.0
    %v4176 = vmax.f32 %v4112, 0.0
    %v4177 = vmax.f32 %v4113, 0.0
    %v4178 = vmax.f32 %v4114, 0.0
    %v4179 = vmax.f32 %v4115, 0.0
    %v4180 = vmax.f32 %v4116, 0.0
    %v4181 = vmax.f32 %v4117, 0.0
    %v4182 = vmax.f32 %v4118, 0.0
    %v4183 = vmax.f32 %v4119, 0.0
    %v4184 = vmax.f32 %v4120, 0.0
    %v4185 = vmax.f32 %v4121, 0.0
    %v4186 = vmax.f32 %v4122, 0.0
    %v4187 = vmax.f32 %v4123, 0.0
    %v4188 = vmax.f32 %v4124, 0.0
    %v4189 = vmax.f32 %v4125, 0.0
    %v4190 = vmax.f32 %v4126, 0.0
    %v4191 = vmax.f32 %v4127, 0.0
    %v4192 = vmax.f32 %v4128, 0.0
    %v4193 = vmax.f32 %v4129, 0.0
    %v4194 = vmax.f32 %v4130, 0.0
    %v4195 = vmax.f32 %v4131, 0.0
    %v4196 = vmax.f32 %v4132, 0.0
    %v4197 = vmax.f32 %v4133, 0.0
    %v4198 = vmax.f32 %v4134, 0.0
    %v4199 = vmax.f32 %v4135, 0.0
    %v4200 = vmax.f32 %v4136, 0.0
    %v4201 = vmax.f32 %v4137, 0.0
    %v4202 = vmax.f32 %v4138, 0.0
    %v4203 = vmax.f32 %v4139, 0.0
    %v4204 = vmax.f32 %v4140, 0.0
    %v4205 = vmax.f32 %v4141, 0.0
    %v4206 = vmax.f32 %v4142, 0.0
    %v4207 = vmax.f32 %v4143, 0.0
    %v4208 = vmax.f32 %v4144, 0.0
    %v4209 = vmax.f32 %v4145, 0.0
    %v4210 = vmax.f32 %v4146, 0.0
    %v4211 = vmax.f32 %v4147, 0.0
    %v4212 = vmax.f32 %v4148, 0.0
    %v4213 = vmax.f32 %v4149, 0.0
    %v4214 = vmax.f32 %v4150, 0.0
    %v4215 = vmax.f32 %v4151, 0.0
    %v4216 = vmax.f32 %v4152, 0.0
    %v4217 = vmax.f32 %v4153, 0.0
    %v4218 = vmax.f32 %v4154, 0.0
    %v4219 = vmax.f32 %v4155, 0.0
    %v4220 = vmax.f32 %v4156, 0.0
    %v4221 = vmax.f32 %v4157, 0.0
    %v4222 = vmax.f32 %v4158, 0.0
    %v4223 = vmax.f32 %v4159, 0.0
    %v4224 = vmax.f32 %v4160, 0.0
    %v4225 = vmax.f32 %v4161, 0.0
    %v4226 = vmax.f32 %v4162, 0.0
    %v4227 = vmax.f32 %v4163, 0.0
    %v4228 = vmax.f32 %v4164, 0.0
    %v4229 = vmax.f32 %v4165, 0.0
    %v4230 = vmax.f32 %v4166, 0.0
    %v4231 = vmax.f32 %v4167, 0.0
    %v4232 = vmax.f32 %v4168, 0.0
    %v4233 = vmax.f32 %v4169, 0.0
    %v4234 = vmax.f32 %v4170, 0.0
    %v4235 = vld [vmem:[#allocation3] sm:$0xff]
    %v4236 = vld [vmem:[#allocation3 + $0x8] sm:$0xff]
    %v4237 = vld [vmem:[#allocation3 + $0x10] sm:$0xff]
    %v4238 = vld [vmem:[#allocation3 + $0x18] sm:$0xff]
    %v4239 = vld [vmem:[#allocation3 + $0x20] sm:$0xff]
    %v4240 = vld [vmem:[#allocation3 + $0x28] sm:$0xff]
    %v4241 = vld [vmem:[#allocation3 + $0x30] sm:$0xff]
    %v4242 = vld [vmem:[#allocation3 + $0x38] sm:$0xff]
    %v4243 = vld [vmem:[#allocation3 + $0x40] sm:$0xff]
    %v4244 = vld [vmem:[#allocation3 + $0x48] sm:$0xff]
    %v4245 = vld [vmem:[#allocation3 + $0x50] sm:$0xff]
    %v4246 = vld [vmem:[#allocation3 + $0x58] sm:$0xff]
    %v4247 = vld [vmem:[#allocation3 + $0x60] sm:$0xff]
    %v4248 = vld [vmem:[#allocation3 + $0x68] sm:$0xff]
    %v4249 = vld [vmem:[#allocation3 + $0x70] sm:$0xff]
    %v4250 = vld [vmem:[#allocation3 + $0x78] sm:$0xff]
    %v4251 = vld [vmem:[#allocation3 + $0x80] sm:$0xff]
    %v4252 = vld [vmem:[#allocation3 + $0x88] sm:$0xff]
    %v4253 = vld [vmem:[#allocation3 + $0x90] sm:$0xff]
    %v4254 = vld [vmem:[#allocation3 + $0x98] sm:$0xff]
    %v4255 = vld [vmem:[#allocation3 + $0xa0] sm:$0xff]
    %v4256 = vld [vmem:[#allocation3 + $0xa8] sm:$0xff]
    %v4257 = vld [vmem:[#allocation3 + $0xb0] sm:$0xff]
    %v4258 = vld [vmem:[#allocation3 + $0xb8] sm:$0xff]
    %v4259 = vld [vmem:[#allocation3 + $0xc0] sm:$0xff]
    %v4260 = vld [vmem:[#allocation3 + $0xc8] sm:$0xff]
    %v4261 = vld [vmem:[#allocation3 + $0xd0] sm:$0xff]
    %v4262 = vld [vmem:[#allocation3 + $0xd8] sm:$0xff]
    %v4263 = vld [vmem:[#allocation3 + $0xe0] sm:$0xff]
    %v4264 = vld [vmem:[#allocation3 + $0xe8] sm:$0xff]
    %v4265 = vld [vmem:[#allocation3 + $0xf0] sm:$0xff]
    %v4266 = vld [vmem:[#allocation3 + $0xf8] sm:$0xff]
    %v4267 = vld [vmem:[#allocation3 + $0x100] sm:$0xff]
    %v4268 = vld [vmem:[#allocation3 + $0x108] sm:$0xff]
    %v4269 = vld [vmem:[#allocation3 + $0x110] sm:$0xff]
    %v4270 = vld [vmem:[#allocation3 + $0x118] sm:$0xff]
    %v4271 = vld [vmem:[#allocation3 + $0x120] sm:$0xff]
    %v4272 = vld [vmem:[#allocation3 + $0x128] sm:$0xff]
    %v4273 = vld [vmem:[#allocation3 + $0x130] sm:$0xff]
    %v4274 = vld [vmem:[#allocation3 + $0x138] sm:$0xff]
    %v4275 = vld [vmem:[#allocation3 + $0x140] sm:$0xff]
    %v4276 = vld [vmem:[#allocation3 + $0x148] sm:$0xff]
    %v4277 = vld [vmem:[#allocation3 + $0x150] sm:$0xff]
    %v4278 = vld [vmem:[#allocation3 + $0x158] sm:$0xff]
    %v4279 = vld [vmem:[#allocation3 + $0x160] sm:$0xff]
    %v4280 = vld [vmem:[#allocation3 + $0x168] sm:$0xff]
    %v4281 = vld [vmem:[#allocation3 + $0x170] sm:$0xff]
    %v4282 = vld [vmem:[#allocation3 + $0x178] sm:$0xff]
    %v4283 = vld [vmem:[#allocation3 + $0x180] sm:$0xff]
    %v4284 = vld [vmem:[#allocation3 + $0x188] sm:$0xff]
    %v4285 = vld [vmem:[#allocation3 + $0x190] sm:$0xff]
    %v4286 = vld [vmem:[#allocation3 + $0x198] sm:$0xff]
    %v4287 = vld [vmem:[#allocation3 + $0x1a0] sm:$0xff]
    %v4288 = vld [vmem:[#allocation3 + $0x1a8] sm:$0xff]
    %v4289 = vld [vmem:[#allocation3 + $0x1b0] sm:$0xff]
    %v4290 = vld [vmem:[#allocation3 + $0x1b8] sm:$0xff]
    %v4291 = vld [vmem:[#allocation3 + $0x1c0] sm:$0xff]
    %v4292 = vld [vmem:[#allocation3 + $0x1c8] sm:$0xff]
    %v4293 = vld [vmem:[#allocation3 + $0x1d0] sm:$0xff]
    %v4294 = vld [vmem:[#allocation3 + $0x1d8] sm:$0xff]
    %v4295 = vld [vmem:[#allocation3 + $0x1e0] sm:$0xff]
    %v4296 = vld [vmem:[#allocation3 + $0x1e8] sm:$0xff]
    %v4297 = vld [vmem:[#allocation3 + $0x1f0] sm:$0xff]
    %v4298 = vld [vmem:[#allocation3 + $0x1f8] sm:$0xff]
    %v4299 = vld [vmem:[#allocation11] sm:$0xff]
    %v4300 = vld [vmem:[#allocation11 + $0x8] sm:$0xff]
    %v4301 = vld [vmem:[#allocation11 + $0x10] sm:$0xff]
    %v4303 = vsel %vm226, %v4235, 0
    %v4306 = vsel %vm226, %v4236, 0
    %v4309 = vsel %vm226, %v4237, 0
    %v4312 = vsel %vm226, %v4238, 0
    %v4315 = vsel %vm226, %v4239, 0
    %v4318 = vsel %vm226, %v4240, 0
    %v4321 = vsel %vm226, %v4241, 0
    %v4324 = vsel %vm226, %v4242, 0
    %v4327 = vsel %vm226, %v4243, 0
    %v4330 = vsel %vm226, %v4244, 0
    %v4333 = vsel %vm226, %v4245, 0
    %v4336 = vsel %vm226, %v4246, 0
    %v4339 = vsel %vm226, %v4247, 0
    %v4342 = vsel %vm226, %v4248, 0
    %v4345 = vsel %vm226, %v4249, 0
    %v4348 = vsel %vm226, %v4250, 0
    %v4351 = vsel %vm226, %v4251, 0
    %v4354 = vsel %vm226, %v4252, 0
    %v4357 = vsel %vm226, %v4253, 0
    %v4360 = vsel %vm226, %v4254, 0
    %v4363 = vsel %vm226, %v4255, 0
    %v4366 = vsel %vm226, %v4256, 0
    %v4369 = vsel %vm226, %v4257, 0
    %v4372 = vsel %vm226, %v4258, 0
    %v4375 = vsel %vm226, %v4259, 0
    %v4378 = vsel %vm226, %v4260, 0
    %v4381 = vsel %vm226, %v4261, 0
    %v4384 = vsel %vm226, %v4262, 0
    %v4387 = vsel %vm226, %v4263, 0
    %v4390 = vsel %vm226, %v4264, 0
    %v4393 = vsel %vm226, %v4265, 0
    %v4396 = vsel %vm226, %v4266, 0
    %v4399 = vsel %vm226, %v4267, 0
    %v4402 = vsel %vm226, %v4268, 0
    %v4405 = vsel %vm226, %v4269, 0
    %v4408 = vsel %vm226, %v4270, 0
    %v4411 = vsel %vm226, %v4271, 0
    %v4414 = vsel %vm226, %v4272, 0
    %v4417 = vsel %vm226, %v4273, 0
    %v4420 = vsel %vm226, %v4274, 0
    %v4423 = vsel %vm226, %v4275, 0
    %v4426 = vsel %vm226, %v4276, 0
    %v4429 = vsel %vm226, %v4277, 0
    %v4432 = vsel %vm226, %v4278, 0
    %v4435 = vsel %vm226, %v4279, 0
    %v4438 = vsel %vm226, %v4280, 0
    %v4441 = vsel %vm226, %v4281, 0
    %v4444 = vsel %vm226, %v4282, 0
    %v4447 = vsel %vm226, %v4283, 0
    %v4450 = vsel %vm226, %v4284, 0
    %v4453 = vsel %vm226, %v4285, 0
    %v4456 = vsel %vm226, %v4286, 0
    %v4459 = vsel %vm226, %v4287, 0
    %v4462 = vsel %vm226, %v4288, 0
    %v4465 = vsel %vm226, %v4289, 0
    %v4468 = vsel %vm226, %v4290, 0
    %v4471 = vsel %vm226, %v4291, 0
    %v4474 = vsel %vm226, %v4292, 0
    %v4477 = vsel %vm226, %v4293, 0
    %v4480 = vsel %vm226, %v4294, 0
    %v4483 = vsel %vm226, %v4295, 0
    %v4486 = vsel %vm226, %v4296, 0
    %v4489 = vsel %vm226, %v4297, 0
    %v4492 = vsel %vm226, %v4298, 0
    %4494 = vmatprep.subr.mxu0 0.0
    %4495 = vmatpush1.msra.mxu0 0.0
    %4496 = vmatprep.subr.mxu0 0.0
    %4497 = vmatpush1.msra.mxu0 0.0
    %4498 = vmatprep.subr.mxu0 0.0
    %4499 = vmatpush1.msra.mxu0 0.0
    %4500 = vmatprep.subr.mxu0 0.0
    %4501 = vmatpush1.msra.mxu0 0.0
    %4502 = vmatprep.subr.mxu0 0.0
    %4503 = vmatpush1.msra.mxu0 0.0
    %4504 = vmatprep.subr.mxu0 0.0
    %4505 = vmatpush1.msra.mxu0 0.0
    %4506 = vmatprep.subr.mxu0 0.0
    %4507 = vmatpush1.msra.mxu0 0.0
    %4508 = vmatprep.subr.mxu0 0.0
    %4509 = vmatpush1.msra.mxu0 0.0
    %4510 = vmatprep.subr.mxu0 0.0
    %4511 = vmatpush1.msra.mxu0 0.0
    %4512 = vmatprep.subr.mxu0 0.0
    %4513 = vmatpush1.msra.mxu0 0.0
    %4514 = vmatprep.subr.mxu0 0.0
    %4515 = vmatpush1.msra.mxu0 0.0
    %4516 = vmatprep.subr.mxu0 0.0
    %4517 = vmatpush1.msra.mxu0 0.0
    %4518 = vmatprep.subr.mxu0 0.0
    %4519 = vmatpush1.msra.mxu0 0.0
    %4520 = vmatprep.subr.mxu0 0.0
    %4521 = vmatpush1.msra.mxu0 %v4301
    %4522 = vmatprep.subr.mxu0 0.0
    %4523 = vmatpush1.msra.mxu0 %v4300
    %4524 = vmatprep.subr.mxu0 0.0
    %4525 = vmatpush1.msra.mxu0 %v4299
    %4526 = vmatprep.subr.mxu0 0.0
    %4527 = vmatpush2.msra.mxu0 0.0
    %4528 = vmatprep.subr.mxu0 0.0
    %4529 = vmatpush2.msra.mxu0 0.0
    %4530 = vmatprep.subr.mxu0 0.0
    %4531 = vmatpush2.msra.mxu0 0.0
    %4532 = vmatprep.subr.mxu0 0.0
    %4533 = vmatpush2.msra.mxu0 0.0
    %4534 = vmatprep.subr.mxu0 0.0
    %4535 = vmatpush2.msra.mxu0 0.0
    %4536 = vmatprep.subr.mxu0 0.0
    %4537 = vmatpush2.msra.mxu0 0.0
    %4538 = vmatprep.subr.mxu0 0.0
    %4539 = vmatpush2.msra.mxu0 0.0
    %4540 = vmatprep.subr.mxu0 0.0
    %4541 = vmatpush2.msra.mxu0 0.0
    %4542 = vmatprep.subr.mxu0 0.0
    %4543 = vmatpush2.msra.mxu0 0.0
    %4544 = vmatprep.subr.mxu0 0.0
    %4545 = vmatpush2.msra.mxu0 0.0
    %4546 = vmatprep.subr.mxu0 0.0
    %4547 = vmatpush2.msra.mxu0 0.0
    %4548 = vmatprep.subr.mxu0 0.0
    %4549 = vmatpush2.msra.mxu0 0.0
    %4550 = vmatprep.subr.mxu0 0.0
    %4551 = vmatpush2.msra.mxu0 0.0
    %4552 = vmatprep.subr.mxu0 0.0
    %4553 = vmatpush2.msra.mxu0 0.0
    %4554 = vmatprep.subr.mxu0 0.0
    %4555 = vmatpush2.msra.mxu0 0.0
    %4556 = vmatprep.subr.mxu0 0.0
    %4557 = vmatpush2.msra.mxu0 0.0
    %4558 = vmatprep.mubr.f32.mxu0 0.0
    %4559 = vmatmul.mubr.f32.gmra.mxu0 %v4303
    %v4560 = vpop.f32.mrf.mxu0
    %v4561 = vadd.f32 0.0, %v4560
    %v4562 = vpop.f32.mrf.mxu0
    %4563 = vmatprep.mubr.f32.mxu0 0.0
    %4564 = vmatmul.mubr.f32.gmra.mxu0 %v4306
    %v4565 = vpop.f32.mrf.mxu0
    %v4566 = vadd.f32 0.0, %v4565
    %v4567 = vpop.f32.mrf.mxu0
    %4568 = vmatprep.mubr.f32.mxu0 0.0
    %4569 = vmatmul.mubr.f32.gmra.mxu0 %v4309
    %v4570 = vpop.f32.mrf.mxu0
    %v4571 = vadd.f32 0.0, %v4570
    %v4572 = vpop.f32.mrf.mxu0
    %4573 = vmatprep.mubr.f32.mxu0 0.0
    %4574 = vmatmul.mubr.f32.gmra.mxu0 %v4312
    %v4575 = vpop.f32.mrf.mxu0
    %v4576 = vadd.f32 0.0, %v4575
    %v4577 = vpop.f32.mrf.mxu0
    %4578 = vmatprep.mubr.f32.mxu0 0.0
    %4579 = vmatmul.mubr.f32.gmra.mxu0 %v4315
    %v4580 = vpop.f32.mrf.mxu0
    %v4581 = vadd.f32 0.0, %v4580
    %v4582 = vpop.f32.mrf.mxu0
    %4583 = vmatprep.mubr.f32.mxu0 0.0
    %4584 = vmatmul.mubr.f32.gmra.mxu0 %v4318
    %v4585 = vpop.f32.mrf.mxu0
    %v4586 = vadd.f32 0.0, %v4585
    %v4587 = vpop.f32.mrf.mxu0
    %4588 = vmatprep.mubr.f32.mxu0 0.0
    %4589 = vmatmul.mubr.f32.gmra.mxu0 %v4321
    %v4590 = vpop.f32.mrf.mxu0
    %v4591 = vadd.f32 0.0, %v4590
    %v4592 = vpop.f32.mrf.mxu0
    %4593 = vmatprep.mubr.f32.mxu0 0.0
    %4594 = vmatmul.mubr.f32.gmra.mxu0 %v4324
    %v4595 = vpop.f32.mrf.mxu0
    %v4596 = vadd.f32 0.0, %v4595
    %v4597 = vpop.f32.mrf.mxu0
    %4598 = vmatprep.mubr.f32.mxu0 0.0
    %4599 = vmatmul.mubr.f32.gmra.mxu0 %v4327
    %v4600 = vpop.f32.mrf.mxu0
    %v4601 = vadd.f32 0.0, %v4600
    %v4602 = vpop.f32.mrf.mxu0
    %4603 = vmatprep.mubr.f32.mxu0 0.0
    %4604 = vmatmul.mubr.f32.gmra.mxu0 %v4330
    %v4605 = vpop.f32.mrf.mxu0
    %v4606 = vadd.f32 0.0, %v4605
    %v4607 = vpop.f32.mrf.mxu0
    %4608 = vmatprep.mubr.f32.mxu0 0.0
    %4609 = vmatmul.mubr.f32.gmra.mxu0 %v4333
    %v4610 = vpop.f32.mrf.mxu0
    %v4611 = vadd.f32 0.0, %v4610
    %v4612 = vpop.f32.mrf.mxu0
    %4613 = vmatprep.mubr.f32.mxu0 0.0
    %4614 = vmatmul.mubr.f32.gmra.mxu0 %v4336
    %v4615 = vpop.f32.mrf.mxu0
    %v4616 = vadd.f32 0.0, %v4615
    %v4617 = vpop.f32.mrf.mxu0
    %4618 = vmatprep.mubr.f32.mxu0 0.0
    %4619 = vmatmul.mubr.f32.gmra.mxu0 %v4339
    %v4620 = vpop.f32.mrf.mxu0
    %v4621 = vadd.f32 0.0, %v4620
    %v4622 = vpop.f32.mrf.mxu0
    %4623 = vmatprep.mubr.f32.mxu0 0.0
    %4624 = vmatmul.mubr.f32.gmra.mxu0 %v4342
    %v4625 = vpop.f32.mrf.mxu0
    %v4626 = vadd.f32 0.0, %v4625
    %v4627 = vpop.f32.mrf.mxu0
    %4628 = vmatprep.mubr.f32.mxu0 0.0
    %4629 = vmatmul.mubr.f32.gmra.mxu0 %v4345
    %v4630 = vpop.f32.mrf.mxu0
    %v4631 = vadd.f32 0.0, %v4630
    %v4632 = vpop.f32.mrf.mxu0
    %4633 = vmatprep.mubr.f32.mxu0 0.0
    %4634 = vmatmul.mubr.f32.gmra.mxu0 %v4348
    %v4635 = vpop.f32.mrf.mxu0
    %v4636 = vadd.f32 0.0, %v4635
    %v4637 = vpop.f32.mrf.mxu0
    %4638 = vmatprep.mubr.f32.mxu0 0.0
    %4639 = vmatmul.mubr.f32.gmra.mxu0 %v4351
    %v4640 = vpop.f32.mrf.mxu0
    %v4641 = vadd.f32 0.0, %v4640
    %v4642 = vpop.f32.mrf.mxu0
    %4643 = vmatprep.mubr.f32.mxu0 0.0
    %4644 = vmatmul.mubr.f32.gmra.mxu0 %v4354
    %v4645 = vpop.f32.mrf.mxu0
    %v4646 = vadd.f32 0.0, %v4645
    %v4647 = vpop.f32.mrf.mxu0
    %4648 = vmatprep.mubr.f32.mxu0 0.0
    %4649 = vmatmul.mubr.f32.gmra.mxu0 %v4357
    %v4650 = vpop.f32.mrf.mxu0
    %v4651 = vadd.f32 0.0, %v4650
    %v4652 = vpop.f32.mrf.mxu0
    %4653 = vmatprep.mubr.f32.mxu0 0.0
    %4654 = vmatmul.mubr.f32.gmra.mxu0 %v4360
    %v4655 = vpop.f32.mrf.mxu0
    %v4656 = vadd.f32 0.0, %v4655
    %v4657 = vpop.f32.mrf.mxu0
    %4658 = vmatprep.mubr.f32.mxu0 0.0
    %4659 = vmatmul.mubr.f32.gmra.mxu0 %v4363
    %v4660 = vpop.f32.mrf.mxu0
    %v4661 = vadd.f32 0.0, %v4660
    %v4662 = vpop.f32.mrf.mxu0
    %4663 = vmatprep.mubr.f32.mxu0 0.0
    %4664 = vmatmul.mubr.f32.gmra.mxu0 %v4366
    %v4665 = vpop.f32.mrf.mxu0
    %v4666 = vadd.f32 0.0, %v4665
    %v4667 = vpop.f32.mrf.mxu0
    %4668 = vmatprep.mubr.f32.mxu0 0.0
    %4669 = vmatmul.mubr.f32.gmra.mxu0 %v4369
    %v4670 = vpop.f32.mrf.mxu0
    %v4671 = vadd.f32 0.0, %v4670
    %v4672 = vpop.f32.mrf.mxu0
    %4673 = vmatprep.mubr.f32.mxu0 0.0
    %4674 = vmatmul.mubr.f32.gmra.mxu0 %v4372
    %v4675 = vpop.f32.mrf.mxu0
    %v4676 = vadd.f32 0.0, %v4675
    %v4677 = vpop.f32.mrf.mxu0
    %4678 = vmatprep.mubr.f32.mxu0 0.0
    %4679 = vmatmul.mubr.f32.gmra.mxu0 %v4375
    %v4680 = vpop.f32.mrf.mxu0
    %v4681 = vadd.f32 0.0, %v4680
    %v4682 = vpop.f32.mrf.mxu0
    %4683 = vmatprep.mubr.f32.mxu0 0.0
    %4684 = vmatmul.mubr.f32.gmra.mxu0 %v4378
    %v4685 = vpop.f32.mrf.mxu0
    %v4686 = vadd.f32 0.0, %v4685
    %v4687 = vpop.f32.mrf.mxu0
    %4688 = vmatprep.mubr.f32.mxu0 0.0
    %4689 = vmatmul.mubr.f32.gmra.mxu0 %v4381
    %v4690 = vpop.f32.mrf.mxu0
    %v4691 = vadd.f32 0.0, %v4690
    %v4692 = vpop.f32.mrf.mxu0
    %4693 = vmatprep.mubr.f32.mxu0 0.0
    %4694 = vmatmul.mubr.f32.gmra.mxu0 %v4384
    %v4695 = vpop.f32.mrf.mxu0
    %v4696 = vadd.f32 0.0, %v4695
    %v4697 = vpop.f32.mrf.mxu0
    %4698 = vmatprep.mubr.f32.mxu0 0.0
    %4699 = vmatmul.mubr.f32.gmra.mxu0 %v4387
    %v4700 = vpop.f32.mrf.mxu0
    %v4701 = vadd.f32 0.0, %v4700
    %v4702 = vpop.f32.mrf.mxu0
    %4703 = vmatprep.mubr.f32.mxu0 0.0
    %4704 = vmatmul.mubr.f32.gmra.mxu0 %v4390
    %v4705 = vpop.f32.mrf.mxu0
    %v4706 = vadd.f32 0.0, %v4705
    %v4707 = vpop.f32.mrf.mxu0
    %4708 = vmatprep.mubr.f32.mxu0 0.0
    %4709 = vmatmul.mubr.f32.gmra.mxu0 %v4393
    %v4710 = vpop.f32.mrf.mxu0
    %v4711 = vadd.f32 0.0, %v4710
    %v4712 = vpop.f32.mrf.mxu0
    %4713 = vmatprep.mubr.f32.mxu0 0.0
    %4714 = vmatmul.mubr.f32.gmra.mxu0 %v4396
    %v4715 = vpop.f32.mrf.mxu0
    %v4716 = vadd.f32 0.0, %v4715
    %v4717 = vpop.f32.mrf.mxu0
    %4718 = vmatprep.mubr.f32.mxu0 0.0
    %4719 = vmatmul.mubr.f32.gmra.mxu0 %v4399
    %v4720 = vpop.f32.mrf.mxu0
    %v4721 = vadd.f32 0.0, %v4720
    %v4722 = vpop.f32.mrf.mxu0
    %4723 = vmatprep.mubr.f32.mxu0 0.0
    %4724 = vmatmul.mubr.f32.gmra.mxu0 %v4402
    %v4725 = vpop.f32.mrf.mxu0
    %v4726 = vadd.f32 0.0, %v4725
    %v4727 = vpop.f32.mrf.mxu0
    %4728 = vmatprep.mubr.f32.mxu0 0.0
    %4729 = vmatmul.mubr.f32.gmra.mxu0 %v4405
    %v4730 = vpop.f32.mrf.mxu0
    %v4731 = vadd.f32 0.0, %v4730
    %v4732 = vpop.f32.mrf.mxu0
    %4733 = vmatprep.mubr.f32.mxu0 0.0
    %4734 = vmatmul.mubr.f32.gmra.mxu0 %v4408
    %v4735 = vpop.f32.mrf.mxu0
    %v4736 = vadd.f32 0.0, %v4735
    %v4737 = vpop.f32.mrf.mxu0
    %4738 = vmatprep.mubr.f32.mxu0 0.0
    %4739 = vmatmul.mubr.f32.gmra.mxu0 %v4411
    %v4740 = vpop.f32.mrf.mxu0
    %v4741 = vadd.f32 0.0, %v4740
    %v4742 = vpop.f32.mrf.mxu0
    %4743 = vmatprep.mubr.f32.mxu0 0.0
    %4744 = vmatmul.mubr.f32.gmra.mxu0 %v4414
    %v4745 = vpop.f32.mrf.mxu0
    %v4746 = vadd.f32 0.0, %v4745
    %v4747 = vpop.f32.mrf.mxu0
    %4748 = vmatprep.mubr.f32.mxu0 0.0
    %4749 = vmatmul.mubr.f32.gmra.mxu0 %v4417
    %v4750 = vpop.f32.mrf.mxu0
    %v4751 = vadd.f32 0.0, %v4750
    %v4752 = vpop.f32.mrf.mxu0
    %4753 = vmatprep.mubr.f32.mxu0 0.0
    %4754 = vmatmul.mubr.f32.gmra.mxu0 %v4420
    %v4755 = vpop.f32.mrf.mxu0
    %v4756 = vadd.f32 0.0, %v4755
    %v4757 = vpop.f32.mrf.mxu0
    %4758 = vmatprep.mubr.f32.mxu0 0.0
    %4759 = vmatmul.mubr.f32.gmra.mxu0 %v4423
    %v4760 = vpop.f32.mrf.mxu0
    %v4761 = vadd.f32 0.0, %v4760
    %v4762 = vpop.f32.mrf.mxu0
    %4763 = vmatprep.mubr.f32.mxu0 0.0
    %4764 = vmatmul.mubr.f32.gmra.mxu0 %v4426
    %v4765 = vpop.f32.mrf.mxu0
    %v4766 = vadd.f32 0.0, %v4765
    %v4767 = vpop.f32.mrf.mxu0
    %4768 = vmatprep.mubr.f32.mxu0 0.0
    %4769 = vmatmul.mubr.f32.gmra.mxu0 %v4429
    %v4770 = vpop.f32.mrf.mxu0
    %v4771 = vadd.f32 0.0, %v4770
    %v4772 = vpop.f32.mrf.mxu0
    %4773 = vmatprep.mubr.f32.mxu0 0.0
    %4774 = vmatmul.mubr.f32.gmra.mxu0 %v4432
    %v4775 = vpop.f32.mrf.mxu0
    %v4776 = vadd.f32 0.0, %v4775
    %v4777 = vpop.f32.mrf.mxu0
    %4778 = vmatprep.mubr.f32.mxu0 0.0
    %4779 = vmatmul.mubr.f32.gmra.mxu0 %v4435
    %v4780 = vpop.f32.mrf.mxu0
    %v4781 = vadd.f32 0.0, %v4780
    %v4782 = vpop.f32.mrf.mxu0
    %4783 = vmatprep.mubr.f32.mxu0 0.0
    %4784 = vmatmul.mubr.f32.gmra.mxu0 %v4438
    %v4785 = vpop.f32.mrf.mxu0
    %v4786 = vadd.f32 0.0, %v4785
    %v4787 = vpop.f32.mrf.mxu0
    %4788 = vmatprep.mubr.f32.mxu0 0.0
    %4789 = vmatmul.mubr.f32.gmra.mxu0 %v4441
    %v4790 = vpop.f32.mrf.mxu0
    %v4791 = vadd.f32 0.0, %v4790
    %v4792 = vpop.f32.mrf.mxu0
    %4793 = vmatprep.mubr.f32.mxu0 0.0
    %4794 = vmatmul.mubr.f32.gmra.mxu0 %v4444
    %v4795 = vpop.f32.mrf.mxu0
    %v4796 = vadd.f32 0.0, %v4795
    %v4797 = vpop.f32.mrf.mxu0
    %4798 = vmatprep.mubr.f32.mxu0 0.0
    %4799 = vmatmul.mubr.f32.gmra.mxu0 %v4447
    %v4800 = vpop.f32.mrf.mxu0
    %v4801 = vadd.f32 0.0, %v4800
    %v4802 = vpop.f32.mrf.mxu0
    %4803 = vmatprep.mubr.f32.mxu0 0.0
    %4804 = vmatmul.mubr.f32.gmra.mxu0 %v4450
    %v4805 = vpop.f32.mrf.mxu0
    %v4806 = vadd.f32 0.0, %v4805
    %v4807 = vpop.f32.mrf.mxu0
    %4808 = vmatprep.mubr.f32.mxu0 0.0
    %4809 = vmatmul.mubr.f32.gmra.mxu0 %v4453
    %v4810 = vpop.f32.mrf.mxu0
    %v4811 = vadd.f32 0.0, %v4810
    %v4812 = vpop.f32.mrf.mxu0
    %4813 = vmatprep.mubr.f32.mxu0 0.0
    %4814 = vmatmul.mubr.f32.gmra.mxu0 %v4456
    %v4815 = vpop.f32.mrf.mxu0
    %v4816 = vadd.f32 0.0, %v4815
    %v4817 = vpop.f32.mrf.mxu0
    %4818 = vmatprep.mubr.f32.mxu0 0.0
    %4819 = vmatmul.mubr.f32.gmra.mxu0 %v4459
    %v4820 = vpop.f32.mrf.mxu0
    %v4821 = vadd.f32 0.0, %v4820
    %v4822 = vpop.f32.mrf.mxu0
    %4823 = vmatprep.mubr.f32.mxu0 0.0
    %4824 = vmatmul.mubr.f32.gmra.mxu0 %v4462
    %v4825 = vpop.f32.mrf.mxu0
    %v4826 = vadd.f32 0.0, %v4825
    %v4827 = vpop.f32.mrf.mxu0
    %4828 = vmatprep.mubr.f32.mxu0 0.0
    %4829 = vmatmul.mubr.f32.gmra.mxu0 %v4465
    %v4830 = vpop.f32.mrf.mxu0
    %v4831 = vadd.f32 0.0, %v4830
    %v4832 = vpop.f32.mrf.mxu0
    %4833 = vmatprep.mubr.f32.mxu0 0.0
    %4834 = vmatmul.mubr.f32.gmra.mxu0 %v4468
    %v4835 = vpop.f32.mrf.mxu0
    %v4836 = vadd.f32 0.0, %v4835
    %v4837 = vpop.f32.mrf.mxu0
    %4838 = vmatprep.mubr.f32.mxu0 0.0
    %4839 = vmatmul.mubr.f32.gmra.mxu0 %v4471
    %v4840 = vpop.f32.mrf.mxu0
    %v4841 = vadd.f32 0.0, %v4840
    %v4842 = vpop.f32.mrf.mxu0
    %4843 = vmatprep.mubr.f32.mxu0 0.0
    %4844 = vmatmul.mubr.f32.gmra.mxu0 %v4474
    %v4845 = vpop.f32.mrf.mxu0
    %v4846 = vadd.f32 0.0, %v4845
    %v4847 = vpop.f32.mrf.mxu0
    %4848 = vmatprep.mubr.f32.mxu0 0.0
    %4849 = vmatmul.mubr.f32.gmra.mxu0 %v4477
    %v4850 = vpop.f32.mrf.mxu0
    %v4851 = vadd.f32 0.0, %v4850
    %v4852 = vpop.f32.mrf.mxu0
    %4853 = vmatprep.mubr.f32.mxu0 0.0
    %4854 = vmatmul.mubr.f32.gmra.mxu0 %v4480
    %v4855 = vpop.f32.mrf.mxu0
    %v4856 = vadd.f32 0.0, %v4855
    %v4857 = vpop.f32.mrf.mxu0
    %4858 = vmatprep.mubr.f32.mxu0 0.0
    %4859 = vmatmul.mubr.f32.gmra.mxu0 %v4483
    %v4860 = vpop.f32.mrf.mxu0
    %v4861 = vadd.f32 0.0, %v4860
    %v4862 = vpop.f32.mrf.mxu0
    %4863 = vmatprep.mubr.f32.mxu0 0.0
    %4864 = vmatmul.mubr.f32.gmra.mxu0 %v4486
    %v4865 = vpop.f32.mrf.mxu0
    %v4866 = vadd.f32 0.0, %v4865
    %v4867 = vpop.f32.mrf.mxu0
    %4868 = vmatprep.mubr.f32.mxu0 0.0
    %4869 = vmatmul.mubr.f32.gmra.mxu0 %v4489
    %v4870 = vpop.f32.mrf.mxu0
    %v4871 = vadd.f32 0.0, %v4870
    %v4872 = vpop.f32.mrf.mxu0
    %4873 = vmatprep.mubr.f32.mxu0 0.0
    %4874 = vmatmul.mubr.f32.gmra.mxu0 %v4492
    %v4875 = vpop.f32.mrf.mxu0
    %v4876 = vadd.f32 0.0, %v4875
    %v4877 = vpop.f32.mrf.mxu0
    %4878 = vdwg.mxu0
    %v4879 = vld [vmem:[%s11] sm:$0x1]
    %v4881 = vlaneseq
    %v4882 = vshrl.u32 %v4881, 7
    %v4883 = vsub.s32 0, %v4882
    %v4884 = vrot.slane %v4879, %v4883
    %v4886 = vmul.f32 %v4561, %v4884
    %v4887 = vmul.f32 %v4566, %v4884
    %v4888 = vmul.f32 %v4571, %v4884
    %v4889 = vmul.f32 %v4576, %v4884
    %v4890 = vmul.f32 %v4581, %v4884
    %v4891 = vmul.f32 %v4586, %v4884
    %v4892 = vmul.f32 %v4591, %v4884
    %v4893 = vmul.f32 %v4596, %v4884
    %v4894 = vmul.f32 %v4601, %v4884
    %v4895 = vmul.f32 %v4606, %v4884
    %v4896 = vmul.f32 %v4611, %v4884
    %v4897 = vmul.f32 %v4616, %v4884
    %v4898 = vmul.f32 %v4621, %v4884
    %v4899 = vmul.f32 %v4626, %v4884
    %v4900 = vmul.f32 %v4631, %v4884
    %v4901 = vmul.f32 %v4636, %v4884
    %v4902 = vmul.f32 %v4641, %v4884
    %v4903 = vmul.f32 %v4646, %v4884
    %v4904 = vmul.f32 %v4651, %v4884
    %v4905 = vmul.f32 %v4656, %v4884
    %v4906 = vmul.f32 %v4661, %v4884
    %v4907 = vmul.f32 %v4666, %v4884
    %v4908 = vmul.f32 %v4671, %v4884
    %v4909 = vmul.f32 %v4676, %v4884
    %v4910 = vmul.f32 %v4681, %v4884
    %v4911 = vmul.f32 %v4686, %v4884
    %v4912 = vmul.f32 %v4691, %v4884
    %v4913 = vmul.f32 %v4696, %v4884
    %v4914 = vmul.f32 %v4701, %v4884
    %v4915 = vmul.f32 %v4706, %v4884
    %v4916 = vmul.f32 %v4711, %v4884
    %v4917 = vmul.f32 %v4716, %v4884
    %v4918 = vmul.f32 %v4721, %v4884
    %v4919 = vmul.f32 %v4726, %v4884
    %v4920 = vmul.f32 %v4731, %v4884
    %v4921 = vmul.f32 %v4736, %v4884
    %v4922 = vmul.f32 %v4741, %v4884
    %v4923 = vmul.f32 %v4746, %v4884
    %v4924 = vmul.f32 %v4751, %v4884
    %v4925 = vmul.f32 %v4756, %v4884
    %v4926 = vmul.f32 %v4761, %v4884
    %v4927 = vmul.f32 %v4766, %v4884
    %v4928 = vmul.f32 %v4771, %v4884
    %v4929 = vmul.f32 %v4776, %v4884
    %v4930 = vmul.f32 %v4781, %v4884
    %v4931 = vmul.f32 %v4786, %v4884
    %v4932 = vmul.f32 %v4791, %v4884
    %v4933 = vmul.f32 %v4796, %v4884
    %v4934 = vmul.f32 %v4801, %v4884
    %v4935 = vmul.f32 %v4806, %v4884
    %v4936 = vmul.f32 %v4811, %v4884
    %v4937 = vmul.f32 %v4816, %v4884
    %v4938 = vmul.f32 %v4821, %v4884
    %v4939 = vmul.f32 %v4826, %v4884
    %v4940 = vmul.f32 %v4831, %v4884
    %v4941 = vmul.f32 %v4836, %v4884
    %v4942 = vmul.f32 %v4841, %v4884
    %v4943 = vmul.f32 %v4846, %v4884
    %v4944 = vmul.f32 %v4851, %v4884
    %v4945 = vmul.f32 %v4856, %v4884
    %v4946 = vmul.f32 %v4861, %v4884
    %v4947 = vmul.f32 %v4866, %v4884
    %v4948 = vmul.f32 %v4871, %v4884
    %v4949 = vmul.f32 %v4876, %v4884
    %v4950 = vld [vmem:[%s12] sm:$0x1]
    %v4952 = vlaneseq
    %v4953 = vshrl.u32 %v4952, 7
    %v4954 = vsub.s32 0, %v4953
    %v4955 = vrot.slane %v4950, %v4954
    %v4957 = vadd.f32 %v4886, %v4955
    %v4958 = vadd.f32 %v4887, %v4955
    %v4959 = vadd.f32 %v4888, %v4955
    %v4960 = vadd.f32 %v4889, %v4955
    %v4961 = vadd.f32 %v4890, %v4955
    %v4962 = vadd.f32 %v4891, %v4955
    %v4963 = vadd.f32 %v4892, %v4955
    %v4964 = vadd.f32 %v4893, %v4955
    %v4965 = vadd.f32 %v4894, %v4955
    %v4966 = vadd.f32 %v4895, %v4955
    %v4967 = vadd.f32 %v4896, %v4955
    %v4968 = vadd.f32 %v4897, %v4955
    %v4969 = vadd.f32 %v4898, %v4955
    %v4970 = vadd.f32 %v4899, %v4955
    %v4971 = vadd.f32 %v4900, %v4955
    %v4972 = vadd.f32 %v4901, %v4955
    %v4973 = vadd.f32 %v4902, %v4955
    %v4974 = vadd.f32 %v4903, %v4955
    %v4975 = vadd.f32 %v4904, %v4955
    %v4976 = vadd.f32 %v4905, %v4955
    %v4977 = vadd.f32 %v4906, %v4955
    %v4978 = vadd.f32 %v4907, %v4955
    %v4979 = vadd.f32 %v4908, %v4955
    %v4980 = vadd.f32 %v4909, %v4955
    %v4981 = vadd.f32 %v4910, %v4955
    %v4982 = vadd.f32 %v4911, %v4955
    %v4983 = vadd.f32 %v4912, %v4955
    %v4984 = vadd.f32 %v4913, %v4955
    %v4985 = vadd.f32 %v4914, %v4955
    %v4986 = vadd.f32 %v4915, %v4955
    %v4987 = vadd.f32 %v4916, %v4955
    %v4988 = vadd.f32 %v4917, %v4955
    %v4989 = vadd.f32 %v4918, %v4955
    %v4990 = vadd.f32 %v4919, %v4955
    %v4991 = vadd.f32 %v4920, %v4955
    %v4992 = vadd.f32 %v4921, %v4955
    %v4993 = vadd.f32 %v4922, %v4955
    %v4994 = vadd.f32 %v4923, %v4955
    %v4995 = vadd.f32 %v4924, %v4955
    %v4996 = vadd.f32 %v4925, %v4955
    %v4997 = vadd.f32 %v4926, %v4955
    %v4998 = vadd.f32 %v4927, %v4955
    %v4999 = vadd.f32 %v4928, %v4955
    %v5000 = vadd.f32 %v4929, %v4955
    %v5001 = vadd.f32 %v4930, %v4955
    %v5002 = vadd.f32 %v4931, %v4955
    %v5003 = vadd.f32 %v4932, %v4955
    %v5004 = vadd.f32 %v4933, %v4955
    %v5005 = vadd.f32 %v4934, %v4955
    %v5006 = vadd.f32 %v4935, %v4955
    %v5007 = vadd.f32 %v4936, %v4955
    %v5008 = vadd.f32 %v4937, %v4955
    %v5009 = vadd.f32 %v4938, %v4955
    %v5010 = vadd.f32 %v4939, %v4955
    %v5011 = vadd.f32 %v4940, %v4955
    %v5012 = vadd.f32 %v4941, %v4955
    %v5013 = vadd.f32 %v4942, %v4955
    %v5014 = vadd.f32 %v4943, %v4955
    %v5015 = vadd.f32 %v4944, %v4955
    %v5016 = vadd.f32 %v4945, %v4955
    %v5017 = vadd.f32 %v4946, %v4955
    %v5018 = vadd.f32 %v4947, %v4955
    %v5019 = vadd.f32 %v4948, %v4955
    %v5020 = vadd.f32 %v4949, %v4955
    %v5021 = vadd.f32 %v4171, %v4957
    %v5022 = vadd.f32 %v4172, %v4958
    %v5023 = vadd.f32 %v4173, %v4959
    %v5024 = vadd.f32 %v4174, %v4960
    %v5025 = vadd.f32 %v4175, %v4961
    %v5026 = vadd.f32 %v4176, %v4962
    %v5027 = vadd.f32 %v4177, %v4963
    %v5028 = vadd.f32 %v4178, %v4964
    %v5029 = vadd.f32 %v4179, %v4965
    %v5030 = vadd.f32 %v4180, %v4966
    %v5031 = vadd.f32 %v4181, %v4967
    %v5032 = vadd.f32 %v4182, %v4968
    %v5033 = vadd.f32 %v4183, %v4969
    %v5034 = vadd.f32 %v4184, %v4970
    %v5035 = vadd.f32 %v4185, %v4971
    %v5036 = vadd.f32 %v4186, %v4972
    %v5037 = vadd.f32 %v4187, %v4973
    %v5038 = vadd.f32 %v4188, %v4974
    %v5039 = vadd.f32 %v4189, %v4975
    %v5040 = vadd.f32 %v4190, %v4976
    %v5041 = vadd.f32 %v4191, %v4977
    %v5042 = vadd.f32 %v4192, %v4978
    %v5043 = vadd.f32 %v4193, %v4979
    %v5044 = vadd.f32 %v4194, %v4980
    %v5045 = vadd.f32 %v4195, %v4981
    %v5046 = vadd.f32 %v4196, %v4982
    %v5047 = vadd.f32 %v4197, %v4983
    %v5048 = vadd.f32 %v4198, %v4984
    %v5049 = vadd.f32 %v4199, %v4985
    %v5050 = vadd.f32 %v4200, %v4986
    %v5051 = vadd.f32 %v4201, %v4987
    %v5052 = vadd.f32 %v4202, %v4988
    %v5053 = vadd.f32 %v4203, %v4989
    %v5054 = vadd.f32 %v4204, %v4990
    %v5055 = vadd.f32 %v4205, %v4991
    %v5056 = vadd.f32 %v4206, %v4992
    %v5057 = vadd.f32 %v4207, %v4993
    %v5058 = vadd.f32 %v4208, %v4994
    %v5059 = vadd.f32 %v4209, %v4995
    %v5060 = vadd.f32 %v4210, %v4996
    %v5061 = vadd.f32 %v4211, %v4997
    %v5062 = vadd.f32 %v4212, %v4998
    %v5063 = vadd.f32 %v4213, %v4999
    %v5064 = vadd.f32 %v4214, %v5000
    %v5065 = vadd.f32 %v4215, %v5001
    %v5066 = vadd.f32 %v4216, %v5002
    %v5067 = vadd.f32 %v4217, %v5003
    %v5068 = vadd.f32 %v4218, %v5004
    %v5069 = vadd.f32 %v4219, %v5005
    %v5070 = vadd.f32 %v4220, %v5006
    %v5071 = vadd.f32 %v4221, %v5007
    %v5072 = vadd.f32 %v4222, %v5008
    %v5073 = vadd.f32 %v4223, %v5009
    %v5074 = vadd.f32 %v4224, %v5010
    %v5075 = vadd.f32 %v4225, %v5011
    %v5076 = vadd.f32 %v4226, %v5012
    %v5077 = vadd.f32 %v4227, %v5013
    %v5078 = vadd.f32 %v4228, %v5014
    %v5079 = vadd.f32 %v4229, %v5015
    %v5080 = vadd.f32 %v4230, %v5016
    %v5081 = vadd.f32 %v4231, %v5017
    %v5082 = vadd.f32 %v4232, %v5018
    %v5083 = vadd.f32 %v4233, %v5019
    %v5084 = vadd.f32 %v4234, %v5020
    %5085 = vst [vmem:[#allocation12] sm:$0xff] %v5021
    %5086 = vst [vmem:[#allocation12 + $0x8] sm:$0xff] %v5022
    %5087 = vst [vmem:[#allocation12 + $0x10] sm:$0xff] %v5023
    %5088 = vst [vmem:[#allocation12 + $0x18] sm:$0xff] %v5024
    %5089 = vst [vmem:[#allocation12 + $0x20] sm:$0xff] %v5025
    %5090 = vst [vmem:[#allocation12 + $0x28] sm:$0xff] %v5026
    %5091 = vst [vmem:[#allocation12 + $0x30] sm:$0xff] %v5027
    %5092 = vst [vmem:[#allocation12 + $0x38] sm:$0xff] %v5028
    %5093 = vst [vmem:[#allocation12 + $0x40] sm:$0xff] %v5029
    %5094 = vst [vmem:[#allocation12 + $0x48] sm:$0xff] %v5030
    %5095 = vst [vmem:[#allocation12 + $0x50] sm:$0xff] %v5031
    %5096 = vst [vmem:[#allocation12 + $0x58] sm:$0xff] %v5032
    %5097 = vst [vmem:[#allocation12 + $0x60] sm:$0xff] %v5033
    %5098 = vst [vmem:[#allocation12 + $0x68] sm:$0xff] %v5034
    %5099 = vst [vmem:[#allocation12 + $0x70] sm:$0xff] %v5035
    %5100 = vst [vmem:[#allocation12 + $0x78] sm:$0xff] %v5036
    %5101 = vst [vmem:[#allocation12 + $0x80] sm:$0xff] %v5037
    %5102 = vst [vmem:[#allocation12 + $0x88] sm:$0xff] %v5038
    %5103 = vst [vmem:[#allocation12 + $0x90] sm:$0xff] %v5039
    %5104 = vst [vmem:[#allocation12 + $0x98] sm:$0xff] %v5040
    %5105 = vst [vmem:[#allocation12 + $0xa0] sm:$0xff] %v5041
    %5106 = vst [vmem:[#allocation12 + $0xa8] sm:$0xff] %v5042
    %5107 = vst [vmem:[#allocation12 + $0xb0] sm:$0xff] %v5043
    %5108 = vst [vmem:[#allocation12 + $0xb8] sm:$0xff] %v5044
    %5109 = vst [vmem:[#allocation12 + $0xc0] sm:$0xff] %v5045
    %5110 = vst [vmem:[#allocation12 + $0xc8] sm:$0xff] %v5046
    %5111 = vst [vmem:[#allocation12 + $0xd0] sm:$0xff] %v5047
    %5112 = vst [vmem:[#allocation12 + $0xd8] sm:$0xff] %v5048
    %5113 = vst [vmem:[#allocation12 + $0xe0] sm:$0xff] %v5049
    %5114 = vst [vmem:[#allocation12 + $0xe8] sm:$0xff] %v5050
    %5115 = vst [vmem:[#allocation12 + $0xf0] sm:$0xff] %v5051
    %5116 = vst [vmem:[#allocation12 + $0xf8] sm:$0xff] %v5052
    %5117 = vst [vmem:[#allocation12 + $0x100] sm:$0xff] %v5053
    %5118 = vst [vmem:[#allocation12 + $0x108] sm:$0xff] %v5054
    %5119 = vst [vmem:[#allocation12 + $0x110] sm:$0xff] %v5055
    %5120 = vst [vmem:[#allocation12 + $0x118] sm:$0xff] %v5056
    %5121 = vst [vmem:[#allocation12 + $0x120] sm:$0xff] %v5057
    %5122 = vst [vmem:[#allocation12 + $0x128] sm:$0xff] %v5058
    %5123 = vst [vmem:[#allocation12 + $0x130] sm:$0xff] %v5059
    %5124 = vst [vmem:[#allocation12 + $0x138] sm:$0xff] %v5060
    %5125 = vst [vmem:[#allocation12 + $0x140] sm:$0xff] %v5061
    %5126 = vst [vmem:[#allocation12 + $0x148] sm:$0xff] %v5062
    %5127 = vst [vmem:[#allocation12 + $0x150] sm:$0xff] %v5063
    %5128 = vst [vmem:[#allocation12 + $0x158] sm:$0xff] %v5064
    %5129 = vst [vmem:[#allocation12 + $0x160] sm:$0xff] %v5065
    %5130 = vst [vmem:[#allocation12 + $0x168] sm:$0xff] %v5066
    %5131 = vst [vmem:[#allocation12 + $0x170] sm:$0xff] %v5067
    %5132 = vst [vmem:[#allocation12 + $0x178] sm:$0xff] %v5068
    %5133 = vst [vmem:[#allocation12 + $0x180] sm:$0xff] %v5069
    %5134 = vst [vmem:[#allocation12 + $0x188] sm:$0xff] %v5070
    %5135 = vst [vmem:[#allocation12 + $0x190] sm:$0xff] %v5071
    %5136 = vst [vmem:[#allocation12 + $0x198] sm:$0xff] %v5072
    %5137 = vst [vmem:[#allocation12 + $0x1a0] sm:$0xff] %v5073
    %5138 = vst [vmem:[#allocation12 + $0x1a8] sm:$0xff] %v5074
    %5139 = vst [vmem:[#allocation12 + $0x1b0] sm:$0xff] %v5075
    %5140 = vst [vmem:[#allocation12 + $0x1b8] sm:$0xff] %v5076
    %5141 = vst [vmem:[#allocation12 + $0x1c0] sm:$0xff] %v5077
    %5142 = vst [vmem:[#allocation12 + $0x1c8] sm:$0xff] %v5078
    %5143 = vst [vmem:[#allocation12 + $0x1d0] sm:$0xff] %v5079
    %5144 = vst [vmem:[#allocation12 + $0x1d8] sm:$0xff] %v5080
    %5145 = vst [vmem:[#allocation12 + $0x1e0] sm:$0xff] %v5081
    %5146 = vst [vmem:[#allocation12 + $0x1e8] sm:$0xff] %v5082
    %5147 = vst [vmem:[#allocation12 + $0x1f0] sm:$0xff] %v5083
    %5148 = vst [vmem:[#allocation12 + $0x1f8] sm:$0xff] %v5084
    // Predicated region
    $region74: #{tpu_custom_call.1} parent=1 // pred_check
      _
    $region75: #{tpu_custom_call.1} parent=1 // pred_check_branch
      %5150 = sbr.rel (0) target = $region77
    $region76: #{tpu_custom_call.1} parent=1 // pred_region
      %s5152 = ssub.s32 8192, 8192
      %5153 = vsyncadd [#allocation5], %s5152
      %s5154 = sshll.u32 [#allocation12], 4
      %s5155 = int_to_ptr.vmem [resolvable:$true] %s5154
      %5160 = dma.vmem_to_hbm [thread:$0]  %s5155, 8192, %s13, [#allocation5], 128, 128, 8
    $region77: #{tpu_custom_call.1} parent=1 // pred_fallthru
      _
    // Predicated region
    $region78: #{tpu_custom_call.1} parent=1 // pred_check
      _
    $region79: #{tpu_custom_call.1} parent=1 // pred_check_branch
      %5162 = sbr.rel (0) target = $region81
    $region80: #{tpu_custom_call.1} parent=1 // pred_region
      %5163 = dma.done [#allocation5], 8192
    $region81: #{tpu_custom_call.1} parent=1 // pred_fallthru
      _
    %5164 = vsyncpa [#allocation4], 1
    %5165 = vsyncpa [#allocation7], 1
    %5166 = vsyncpa [#allocation10], 1
    %5167 = vsyncpa [#allocation5], 1

</llo_original>
